<compile_context>
chip_gen: v6e
topology: v6e:2x2x1
jax: 0.10.0
libtpu: 0.0.40
codegen_flags: <defaults>
</compile_context>

<pallas_src>
import math
import functools

import jax
import jax.numpy as jnp
from jax.experimental import pallas as pl
from jax.experimental.pallas import tpu as pltpu


# ----------------------------------------------------------------------------
# Fused encoder kernel: all layers (grid axis) + final mean-pool.
# ----------------------------------------------------------------------------
def fused_encoder_kernel(x_ref, kb_ref,
                         whqkv_ref, bhqkv_ref, wo_ref, bo_ref,
                         g1_ref, be1_ref,
                         wf1_ref, bf1_ref, wf2_ref, bf2_ref,
                         g2_ref, be2_ref,
                         pooled_ref,
                         x_scratch,
                         *, nhead, ffn_chunk):
    layer = pl.program_id(0)
    n_layers = pl.num_programs(0)

    @pl.when(layer == 0)
    def _init():
        x_scratch[...] = x_ref[...].astype(jnp.float32)

    x = x_scratch[...]                                   # (B, S, D) f32
    B, S, D = x.shape
    H = nhead
    dh = D // H
    G = B * H
    scale = 1.0 / math.sqrt(dh)

    # ---- QKV projection, batched over (batch, head) -------------------------
    # x broadcast over heads; per-head weights broadcast over batch.  All
    # einsums below are 3-D with one leading batch dim (supported MXU path).
    xg = jnp.broadcast_to(x[:, None], (B, H, S, D)).reshape(G, S, D)
    xg_b = xg.astype(jnp.bfloat16)
    w_qkv = jnp.broadcast_to(whqkv_ref[...][None],
                             (B, H, D, 3 * dh)).reshape(G, D, 3 * dh)
    b_qkv = jnp.broadcast_to(bhqkv_ref[...][None],
                             (B, H, 1, 3 * dh)).reshape(G, 1, 3 * dh)
    qkv = jnp.einsum('gnd,gdf->gnf', xg_b, w_qkv,
                     preferred_element_type=jnp.float32) + b_qkv   # (G, S, 3dh)
    q = qkv[..., :dh].astype(jnp.bfloat16)
    k = qkv[..., dh:2 * dh].astype(jnp.bfloat16)
    v = qkv[..., 2 * dh:].astype(jnp.bfloat16)

    # ---- scaled dot-product attention with key-padding bias (f32 softmax) ---
    kb = kb_ref[...]                                                  # (B, S)
    kb_g = jnp.broadcast_to(kb[:, None, None, :], (B, H, 1, S)).reshape(G, 1, S)
    s = jnp.einsum('gqd,gkd->gqk', q, k,
                   preferred_element_type=jnp.float32) * scale + kb_g  # (G,S,S)
    m = jnp.max(s, axis=-1, keepdims=True)
    e = jnp.exp(s - m)
    denom = jnp.sum(e, axis=-1, keepdims=True)
    p = e * pl.reciprocal(denom, approx=True)
    ctx = jnp.einsum('gqk,gkd->gqd', p.astype(jnp.bfloat16), v,
                     preferred_element_type=jnp.float32)              # (G,S,dh)

    # ---- output projection; head-concat folded into a sum over heads --------
    wo_g = jnp.broadcast_to(wo_ref[...][None], (B, H, dh, D)).reshape(G, dh, D)
    parts = jnp.einsum('gqd,gdo->gqo', ctx.astype(jnp.bfloat16), wo_g,
                       preferred_element_type=jnp.float32)            # (G,S,D)
    parts4 = parts.reshape(B, H, S, D)
    attn = parts4[:, 0]
    for h in range(1, H):
        attn = attn + parts4[:, h]
    attn = attn + bo_ref[...]                                         # (B,S,D)

    # ---- residual + LayerNorm 1 (f32) ----------------------------------------
    h1 = x + attn
    mu = jnp.mean(h1, axis=-1, keepdims=True)
    var = jnp.mean(jnp.square(h1 - mu), axis=-1, keepdims=True)
    h1 = (h1 - mu) * jax.lax.rsqrt(var + 1e-5) * g1_ref[...] + be1_ref[...]

    # ---- feed-forward (relu), tiled over d_ff --------------------------------
    h1_2d = h1.reshape(B * S, D)
    h1_b = h1_2d.astype(jnp.bfloat16)
    Dff = wf1_ref.shape[-1]
    n_chunks = Dff // ffn_chunk
    ffn_acc = jnp.zeros((B * S, D), jnp.float32)
    for c in range(n_chunks):
        lo = c * ffn_chunk
        hi = lo + ffn_chunk
        f = jnp.dot(h1_b, wf1_ref[:, lo:hi],
                    preferred_element_type=jnp.float32) + bf1_ref[:, lo:hi]
        f = jnp.maximum(f, 0.0)
        ffn_acc = ffn_acc + jnp.dot(f.astype(jnp.bfloat16), wf2_ref[lo:hi, :],
                                    preferred_element_type=jnp.float32)
    ffn = ffn_acc.reshape(B, S, D) + bf2_ref[...]

    # ---- residual + LayerNorm 2 (f32) ----------------------------------------
    h2 = h1 + ffn
    mu2 = jnp.mean(h2, axis=-1, keepdims=True)
    var2 = jnp.mean(jnp.square(h2 - mu2), axis=-1, keepdims=True)
    h2 = (h2 - mu2) * jax.lax.rsqrt(var2 + 1e-5) * g2_ref[...] + be2_ref[...]

    x_scratch[...] = h2

    # ---- final layer: fused mean-pool over the sequence ----------------------
    @pl.when(layer == n_layers - 1)
    def _finalize():
        pooled_ref[...] = jnp.mean(h2, axis=1).astype(pooled_ref.dtype)


def transformer_encoder_fused(x, key_bias, stacked, nhead, ffn_chunk):
    """x: (B, S, D) f32; key_bias: (B, S) f32 additive (0 or -1e30).
    Returns the sequence-mean-pooled encoder output (B, D)."""
    B, S, D = x.shape
    H = nhead
    dh = D // H
    L = stacked["whqkv"].shape[0]
    Dff = stacked["wf1"].shape[-1]
    ffn_chunk = min(ffn_chunk, Dff)
    assert Dff % ffn_chunk == 0

    def wspec(*dims):        # layer-stacked param, layer dim squeezed
        n = len(dims)
        return pl.BlockSpec((None,) + dims, lambda l, _n=n: (l,) + (0,) * _n)

    def cspec(*dims):        # layer-invariant input (resident)
        n = len(dims)
        return pl.BlockSpec(dims, lambda l, _n=n: (0,) * _n)

    kernel = functools.partial(fused_encoder_kernel, nhead=nhead,
                               ffn_chunk=ffn_chunk)
    return pl.pallas_call(
        kernel,
        out_shape=jax.ShapeDtypeStruct((B, D), jnp.float32),
        grid=(L,),
        in_specs=[
            cspec(B, S, D),                    # x (embeddings)
            cspec(B, S),                       # key-padding additive bias
            wspec(H, D, 3 * dh),               # per-head packed qkv weights
            wspec(H, 1, 3 * dh),               # per-head packed qkv bias
            wspec(H, dh, D),                   # per-head out-proj weights
            wspec(1, D),                       # out-proj bias
            wspec(1, D), wspec(1, D),          # LN1 gamma / beta
            wspec(D, Dff), wspec(1, Dff),      # FFN linear1
            wspec(Dff, D), wspec(1, D),        # FFN linear2
            wspec(1, D), wspec(1, D),          # LN2 gamma / beta
        ],
        out_specs=pl.BlockSpec((B, D), lambda l: (0, 0)),
        scratch_shapes=[pltpu.VMEM((B, S, D), jnp.float32)],
        compiler_params=pltpu.CompilerParams(
            dimension_semantics=("arbitrary",),
            vmem_limit_bytes=32 * 1024 * 1024,
        ),
    )(x, key_bias,
      stacked["whqkv"], stacked["bhqkv"], stacked["wo"], stacked["bo"],
      stacked["g1"], stacked["be1"],
      stacked["wf1"], stacked["bf1"], stacked["wf2"], stacked["bf2"],
      stacked["g2"], stacked["be2"])


# ----------------------------------------------------------------------------
# Parameter construction (deterministic, synthetic) and weight re-layout.
# ----------------------------------------------------------------------------
def init_params(key, vocab_size, d_model, num_layers, d_ff=2048, n_classes=2):
    keys = jax.random.split(key, 2 + num_layers)
    emb = jax.random.normal(keys[0], (vocab_size, d_model), jnp.float32) * 0.02
    fc_w = jax.random.normal(keys[1], (d_model, n_classes), jnp.float32) * 0.02
    fc_b = jnp.zeros((1, n_classes), jnp.float32)
    layers = []
    for l in range(num_layers):
        lk = jax.random.split(keys[2 + l], 4)
        layers.append(dict(
            wqkv=jax.random.normal(lk[0], (d_model, 3 * d_model), jnp.float32) * 0.02,
            bqkv=jnp.zeros((1, 3 * d_model), jnp.float32),
            wo=jax.random.normal(lk[1], (d_model, d_model), jnp.float32) * 0.02,
            bo=jnp.zeros((1, d_model), jnp.float32),
            g1=jnp.ones((1, d_model), jnp.float32),
            be1=jnp.zeros((1, d_model), jnp.float32),
            wf1=jax.random.normal(lk[2], (d_model, d_ff), jnp.float32) * 0.02,
            bf1=jnp.zeros((1, d_ff), jnp.float32),
            wf2=jax.random.normal(lk[3], (d_ff, d_model), jnp.float32) * 0.02,
            bf2=jnp.zeros((1, d_model), jnp.float32),
            g2=jnp.ones((1, d_model), jnp.float32),
            be2=jnp.zeros((1, d_model), jnp.float32),
        ))
    return emb, layers, fc_w, fc_b


def stack_and_prep_layers(layers, nhead):
    """Stack per-layer params along a leading L axis and pre-transpose the
    attention weights into head-major layout (done once, outside the kernel)."""
    H = nhead
    D = layers[0]["wqkv"].shape[0]
    dh = D // H

    def per_head_qkv_w(wqkv):           # (D, 3D) -> (H, D, 3*dh), [q|k|v] packed
        wq = wqkv[:, :D].reshape(D, H, dh).transpose(1, 0, 2)
        wk = wqkv[:, D:2 * D].reshape(D, H, dh).transpose(1, 0, 2)
        wv = wqkv[:, 2 * D:].reshape(D, H, dh).transpose(1, 0, 2)
        return jnp.concatenate([wq, wk, wv], axis=-1)

    def per_head_qkv_b(bqkv):           # (1, 3D) -> (H, 1, 3*dh)
        bq = bqkv[0, :D].reshape(H, 1, dh)
        bk = bqkv[0, D:2 * D].reshape(H, 1, dh)
        bv = bqkv[0, 2 * D:].reshape(H, 1, dh)
        return jnp.concatenate([bq, bk, bv], axis=-1)

    bf16 = jnp.bfloat16
    return {
        "whqkv": jnp.stack([per_head_qkv_w(p["wqkv"]) for p in layers]).astype(bf16),
        "bhqkv": jnp.stack([per_head_qkv_b(p["bqkv"]) for p in layers]),
        "wo":    jnp.stack([p["wo"].reshape(H, dh, D) for p in layers]).astype(bf16),
        "bo":    jnp.stack([p["bo"] for p in layers]),
        "g1":    jnp.stack([p["g1"] for p in layers]),
        "be1":   jnp.stack([p["be1"] for p in layers]),
        "wf1":   jnp.stack([p["wf1"] for p in layers]).astype(bf16),
        "bf1":   jnp.stack([p["bf1"] for p in layers]),
        "wf2":   jnp.stack([p["wf2"] for p in layers]).astype(bf16),
        "bf2":   jnp.stack([p["bf2"] for p in layers]),
        "g2":    jnp.stack([p["g2"] for p in layers]),
        "be2":   jnp.stack([p["be2"] for p in layers]),
    }


# ----------------------------------------------------------------------------
# Full forward pass.
# ----------------------------------------------------------------------------
def transformer_forward(token_ids, mask, emb, stacked, fc_w, fc_b,
                        nhead, d_model, ffn_chunk=512):
    # Embedding gather + sqrt(d_model) scale (data-dependent gather in plain JAX).
    x = emb[token_ids].astype(jnp.float32) * math.sqrt(d_model)        # (B, S, D)
    # key_padding_mask = (mask == 0) -> additive -inf-like bias on masked keys.
    key_bias = jnp.where(mask == 0, jnp.float32(-1e30), jnp.float32(0.0))
    pooled = transformer_encoder_fused(x, key_bias, stacked, nhead, ffn_chunk)
    # Tiny (B,D)x(D,2) classifier: 2-lane output -> plain-JAX epilogue.
    return pooled @ fc_w + fc_b


if __name__ == "__main__":
    vocab_size, d_model, nhead, num_layers = 50, 32, 4, 2
    B, S = 2, 8

    key = jax.random.PRNGKey(0)
    k_tok, k_param = jax.random.split(key)
    token_ids = jax.random.randint(k_tok, (B, S), 0, vocab_size, dtype=jnp.int32)
    # last two positions are padding (mask == 0)
    mask = jnp.ones((B, S), jnp.int32).at[:, S - 2:].set(0)

    emb, layers, fc_w, fc_b = init_params(k_param, vocab_size, d_model, num_layers)
    stacked = stack_and_prep_layers(layers, nhead)

    out = transformer_forward(token_ids, mask, emb, stacked, fc_w, fc_b,
                              nhead, d_model)
    out = jax.block_until_ready(out)
    assert out.shape == (B, 2) and out.dtype == jnp.float32
    assert bool(jnp.all(jnp.isfinite(out)))
    print("KERNEL_OK")
</pallas_src>

<mosaic_0001>
module attributes {stable_mosaic.version = 11 : i64} {
  func.func @fused_encoder_kernel(%arg0: i32, %arg1: memref<2x8x32xf32, #tpu.memory_space<vmem>>, %arg2: memref<2x8xf32, #tpu.memory_space<vmem>>, %arg3: memref<1x4x32x24xbf16, #tpu.memory_space<vmem>>, %arg4: memref<1x4x1x24xf32, #tpu.memory_space<vmem>>, %arg5: memref<1x4x8x32xbf16, #tpu.memory_space<vmem>>, %arg6: memref<1x1x32xf32, #tpu.memory_space<vmem>>, %arg7: memref<1x1x32xf32, #tpu.memory_space<vmem>>, %arg8: memref<1x1x32xf32, #tpu.memory_space<vmem>>, %arg9: memref<1x32x2048xbf16, #tpu.memory_space<vmem>>, %arg10: memref<1x1x2048xf32, #tpu.memory_space<vmem>>, %arg11: memref<1x2048x32xbf16, #tpu.memory_space<vmem>>, %arg12: memref<1x1x32xf32, #tpu.memory_space<vmem>>, %arg13: memref<1x1x32xf32, #tpu.memory_space<vmem>>, %arg14: memref<1x1x32xf32, #tpu.memory_space<vmem>>, %arg15: memref<2x32xf32, #tpu.memory_space<vmem>>, %arg16: memref<2x8x32xf32, #tpu.memory_space<vmem>>) attributes {dimension_semantics = [#tpu.dimension_semantics<arbitrary>], iteration_bounds = array<i64: 2>, scalar_prefetch = 0 : i64, scratch_operands = 1 : i64, tpu.core_type = #tpu.core_type<tc>, window_params = [{pipeline_mode = #tpu.pipeline_mode<synchronous>, transform_indices = @transform_0, window_bounds = array<i64: 2, 8, 32>}, {pipeline_mode = #tpu.pipeline_mode<synchronous>, transform_indices = @transform_1, window_bounds = array<i64: 2, 8>}, {transform_indices = @transform_2, window_bounds = array<i64: 1, 4, 32, 24>}, {transform_indices = @transform_3, window_bounds = array<i64: 1, 4, 1, 24>}, {transform_indices = @transform_4, window_bounds = array<i64: 1, 4, 8, 32>}, {transform_indices = @transform_5, window_bounds = array<i64: 1, 1, 32>}, {transform_indices = @transform_6, window_bounds = array<i64: 1, 1, 32>}, {transform_indices = @transform_7, window_bounds = array<i64: 1, 1, 32>}, {transform_indices = @transform_8, window_bounds = array<i64: 1, 32, 2048>}, {transform_indices = @transform_9, window_bounds = array<i64: 1, 1, 2048>}, {transform_indices = @transform_10, window_bounds = array<i64: 1, 2048, 32>}, {transform_indices = @transform_11, window_bounds = array<i64: 1, 1, 32>}, {transform_indices = @transform_12, window_bounds = array<i64: 1, 1, 32>}, {transform_indices = @transform_13, window_bounds = array<i64: 1, 1, 32>}, {pipeline_mode = #tpu.pipeline_mode<synchronous>, transform_indices = @transform_14, window_bounds = array<i64: 2, 32>}]} {
    %c0_i32 = arith.constant 0 : i32
    %0 = arith.cmpi eq, %arg0, %c0_i32 : i32
    %1 = arith.extui %0 : i1 to i32
    %c0_i32_0 = arith.constant 0 : i32
    %2 = arith.cmpi ne, %1, %c0_i32_0 : i32
    scf.if %2 {
      %c0_101 = arith.constant 0 : index
      %c0_102 = arith.constant 0 : index
      %c0_103 = arith.constant 0 : index
      %204 = vector.load %arg1[%c0_101, %c0_102, %c0_103] : memref<2x8x32xf32, #tpu.memory_space<vmem>>, vector<2x8x32xf32>
      %c0_104 = arith.constant 0 : index
      %c0_105 = arith.constant 0 : index
      %c0_106 = arith.constant 0 : index
      %205 = vector.load %arg16[%c0_104, %c0_105, %c0_106] : memref<2x8x32xf32, #tpu.memory_space<vmem>>, vector<2x8x32xf32>
      tpu.vector_store %arg16[%c0_104, %c0_105, %c0_106], %204 {strides = array<i32>} : memref<2x8x32xf32, #tpu.memory_space<vmem>>, vector<2x8x32xf32>,
    } else {
    }
    %c0 = arith.constant 0 : index
    %c0_1 = arith.constant 0 : index
    %c0_2 = arith.constant 0 : index
    %3 = vector.load %arg16[%c0, %c0_1, %c0_2] : memref<2x8x32xf32, #tpu.memory_space<vmem>>, vector<2x8x32xf32>
    %4 = vector.shape_cast %3 : vector<2x8x32xf32> to vector<2x1x8x32xf32>
    %5 = vector.shape_cast %4 : vector<2x1x8x32xf32> to vector<2x1x8x32xf32>
    %6 = vector.broadcast %5 : vector<2x1x8x32xf32> to vector<2x4x8x32xf32>
    %7 = vector.shape_cast %6 : vector<2x4x8x32xf32> to vector<8x8x32xf32>
    %8 = arith.truncf %7 : vector<8x8x32xf32> to vector<8x8x32xbf16>
    %c0_3 = arith.constant 0 : index
    %c0_4 = arith.constant 0 : index
    %c0_5 = arith.constant 0 : index
    %c0_6 = arith.constant 0 : index
    %9 = vector.load %arg3[%c0_3, %c0_4, %c0_5, %c0_6] : memref<1x4x32x24xbf16, #tpu.memory_space<vmem>>, vector<1x4x32x24xbf16>
    %10 = vector.shape_cast %9 : vector<1x4x32x24xbf16> to vector<4x32x24xbf16>
    %11 = vector.shape_cast %10 : vector<4x32x24xbf16> to vector<1x4x32x24xbf16>
    %12 = vector.shape_cast %11 : vector<1x4x32x24xbf16> to vector<1x4x32x24xbf16>
    %13 = vector.broadcast %12 : vector<1x4x32x24xbf16> to vector<2x4x32x24xbf16>
    %14 = vector.shape_cast %13 : vector<2x4x32x24xbf16> to vector<8x32x24xbf16>
    %c0_7 = arith.constant 0 : index
    %c0_8 = arith.constant 0 : index
    %c0_9 = arith.constant 0 : index
    %c0_10 = arith.constant 0 : index
    %15 = vector.load %arg4[%c0_7, %c0_8, %c0_9, %c0_10] : memref<1x4x1x24xf32, #tpu.memory_space<vmem>>, vector<1x4x1x24xf32>
    %16 = vector.shape_cast %15 : vector<1x4x1x24xf32> to vector<4x1x24xf32>
    %17 = vector.shape_cast %16 : vector<4x1x24xf32> to vector<1x4x1x24xf32>
    %18 = vector.shape_cast %17 : vector<1x4x1x24xf32> to vector<1x4x1x24xf32>
    %19 = vector.broadcast %18 : vector<1x4x1x24xf32> to vector<2x4x1x24xf32>
    %20 = vector.shape_cast %19 : vector<2x4x1x24xf32> to vector<8x1x24xf32>
    "tpu.trace_start"() <{level = 10 : i32, message = "gnd,gdf->gnf"}> : () -> ()
    %cst = arith.constant dense<0.000000e+00> : vector<8x8x24xf32>
    %21 = tpu.matmul %8, %14, %cst {dimension_numbers = #tpu.dot_dimension_numbers<[2], [1], [1], [2], [0, 0, 0, 1, 1, 2], [0], [0]>} : vector<8x8x32xbf16>, vector<8x32x24xbf16>, vector<8x8x24xf32> -> vector<8x8x24xf32>
    "tpu.trace_stop"() : () -> ()
    %22 = vector.broadcast %20 : vector<8x1x24xf32> to vector<8x8x24xf32>
    %23 = arith.addf %21, %22 : vector<8x8x24xf32>
    %24 = vector.extract_strided_slice %23 {offsets = [0, 0, 0], sizes = [8, 8, 8], strides = [1, 1, 1]} : vector<8x8x24xf32> to vector<8x8x8xf32>
    %25 = arith.truncf %24 : vector<8x8x8xf32> to vector<8x8x8xbf16>
    %26 = vector.extract_strided_slice %23 {offsets = [0, 0, 8], sizes = [8, 8, 8], strides = [1, 1, 1]} : vector<8x8x24xf32> to vector<8x8x8xf32>
    %27 = arith.truncf %26 : vector<8x8x8xf32> to vector<8x8x8xbf16>
    %28 = vector.extract_strided_slice %23 {offsets = [0, 0, 16], sizes = [8, 8, 8], strides = [1, 1, 1]} : vector<8x8x24xf32> to vector<8x8x8xf32>
    %29 = arith.truncf %28 : vector<8x8x8xf32> to vector<8x8x8xbf16>
    %c0_11 = arith.constant 0 : index
    %c0_12 = arith.constant 0 : index
    %30 = vector.load %arg2[%c0_11, %c0_12] : memref<2x8xf32, #tpu.memory_space<vmem>>, vector<2x8xf32>
    %31 = vector.shape_cast %30 : vector<2x8xf32> to vector<2x1x1x8xf32>
    %32 = vector.shape_cast %31 : vector<2x1x1x8xf32> to vector<2x1x1x8xf32>
    %33 = vector.broadcast %32 : vector<2x1x1x8xf32> to vector<2x4x1x8xf32>
    %34 = vector.shape_cast %33 : vector<2x4x1x8xf32> to vector<8x1x8xf32>
    "tpu.trace_start"() <{level = 10 : i32, message = "gqd,gkd->gqk"}> : () -> ()
    %cst_13 = arith.constant dense<0.000000e+00> : vector<8x8x8xf32>
    %35 = tpu.matmul %25, %27, %cst_13 {dimension_numbers = #tpu.dot_dimension_numbers<[2], [2], [1], [1], [0, 0, 0, 1, 1, 1], [0], [0]>} : vector<8x8x8xbf16>, vector<8x8x8xbf16>, vector<8x8x8xf32> -> vector<8x8x8xf32>
    "tpu.trace_stop"() : () -> ()
    %cst_14 = arith.constant 0.353553385 : f32
    %36 = vector.broadcast %cst_14 : f32 to vector<8x8x8xf32>
    %37 = arith.mulf %35, %36 : vector<8x8x8xf32>
    %38 = vector.broadcast %34 : vector<8x1x8xf32> to vector<8x8x8xf32>
    %39 = arith.addf %37, %38 : vector<8x8x8xf32>
    %cst_15 = arith.constant dense<0xFF800000> : vector<8x8xf32>
    %40 = vector.multi_reduction <maximumf>, %39, %cst_15 [2] : vector<8x8x8xf32> to vector<8x8xf32>
    %41 = vector.shape_cast %40 : vector<8x8xf32> to vector<8x8x1xf32>
    %42 = vector.broadcast %41 : vector<8x8x1xf32> to vector<8x8x8xf32>
    %43 = arith.subf %39, %42 : vector<8x8x8xf32>
    %44 = math.exp %43 : vector<8x8x8xf32>
    %cst_16 = arith.constant dense<0.000000e+00> : vector<8x8xf32>
    %45 = vector.multi_reduction <add>, %44, %cst_16 [2] : vector<8x8x8xf32> to vector<8x8xf32>
    %46 = vector.shape_cast %45 : vector<8x8xf32> to vector<8x8x1xf32>
    %47 = tpu.reciprocal %46 {approx = true} : vector<8x8x1xf32> -> vector<8x8x1xf32>
    %48 = vector.broadcast %47 : vector<8x8x1xf32> to vector<8x8x8xf32>
    %49 = arith.mulf %44, %48 : vector<8x8x8xf32>
    %50 = arith.truncf %49 : vector<8x8x8xf32> to vector<8x8x8xbf16>
    "tpu.trace_start"() <{level = 10 : i32, message = "gqk,gkd->gqd"}> : () -> ()
    %cst_17 = arith.constant dense<0.000000e+00> : vector<8x8x8xf32>
    %51 = tpu.matmul %50, %29, %cst_17 {dimension_numbers = #tpu.dot_dimension_numbers<[2], [1], [1], [2], [0, 0, 0, 1, 1, 2], [0], [0]>} : vector<8x8x8xbf16>, vector<8x8x8xbf16>, vector<8x8x8xf32> -> vector<8x8x8xf32>
    "tpu.trace_stop"() : () -> ()
    %c0_18 = arith.constant 0 : index
    %c0_19 = arith.constant 0 : index
    %c0_20 = arith.constant 0 : index
    %c0_21 = arith.constant 0 : index
    %52 = vector.load %arg5[%c0_18, %c0_19, %c0_20, %c0_21] : memref<1x4x8x32xbf16, #tpu.memory_space<vmem>>, vector<1x4x8x32xbf16>
    %53 = vector.shape_cast %52 : vector<1x4x8x32xbf16> to vector<4x8x32xbf16>
    %54 = vector.shape_cast %53 : vector<4x8x32xbf16> to vector<1x4x8x32xbf16>
    %55 = vector.shape_cast %54 : vector<1x4x8x32xbf16> to vector<1x4x8x32xbf16>
    %56 = vector.broadcast %55 : vector<1x4x8x32xbf16> to vector<2x4x8x32xbf16>
    %57 = vector.shape_cast %56 : vector<2x4x8x32xbf16> to vector<8x8x32xbf16>
    %58 = arith.truncf %51 : vector<8x8x8xf32> to vector<8x8x8xbf16>
    "tpu.trace_start"() <{level = 10 : i32, message = "gqd,gdo->gqo"}> : () -> ()
    %cst_22 = arith.constant dense<0.000000e+00> : vector<8x8x32xf32>
    %59 = tpu.matmul %58, %57, %cst_22 {dimension_numbers = #tpu.dot_dimension_numbers<[2], [1], [1], [2], [0, 0, 0, 1, 1, 2], [0], [0]>} : vector<8x8x8xbf16>, vector<8x8x32xbf16>, vector<8x8x32xf32> -> vector<8x8x32xf32>
    "tpu.trace_stop"() : () -> ()
    %60 = vector.shape_cast %59 : vector<8x8x32xf32> to vector<2x4x8x32xf32>
    %61 = vector.extract_strided_slice %60 {offsets = [0, 0, 0, 0], sizes = [2, 1, 8, 32], strides = [1, 1, 1, 1]} : vector<2x4x8x32xf32> to vector<2x1x8x32xf32>
    %62 = vector.shape_cast %61 : vector<2x1x8x32xf32> to vector<2x8x32xf32>
    %63 = vector.extract_strided_slice %60 {offsets = [0, 1, 0, 0], sizes = [2, 1, 8, 32], strides = [1, 1, 1, 1]} : vector<2x4x8x32xf32> to vector<2x1x8x32xf32>
    %64 = vector.shape_cast %63 : vector<2x1x8x32xf32> to vector<2x8x32xf32>
    %65 = arith.addf %62, %64 : vector<2x8x32xf32>
    %66 = vector.extract_strided_slice %60 {offsets = [0, 2, 0, 0], sizes = [2, 1, 8, 32], strides = [1, 1, 1, 1]} : vector<2x4x8x32xf32> to vector<2x1x8x32xf32>
    %67 = vector.shape_cast %66 : vector<2x1x8x32xf32> to vector<2x8x32xf32>
    %68 = arith.addf %65, %67 : vector<2x8x32xf32>
    %69 = vector.extract_strided_slice %60 {offsets = [0, 3, 0, 0], sizes = [2, 1, 8, 32], strides = [1, 1, 1, 1]} : vector<2x4x8x32xf32> to vector<2x1x8x32xf32>
    %70 = vector.shape_cast %69 : vector<2x1x8x32xf32> to vector<2x8x32xf32>
    %71 = arith.addf %68, %70 : vector<2x8x32xf32>
    %c0_23 = arith.constant 0 : index
    %c0_24 = arith.constant 0 : index
    %c0_25 = arith.constant 0 : index
    %72 = vector.load %arg6[%c0_23, %c0_24, %c0_25] : memref<1x1x32xf32, #tpu.memory_space<vmem>>, vector<1x1x32xf32>
    %73 = vector.shape_cast %72 : vector<1x1x32xf32> to vector<1x32xf32>
    %74 = vector.shape_cast %73 : vector<1x32xf32> to vector<1x1x32xf32>
    %75 = vector.broadcast %74 : vector<1x1x32xf32> to vector<2x8x32xf32>
    %76 = arith.addf %71, %75 : vector<2x8x32xf32>
    %77 = arith.addf %3, %76 : vector<2x8x32xf32>
    %cst_26 = arith.constant dense<0.000000e+00> : vector<2x8xf32>
    %78 = vector.multi_reduction <add>, %77, %cst_26 [2] : vector<2x8x32xf32> to vector<2x8xf32>
    %79 = vector.shape_cast %78 : vector<2x8xf32> to vector<2x8x1xf32>
    %cst_27 = arith.constant 3.200000e+01 : f32
    %80 = vector.broadcast %cst_27 : f32 to vector<2x8x1xf32>
    %81 = arith.divf %79, %80 : vector<2x8x1xf32>
    %82 = vector.broadcast %81 : vector<2x8x1xf32> to vector<2x8x32xf32>
    %83 = arith.subf %77, %82 : vector<2x8x32xf32>
    %84 = arith.mulf %83, %83 : vector<2x8x32xf32>
    %cst_28 = arith.constant dense<0.000000e+00> : vector<2x8xf32>
    %85 = vector.multi_reduction <add>, %84, %cst_28 [2] : vector<2x8x32xf32> to vector<2x8xf32>
    %86 = vector.shape_cast %85 : vector<2x8xf32> to vector<2x8x1xf32>
    %cst_29 = arith.constant 3.200000e+01 : f32
    %87 = vector.broadcast %cst_29 : f32 to vector<2x8x1xf32>
    %88 = arith.divf %86, %87 : vector<2x8x1xf32>
    %89 = vector.broadcast %81 : vector<2x8x1xf32> to vector<2x8x32xf32>
    %90 = arith.subf %77, %89 : vector<2x8x32xf32>
    %cst_30 = arith.constant 9.99999974E-6 : f32
    %91 = vector.broadcast %cst_30 : f32 to vector<2x8x1xf32>
    %92 = arith.addf %88, %91 : vector<2x8x1xf32>
    %93 = math.rsqrt %92 : vector<2x8x1xf32>
    %94 = vector.broadcast %93 : vector<2x8x1xf32> to vector<2x8x32xf32>
    %95 = arith.mulf %90, %94 : vector<2x8x32xf32>
    %c0_31 = arith.constant 0 : index
    %c0_32 = arith.constant 0 : index
    %c0_33 = arith.constant 0 : index
    %96 = vector.load %arg7[%c0_31, %c0_32, %c0_33] : memref<1x1x32xf32, #tpu.memory_space<vmem>>, vector<1x1x32xf32>
    %97 = vector.shape_cast %96 : vector<1x1x32xf32> to vector<1x32xf32>
    %98 = vector.shape_cast %97 : vector<1x32xf32> to vector<1x1x32xf32>
    %99 = vector.broadcast %98 : vector<1x1x32xf32> to vector<2x8x32xf32>
    %100 = arith.mulf %95, %99 : vector<2x8x32xf32>
    %c0_34 = arith.constant 0 : index
    %c0_35 = arith.constant 0 : index
    %c0_36 = arith.constant 0 : index
    %101 = vector.load %arg8[%c0_34, %c0_35, %c0_36] : memref<1x1x32xf32, #tpu.memory_space<vmem>>, vector<1x1x32xf32>
    %102 = vector.shape_cast %101 : vector<1x1x32xf32> to vector<1x32xf32>
    %103 = vector.shape_cast %102 : vector<1x32xf32> to vector<1x1x32xf32>
    %104 = vector.broadcast %103 : vector<1x1x32xf32> to vector<2x8x32xf32>
    %105 = arith.addf %100, %104 : vector<2x8x32xf32>
    %106 = vector.shape_cast %105 : vector<2x8x32xf32> to vector<16x32xf32>
    %107 = arith.truncf %106 : vector<16x32xf32> to vector<16x32xbf16>
    %cst_37 = arith.constant 0.000000e+00 : f32
    %108 = vector.broadcast %cst_37 : f32 to vector<16x32xf32>
    %c0_38 = arith.constant 0 : index
    %c0_39 = arith.constant 0 : index
    %c0_40 = arith.constant 0 : index
    %109 = vector.load %arg9[%c0_38, %c0_39, %c0_40] : memref<1x32x2048xbf16, #tpu.memory_space<vmem>>, vector<1x32x512xbf16>
    %110 = vector.shape_cast %109 : vector<1x32x512xbf16> to vector<32x512xbf16>
    %cst_41 = arith.constant dense<0.000000e+00> : vector<16x512xf32>
    %111 = tpu.matmul %107, %110, %cst_41 {dimension_numbers = #tpu.dot_dimension_numbers<[1], [0], [0], [1], [0, 0, 1, 1], [], []>} : vector<16x32xbf16>, vector<32x512xbf16>, vector<16x512xf32> -> vector<16x512xf32>
    %c0_42 = arith.constant 0 : index
    %c0_43 = arith.constant 0 : index
    %c0_44 = arith.constant 0 : index
    %112 = vector.load %arg10[%c0_42, %c0_43, %c0_44] : memref<1x1x2048xf32, #tpu.memory_space<vmem>>, vector<1x1x512xf32>
    %113 = vector.shape_cast %112 : vector<1x1x512xf32> to vector<1x512xf32>
    %114 = vector.broadcast %113 : vector<1x512xf32> to vector<16x512xf32>
    %115 = arith.addf %111, %114 : vector<16x512xf32>
    %cst_45 = arith.constant 0.000000e+00 : f32
    %116 = vector.broadcast %cst_45 : f32 to vector<16x512xf32>
    %117 = arith.maximumf %115, %116 : vector<16x512xf32>
    %118 = arith.truncf %117 : vector<16x512xf32> to vector<16x512xbf16>
    %c0_46 = arith.constant 0 : index
    %c0_47 = arith.constant 0 : index
    %c0_48 = arith.constant 0 : index
    %119 = vector.load %arg11[%c0_46, %c0_47, %c0_48] : memref<1x2048x32xbf16, #tpu.memory_space<vmem>>, vector<1x512x32xbf16>
    %120 = vector.shape_cast %119 : vector<1x512x32xbf16> to vector<512x32xbf16>
    %cst_49 = arith.constant dense<0.000000e+00> : vector<16x32xf32>
    %121 = tpu.matmul %118, %120, %cst_49 {dimension_numbers = #tpu.dot_dimension_numbers<[1], [0], [0], [1], [0, 0, 1, 1], [], []>} : vector<16x512xbf16>, vector<512x32xbf16>, vector<16x32xf32> -> vector<16x32xf32>
    %122 = arith.addf %108, %121 : vector<16x32xf32>
    %c0_50 = arith.constant 0 : index
    %c0_51 = arith.constant 0 : index
    %c512 = arith.constant 512 : index
    %123 = vector.load %arg9[%c0_50, %c0_51, %c512] : memref<1x32x2048xbf16, #tpu.memory_space<vmem>>, vector<1x32x512xbf16>
    %124 = vector.shape_cast %123 : vector<1x32x512xbf16> to vector<32x512xbf16>
    %cst_52 = arith.constant dense<0.000000e+00> : vector<16x512xf32>
    %125 = tpu.matmul %107, %124, %cst_52 {dimension_numbers = #tpu.dot_dimension_numbers<[1], [0], [0], [1], [0, 0, 1, 1], [], []>} : vector<16x32xbf16>, vector<32x512xbf16>, vector<16x512xf32> -> vector<16x512xf32>
    %c0_53 = arith.constant 0 : index
    %c0_54 = arith.constant 0 : index
    %c512_55 = arith.constant 512 : index
    %126 = vector.load %arg10[%c0_53, %c0_54, %c512_55] : memref<1x1x2048xf32, #tpu.memory_space<vmem>>, vector<1x1x512xf32>
    %127 = vector.shape_cast %126 : vector<1x1x512xf32> to vector<1x512xf32>
    %128 = vector.broadcast %127 : vector<1x512xf32> to vector<16x512xf32>
    %129 = arith.addf %125, %128 : vector<16x512xf32>
    %cst_56 = arith.constant 0.000000e+00 : f32
    %130 = vector.broadcast %cst_56 : f32 to vector<16x512xf32>
    %131 = arith.maximumf %129, %130 : vector<16x512xf32>
    %132 = arith.truncf %131 : vector<16x512xf32> to vector<16x512xbf16>
    %c0_57 = arith.constant 0 : index
    %c512_58 = arith.constant 512 : index
    %c0_59 = arith.constant 0 : index
    %133 = vector.load %arg11[%c0_57, %c512_58, %c0_59] : memref<1x2048x32xbf16, #tpu.memory_space<vmem>>, vector<1x512x32xbf16>
    %134 = vector.shape_cast %133 : vector<1x512x32xbf16> to vector<512x32xbf16>
    %cst_60 = arith.constant dense<0.000000e+00> : vector<16x32xf32>
    %135 = tpu.matmul %132, %134, %cst_60 {dimension_numbers = #tpu.dot_dimension_numbers<[1], [0], [0], [1], [0, 0, 1, 1], [], []>} : vector<16x512xbf16>, vector<512x32xbf16>, vector<16x32xf32> -> vector<16x32xf32>
    %136 = arith.addf %122, %135 : vector<16x32xf32>
    %c0_61 = arith.constant 0 : index
    %c0_62 = arith.constant 0 : index
    %c1024 = arith.constant 1024 : index
    %137 = vector.load %arg9[%c0_61, %c0_62, %c1024] : memref<1x32x2048xbf16, #tpu.memory_space<vmem>>, vector<1x32x512xbf16>
    %138 = vector.shape_cast %137 : vector<1x32x512xbf16> to vector<32x512xbf16>
    %cst_63 = arith.constant dense<0.000000e+00> : vector<16x512xf32>
    %139 = tpu.matmul %107, %138, %cst_63 {dimension_numbers = #tpu.dot_dimension_numbers<[1], [0], [0], [1], [0, 0, 1, 1], [], []>} : vector<16x32xbf16>, vector<32x512xbf16>, vector<16x512xf32> -> vector<16x512xf32>
    %c0_64 = arith.constant 0 : index
    %c0_65 = arith.constant 0 : index
    %c1024_66 = arith.constant 1024 : index
    %140 = vector.load %arg10[%c0_64, %c0_65, %c1024_66] : memref<1x1x2048xf32, #tpu.memory_space<vmem>>, vector<1x1x512xf32>
    %141 = vector.shape_cast %140 : vector<1x1x512xf32> to vector<1x512xf32>
    %142 = vector.broadcast %141 : vector<1x512xf32> to vector<16x512xf32>
    %143 = arith.addf %139, %142 : vector<16x512xf32>
    %cst_67 = arith.constant 0.000000e+00 : f32
    %144 = vector.broadcast %cst_67 : f32 to vector<16x512xf32>
    %145 = arith.maximumf %143, %144 : vector<16x512xf32>
    %146 = arith.truncf %145 : vector<16x512xf32> to vector<16x512xbf16>
    %c0_68 = arith.constant 0 : index
    %c1024_69 = arith.constant 1024 : index
    %c0_70 = arith.constant 0 : index
    %147 = vector.load %arg11[%c0_68, %c1024_69, %c0_70] : memref<1x2048x32xbf16, #tpu.memory_space<vmem>>, vector<1x512x32xbf16>
    %148 = vector.shape_cast %147 : vector<1x512x32xbf16> to vector<512x32xbf16>
    %cst_71 = arith.constant dense<0.000000e+00> : vector<16x32xf32>
    %149 = tpu.matmul %146, %148, %cst_71 {dimension_numbers = #tpu.dot_dimension_numbers<[1], [0], [0], [1], [0, 0, 1, 1], [], []>} : vector<16x512xbf16>, vector<512x32xbf16>, vector<16x32xf32> -> vector<16x32xf32>
    %150 = arith.addf %136, %149 : vector<16x32xf32>
    %c0_72 = arith.constant 0 : index
    %c0_73 = arith.constant 0 : index
    %c1536 = arith.constant 1536 : index
    %151 = vector.load %arg9[%c0_72, %c0_73, %c1536] : memref<1x32x2048xbf16, #tpu.memory_space<vmem>>, vector<1x32x512xbf16>
    %152 = vector.shape_cast %151 : vector<1x32x512xbf16> to vector<32x512xbf16>
    %cst_74 = arith.constant dense<0.000000e+00> : vector<16x512xf32>
    %153 = tpu.matmul %107, %152, %cst_74 {dimension_numbers = #tpu.dot_dimension_numbers<[1], [0], [0], [1], [0, 0, 1, 1], [], []>} : vector<16x32xbf16>, vector<32x512xbf16>, vector<16x512xf32> -> vector<16x512xf32>
    %c0_75 = arith.constant 0 : index
    %c0_76 = arith.constant 0 : index
    %c1536_77 = arith.constant 1536 : index
    %154 = vector.load %arg10[%c0_75, %c0_76, %c1536_77] : memref<1x1x2048xf32, #tpu.memory_space<vmem>>, vector<1x1x512xf32>
    %155 = vector.shape_cast %154 : vector<1x1x512xf32> to vector<1x512xf32>
    %156 = vector.broadcast %155 : vector<1x512xf32> to vector<16x512xf32>
    %157 = arith.addf %153, %156 : vector<16x512xf32>
    %cst_78 = arith.constant 0.000000e+00 : f32
    %158 = vector.broadcast %cst_78 : f32 to vector<16x512xf32>
    %159 = arith.maximumf %157, %158 : vector<16x512xf32>
    %160 = arith.truncf %159 : vector<16x512xf32> to vector<16x512xbf16>
    %c0_79 = arith.constant 0 : index
    %c1536_80 = arith.constant 1536 : index
    %c0_81 = arith.constant 0 : index
    %161 = vector.load %arg11[%c0_79, %c1536_80, %c0_81] : memref<1x2048x32xbf16, #tpu.memory_space<vmem>>, vector<1x512x32xbf16>
    %162 = vector.shape_cast %161 : vector<1x512x32xbf16> to vector<512x32xbf16>
    %cst_82 = arith.constant dense<0.000000e+00> : vector<16x32xf32>
    %163 = tpu.matmul %160, %162, %cst_82 {dimension_numbers = #tpu.dot_dimension_numbers<[1], [0], [0], [1], [0, 0, 1, 1], [], []>} : vector<16x512xbf16>, vector<512x32xbf16>, vector<16x32xf32> -> vector<16x32xf32>
    %164 = arith.addf %150, %163 : vector<16x32xf32>
    %165 = vector.shape_cast %164 : vector<16x32xf32> to vector<2x8x32xf32>
    %c0_83 = arith.constant 0 : index
    %c0_84 = arith.constant 0 : index
    %c0_85 = arith.constant 0 : index
    %166 = vector.load %arg12[%c0_83, %c0_84, %c0_85] : memref<1x1x32xf32, #tpu.memory_space<vmem>>, vector<1x1x32xf32>
    %167 = vector.shape_cast %166 : vector<1x1x32xf32> to vector<1x32xf32>
    %168 = vector.shape_cast %167 : vector<1x32xf32> to vector<1x1x32xf32>
    %169 = vector.broadcast %168 : vector<1x1x32xf32> to vector<2x8x32xf32>
    %170 = arith.addf %165, %169 : vector<2x8x32xf32>
    %171 = arith.addf %105, %170 : vector<2x8x32xf32>
    %cst_86 = arith.constant dense<0.000000e+00> : vector<2x8xf32>
    %172 = vector.multi_reduction <add>, %171, %cst_86 [2] : vector<2x8x32xf32> to vector<2x8xf32>
    %173 = vector.shape_cast %172 : vector<2x8xf32> to vector<2x8x1xf32>
    %cst_87 = arith.constant 3.200000e+01 : f32
    %174 = vector.broadcast %cst_87 : f32 to vector<2x8x1xf32>
    %175 = arith.divf %173, %174 : vector<2x8x1xf32>
    %176 = vector.broadcast %175 : vector<2x8x1xf32> to vector<2x8x32xf32>
    %177 = arith.subf %171, %176 : vector<2x8x32xf32>
    %178 = arith.mulf %177, %177 : vector<2x8x32xf32>
    %cst_88 = arith.constant dense<0.000000e+00> : vector<2x8xf32>
    %179 = vector.multi_reduction <add>, %178, %cst_88 [2] : vector<2x8x32xf32> to vector<2x8xf32>
    %180 = vector.shape_cast %179 : vector<2x8xf32> to vector<2x8x1xf32>
    %cst_89 = arith.constant 3.200000e+01 : f32
    %181 = vector.broadcast %cst_89 : f32 to vector<2x8x1xf32>
    %182 = arith.divf %180, %181 : vector<2x8x1xf32>
    %183 = vector.broadcast %175 : vector<2x8x1xf32> to vector<2x8x32xf32>
    %184 = arith.subf %171, %183 : vector<2x8x32xf32>
    %cst_90 = arith.constant 9.99999974E-6 : f32
    %185 = vector.broadcast %cst_90 : f32 to vector<2x8x1xf32>
    %186 = arith.addf %182, %185 : vector<2x8x1xf32>
    %187 = math.rsqrt %186 : vector<2x8x1xf32>
    %188 = vector.broadcast %187 : vector<2x8x1xf32> to vector<2x8x32xf32>
    %189 = arith.mulf %184, %188 : vector<2x8x32xf32>
    %c0_91 = arith.constant 0 : index
    %c0_92 = arith.constant 0 : index
    %c0_93 = arith.constant 0 : index
    %190 = vector.load %arg13[%c0_91, %c0_92, %c0_93] : memref<1x1x32xf32, #tpu.memory_space<vmem>>, vector<1x1x32xf32>
    %191 = vector.shape_cast %190 : vector<1x1x32xf32> to vector<1x32xf32>
    %192 = vector.shape_cast %191 : vector<1x32xf32> to vector<1x1x32xf32>
    %193 = vector.broadcast %192 : vector<1x1x32xf32> to vector<2x8x32xf32>
    %194 = arith.mulf %189, %193 : vector<2x8x32xf32>
    %c0_94 = arith.constant 0 : index
    %c0_95 = arith.constant 0 : index
    %c0_96 = arith.constant 0 : index
    %195 = vector.load %arg14[%c0_94, %c0_95, %c0_96] : memref<1x1x32xf32, #tpu.memory_space<vmem>>, vector<1x1x32xf32>
    %196 = vector.shape_cast %195 : vector<1x1x32xf32> to vector<1x32xf32>
    %197 = vector.shape_cast %196 : vector<1x32xf32> to vector<1x1x32xf32>
    %198 = vector.broadcast %197 : vector<1x1x32xf32> to vector<2x8x32xf32>
    %199 = arith.addf %194, %198 : vector<2x8x32xf32>
    %c0_97 = arith.constant 0 : index
    %c0_98 = arith.constant 0 : index
    %c0_99 = arith.constant 0 : index
    %200 = vector.load %arg16[%c0_97, %c0_98, %c0_99] : memref<2x8x32xf32, #tpu.memory_space<vmem>>, vector<2x8x32xf32>
    tpu.vector_store %arg16[%c0_97, %c0_98, %c0_99], %199 {strides = array<i32>} : memref<2x8x32xf32, #tpu.memory_space<vmem>>, vector<2x8x32xf32>,
    %c1_i32 = arith.constant 1 : i32
    %201 = arith.cmpi eq, %arg0, %c1_i32 : i32
    %202 = arith.extui %201 : i1 to i32
    %c0_i32_100 = arith.constant 0 : i32
    %203 = arith.cmpi ne, %202, %c0_i32_100 : i32
    scf.if %203 {
      %cst_101 = arith.constant dense<0.000000e+00> : vector<2x32xf32>
      %204 = vector.multi_reduction <add>, %199, %cst_101 [1] : vector<2x8x32xf32> to vector<2x32xf32>
      %cst_102 = arith.constant 8.000000e+00 : f32
      %205 = vector.broadcast %cst_102 : f32 to vector<2x32xf32>
      %206 = arith.divf %204, %205 : vector<2x32xf32>
      %c0_103 = arith.constant 0 : index
      %c0_104 = arith.constant 0 : index
      %207 = vector.load %arg15[%c0_103, %c0_104] : memref<2x32xf32, #tpu.memory_space<vmem>>, vector<2x32xf32>
      tpu.vector_store %arg15[%c0_103, %c0_104], %206 {strides = array<i32>} : memref<2x32xf32, #tpu.memory_space<vmem>>, vector<2x32xf32>,
    } else {
    }
    return
  }
  func.func @transform_0(%arg0: i32) -> (i32, i32, i32) {
    %c0_i32 = arith.constant 0 : i32
    %c0_i32_0 = arith.constant 0 : i32
    %c0_i32_1 = arith.constant 0 : i32
    %c0_i32_2 = arith.constant 0 : i32
    return %c0_i32, %c0_i32_0, %c0_i32_1 : i32, i32, i32
  }
  func.func @transform_1(%arg0: i32) -> (i32, i32) {
    %c0_i32 = arith.constant 0 : i32
    %c0_i32_0 = arith.constant 0 : i32
    %c0_i32_1 = arith.constant 0 : i32
    return %c0_i32, %c0_i32_0 : i32, i32
  }
  func.func @transform_2(%arg0: i32) -> (i32, i32, i32, i32) {
    %c0_i32 = arith.constant 0 : i32
    %c0_i32_0 = arith.constant 0 : i32
    %c0_i32_1 = arith.constant 0 : i32
    %c0_i32_2 = arith.constant 0 : i32
    return %arg0, %c0_i32, %c0_i32_0, %c0_i32_1 : i32, i32, i32, i32
  }
  func.func @transform_3(%arg0: i32) -> (i32, i32, i32, i32) {
    %c0_i32 = arith.constant 0 : i32
    %c0_i32_0 = arith.constant 0 : i32
    %c0_i32_1 = arith.constant 0 : i32
    %c0_i32_2 = arith.constant 0 : i32
    return %arg0, %c0_i32, %c0_i32_0, %c0_i32_1 : i32, i32, i32, i32
  }
  func.func @transform_4(%arg0: i32) -> (i32, i32, i32, i32) {
    %c0_i32 = arith.constant 0 : i32
    %c0_i32_0 = arith.constant 0 : i32
    %c0_i32_1 = arith.constant 0 : i32
    %c0_i32_2 = arith.constant 0 : i32
    return %arg0, %c0_i32, %c0_i32_0, %c0_i32_1 : i32, i32, i32, i32
  }
  func.func @transform_5(%arg0: i32) -> (i32, i32, i32) {
    %c0_i32 = arith.constant 0 : i32
    %c0_i32_0 = arith.constant 0 : i32
    %c0_i32_1 = arith.constant 0 : i32
    return %arg0, %c0_i32, %c0_i32_0 : i32, i32, i32
  }
  func.func @transform_6(%arg0: i32) -> (i32, i32, i32) {
    %c0_i32 = arith.constant 0 : i32
    %c0_i32_0 = arith.constant 0 : i32
    %c0_i32_1 = arith.constant 0 : i32
    return %arg0, %c0_i32, %c0_i32_0 : i32, i32, i32
  }
  func.func @transform_7(%arg0: i32) -> (i32, i32, i32) {
    %c0_i32 = arith.constant 0 : i32
    %c0_i32_0 = arith.constant 0 : i32
    %c0_i32_1 = arith.constant 0 : i32
    return %arg0, %c0_i32, %c0_i32_0 : i32, i32, i32
  }
  func.func @transform_8(%arg0: i32) -> (i32, i32, i32) {
    %c0_i32 = arith.constant 0 : i32
    %c0_i32_0 = arith.constant 0 : i32
    %c0_i32_1 = arith.constant 0 : i32
    return %arg0, %c0_i32, %c0_i32_0 : i32, i32, i32
  }
  func.func @transform_9(%arg0: i32) -> (i32, i32, i32) {
    %c0_i32 = arith.constant 0 : i32
    %c0_i32_0 = arith.constant 0 : i32
    %c0_i32_1 = arith.constant 0 : i32
    return %arg0, %c0_i32, %c0_i32_0 : i32, i32, i32
  }
  func.func @transform_10(%arg0: i32) -> (i32, i32, i32) {
    %c0_i32 = arith.constant 0 : i32
    %c0_i32_0 = arith.constant 0 : i32
    %c0_i32_1 = arith.constant 0 : i32
    return %arg0, %c0_i32, %c0_i32_0 : i32, i32, i32
  }
  func.func @transform_11(%arg0: i32) -> (i32, i32, i32) {
    %c0_i32 = arith.constant 0 : i32
    %c0_i32_0 = arith.constant 0 : i32
    %c0_i32_1 = arith.constant 0 : i32
    return %arg0, %c0_i32, %c0_i32_0 : i32, i32, i32
  }
  func.func @transform_12(%arg0: i32) -> (i32, i32, i32) {
    %c0_i32 = arith.constant 0 : i32
    %c0_i32_0 = arith.constant 0 : i32
    %c0_i32_1 = arith.constant 0 : i32
    return %arg0, %c0_i32, %c0_i32_0 : i32, i32, i32
  }
  func.func @transform_13(%arg0: i32) -> (i32, i32, i32) {
    %c0_i32 = arith.constant 0 : i32
    %c0_i32_0 = arith.constant 0 : i32
    %c0_i32_1 = arith.constant 0 : i32
    return %arg0, %c0_i32, %c0_i32_0 : i32, i32, i32
  }
  func.func @transform_14(%arg0: i32) -> (i32, i32) {
    %c0_i32 = arith.constant 0 : i32
    %c0_i32_0 = arith.constant 0 : i32
    %c0_i32_1 = arith.constant 0 : i32
    return %c0_i32, %c0_i32_0 : i32, i32
  }
}

</mosaic_0001>

<llo_original>
// kernel: tpu_custom_call.1
$region0: #{tpu_custom_call.1}
  #allocation0 [shape = 'u32[]', space=smem, size = 0x4, offset = 0x4, fixed_abs, tag = 'smem constant byte address 0x4 - core index']
  #allocation1 [shape = 'u32[144,128]{1,0:T(1,128)}', space=vmem, size = 0x12000, scoped, tag = 'internal scratch']
  #allocation2 [shape = 'f32[2,8,32]{2,1,0:T(8,128)}', space=vmem, size = 0x2000, scoped, tag = 'scratch operand']
  %s0 = inlined_call_operand.vmem [shape: f32[2,8,32], index: 0, kind: input, shape index: {}]
  %s1 = inlined_call_operand.vmem [shape: f32[2,8], index: 1, kind: input, shape index: {}]
  %s2 = inlined_call_operand.vmem [shape: bf16[2,4,32,24], index: 2, kind: input, shape index: {}]
  %s3 = inlined_call_operand.vmem [shape: f32[2,4,1,24], index: 3, kind: input, shape index: {}]
  %s4 = inlined_call_operand.vmem [shape: bf16[2,4,8,32], index: 4, kind: input, shape index: {}]
  %s5 = inlined_call_operand.vmem [shape: f32[2,1,32], index: 5, kind: input, shape index: {}]
  %s6 = inlined_call_operand.vmem [shape: f32[2,1,32], index: 6, kind: input, shape index: {}]
  %s7 = inlined_call_operand.vmem [shape: f32[2,1,32], index: 7, kind: input, shape index: {}]
  %s8 = inlined_call_operand.vmem [shape: bf16[2,32,2048], index: 8, kind: input, shape index: {}]
  %s9 = inlined_call_operand.vmem [shape: f32[2,1,2048], index: 9, kind: input, shape index: {}]
  %s10 = inlined_call_operand.vmem [shape: bf16[2,2048,32], index: 10, kind: input, shape index: {}]
  %s11 = inlined_call_operand.vmem [shape: f32[2,1,32], index: 11, kind: input, shape index: {}]
  %s12 = inlined_call_operand.vmem [shape: f32[2,1,32], index: 12, kind: input, shape index: {}]
  %s13 = inlined_call_operand.vmem [shape: f32[2,1,32], index: 13, kind: input, shape index: {}]
  %s14 = inlined_call_operand.hbm [shape: f32[2,32], index: 14, kind: output, shape index: {}]
  %s15 = sld [smem:[#allocation0]]
  $region97: #{tpu_custom_call.1} parent=0
    _
  %s17 = ssub.s32 1, %s15
  %s18 = scalar_select 0, %s17, %s15
  $region1: #{tpu_custom_call.1} parent=0
    #allocation3 [shape = 'u8[1024]{0}', space=vmem, size = 0x400, scoped, tag = 'output window, operand 0, single buffered']
    #allocation4 [shape = 's32[2]{0}', space=sflag, size = 0x8, scoped, tag = 'scoped memory for tpu_custom_call.1']
    %19 = vsyncpa [#allocation4], 0
    loop: start=0, step=1, limit=4
    $region2: #{tpu_custom_call.1} parent=1 // loop_pre_header
      _
    $region3: #{tpu_custom_call.1} parent=1 // loop_header
      %s21 = sphi 0, %s25
      %p22 = scmp.ge.s32.totalorder %s21, 4
      %s29 = sphi 0, %s29
      %s31 = sphi 0, %s29
      %s32 = sphi 0, %s31
      %s46 = sphi 0, %s32
      %s50 = sphi 0, %s50
      %s52 = sphi 0, %s50
      %s53 = sphi 0, %s52
      %s67 = sphi 0, %s53
      %s73 = sphi 0, %s75
      %s76 = sphi 0, %s73
      %s77 = sphi 0, %s76
      %s93 = sphi 0, %s77
      %s99 = sphi 0, %s101
      %s102 = sphi 0, %s99
      %s103 = sphi 0, %s102
      %s119 = sphi 0, %s103
      %s125 = sphi 0, %s127
      %s128 = sphi 0, %s125
      %s129 = sphi 0, %s128
      %s145 = sphi 0, %s129
      %s151 = sphi 0, %s153
      %s154 = sphi 0, %s151
      %s155 = sphi 0, %s154
      %s171 = sphi 0, %s155
      %s177 = sphi 0, %s179
      %s180 = sphi 0, %s177
      %s181 = sphi 0, %s180
      %s197 = sphi 0, %s181
      %s203 = sphi 0, %s205
      %s206 = sphi 0, %s203
      %s207 = sphi 0, %s206
      %s223 = sphi 0, %s207
      %s229 = sphi 0, %s231
      %s232 = sphi 0, %s229
      %s233 = sphi 0, %s232
      %s249 = sphi 0, %s233
      %s255 = sphi 0, %s257
      %s258 = sphi 0, %s255
      %s259 = sphi 0, %s258
      %s275 = sphi 0, %s259
      %s281 = sphi 0, %s283
      %s284 = sphi 0, %s281
      %s285 = sphi 0, %s284
      %s301 = sphi 0, %s285
      %s307 = sphi 0, %s309
      %s310 = sphi 0, %s307
      %s311 = sphi 0, %s310
      %s327 = sphi 0, %s311
      %s333 = sphi 0, %s335
      %s336 = sphi 0, %s333
      %s337 = sphi 0, %s336
      %s353 = sphi 0, %s337
      %s359 = sphi 0, %s361
      %s362 = sphi 0, %s359
      %s363 = sphi 0, %s362
      %s379 = sphi 0, %s363
      %s383 = sphi 0, %s383
      %s385 = sphi 0, %s383
      %s386 = sphi 0, %s385
      %s400 = sphi 0, %s386
    $region4: #{tpu_custom_call.1} parent=1 // loop_header_branch
      %24 = sbr.rel (%p22) target = $region8
    $region5: #{tpu_custom_call.1} parent=1 // loop_body
      %s26 = ssub.s32 %s21, 1
      %s27 = ssub.s32 %s21, 2
      %s28 = sadd.s32 %s21, 1
      %s30 = sadd.s32 %s29, 1
      %p33 = scmp.eq.s32.totalorder %s21, 1
      %p34 = scmp.ne.s32.totalorder %s29, %s31
      %p35 = scmp.eq.s32.totalorder %s21, 0
      %p36 = por %p34, %p35
      %p37 = scmp.ne.s32.totalorder %s29, %s31
      %p38 = scmp.eq.s32.totalorder %s26, 1
      %p39 = por %p37, %p38
      %p40 = scmp.ne.s32.totalorder %s31, %s32
      %p41 = scmp.eq.s32.totalorder %s26, 0
      %p42 = por %p40, %p41
      %p43 = scmp.ne.s32.totalorder %s31, %s32
      %p44 = scmp.eq.s32.totalorder %s27, 1
      %p45 = por %p43, %p44
      %p47 = scmp.ne.s32.totalorder %s32, %s46
      %p48 = scmp.eq.s32.totalorder %s27, 0
      %p49 = por %p47, %p48
      %s51 = sadd.s32 %s50, 1
      %p54 = scmp.eq.s32.totalorder %s21, 1
      %p55 = scmp.ne.s32.totalorder %s50, %s52
      %p56 = scmp.eq.s32.totalorder %s21, 0
      %p57 = por %p55, %p56
      %p58 = scmp.ne.s32.totalorder %s50, %s52
      %p59 = scmp.eq.s32.totalorder %s26, 1
      %p60 = por %p58, %p59
      %p61 = scmp.ne.s32.totalorder %s52, %s53
      %p62 = scmp.eq.s32.totalorder %s26, 0
      %p63 = por %p61, %p62
      %p64 = scmp.ne.s32.totalorder %s52, %s53
      %p65 = scmp.eq.s32.totalorder %s27, 1
      %p66 = por %p64, %p65
      %p68 = scmp.ne.s32.totalorder %s53, %s67
      %p69 = scmp.eq.s32.totalorder %s27, 0
      %p70 = por %p68, %p69
      %s71 = ssub.s32 %s21, %s28
      %p72 = scmp.eq.s32.totalorder %s71, 0
      %s74 = sadd.s32 %s73, 1
      %s75 = scalar_select %p72, %s73, %s74
      %p78 = pneg %p72
      %p79 = scmp.eq.s32.totalorder %s21, 1
      %p80 = por %p78, %p79
      %p81 = scmp.ne.s32.totalorder %s73, %s76
      %p82 = scmp.eq.s32.totalorder %s21, 0
      %p83 = por %p81, %p82
      %p84 = scmp.ne.s32.totalorder %s73, %s76
      %p85 = scmp.eq.s32.totalorder %s26, 1
      %p86 = por %p84, %p85
      %p87 = scmp.ne.s32.totalorder %s76, %s77
      %p88 = scmp.eq.s32.totalorder %s26, 0
      %p89 = por %p87, %p88
      %p90 = scmp.ne.s32.totalorder %s76, %s77
      %p91 = scmp.eq.s32.totalorder %s27, 1
      %p92 = por %p90, %p91
      %p94 = scmp.ne.s32.totalorder %s77, %s93
      %p95 = scmp.eq.s32.totalorder %s27, 0
      %p96 = por %p94, %p95
      %s97 = ssub.s32 %s21, %s28
      %p98 = scmp.eq.s32.totalorder %s97, 0
      %s100 = sadd.s32 %s99, 1
      %s101 = scalar_select %p98, %s99, %s100
      %p104 = pneg %p98
      %p105 = scmp.eq.s32.totalorder %s21, 1
      %p106 = por %p104, %p105
      %p107 = scmp.ne.s32.totalorder %s99, %s102
      %p108 = scmp.eq.s32.totalorder %s21, 0
      %p109 = por %p107, %p108
      %p110 = scmp.ne.s32.totalorder %s99, %s102
      %p111 = scmp.eq.s32.totalorder %s26, 1
      %p112 = por %p110, %p111
      %p113 = scmp.ne.s32.totalorder %s102, %s103
      %p114 = scmp.eq.s32.totalorder %s26, 0
      %p115 = por %p113, %p114
      %p116 = scmp.ne.s32.totalorder %s102, %s103
      %p117 = scmp.eq.s32.totalorder %s27, 1
      %p118 = por %p116, %p117
      %p120 = scmp.ne.s32.totalorder %s103, %s119
      %p121 = scmp.eq.s32.totalorder %s27, 0
      %p122 = por %p120, %p121
      %s123 = ssub.s32 %s21, %s28
      %p124 = scmp.eq.s32.totalorder %s123, 0
      %s126 = sadd.s32 %s125, 1
      %s127 = scalar_select %p124, %s125, %s126
      %p130 = pneg %p124
      %p131 = scmp.eq.s32.totalorder %s21, 1
      %p132 = por %p130, %p131
      %p133 = scmp.ne.s32.totalorder %s125, %s128
      %p134 = scmp.eq.s32.totalorder %s21, 0
      %p135 = por %p133, %p134
      %p136 = scmp.ne.s32.totalorder %s125, %s128
      %p137 = scmp.eq.s32.totalorder %s26, 1
      %p138 = por %p136, %p137
      %p139 = scmp.ne.s32.totalorder %s128, %s129
      %p140 = scmp.eq.s32.totalorder %s26, 0
      %p141 = por %p139, %p140
      %p142 = scmp.ne.s32.totalorder %s128, %s129
      %p143 = scmp.eq.s32.totalorder %s27, 1
      %p144 = por %p142, %p143
      %p146 = scmp.ne.s32.totalorder %s129, %s145
      %p147 = scmp.eq.s32.totalorder %s27, 0
      %p148 = por %p146, %p147
      %s149 = ssub.s32 %s21, %s28
      %p150 = scmp.eq.s32.totalorder %s149, 0
      %s152 = sadd.s32 %s151, 1
      %s153 = scalar_select %p150, %s151, %s152
      %p156 = pneg %p150
      %p157 = scmp.eq.s32.totalorder %s21, 1
      %p158 = por %p156, %p157
      %p159 = scmp.ne.s32.totalorder %s151, %s154
      %p160 = scmp.eq.s32.totalorder %s21, 0
      %p161 = por %p159, %p160
      %p162 = scmp.ne.s32.totalorder %s151, %s154
      %p163 = scmp.eq.s32.totalorder %s26, 1
      %p164 = por %p162, %p163
      %p165 = scmp.ne.s32.totalorder %s154, %s155
      %p166 = scmp.eq.s32.totalorder %s26, 0
      %p167 = por %p165, %p166
      %p168 = scmp.ne.s32.totalorder %s154, %s155
      %p169 = scmp.eq.s32.totalorder %s27, 1
      %p170 = por %p168, %p169
      %p172 = scmp.ne.s32.totalorder %s155, %s171
      %p173 = scmp.eq.s32.totalorder %s27, 0
      %p174 = por %p172, %p173
      %s175 = ssub.s32 %s21, %s28
      %p176 = scmp.eq.s32.totalorder %s175, 0
      %s178 = sadd.s32 %s177, 1
      %s179 = scalar_select %p176, %s177, %s178
      %p182 = pneg %p176
      %p183 = scmp.eq.s32.totalorder %s21, 1
      %p184 = por %p182, %p183
      %p185 = scmp.ne.s32.totalorder %s177, %s180
      %p186 = scmp.eq.s32.totalorder %s21, 0
      %p187 = por %p185, %p186
      %p188 = scmp.ne.s32.totalorder %s177, %s180
      %p189 = scmp.eq.s32.totalorder %s26, 1
      %p190 = por %p188, %p189
      %p191 = scmp.ne.s32.totalorder %s180, %s181
      %p192 = scmp.eq.s32.totalorder %s26, 0
      %p193 = por %p191, %p192
      %p194 = scmp.ne.s32.totalorder %s180, %s181
      %p195 = scmp.eq.s32.totalorder %s27, 1
      %p196 = por %p194, %p195
      %p198 = scmp.ne.s32.totalorder %s181, %s197
      %p199 = scmp.eq.s32.totalorder %s27, 0
      %p200 = por %p198, %p199
      %s201 = ssub.s32 %s21, %s28
      %p202 = scmp.eq.s32.totalorder %s201, 0
      %s204 = sadd.s32 %s203, 1
      %s205 = scalar_select %p202, %s203, %s204
      %p208 = pneg %p202
      %p209 = scmp.eq.s32.totalorder %s21, 1
      %p210 = por %p208, %p209
      %p211 = scmp.ne.s32.totalorder %s203, %s206
      %p212 = scmp.eq.s32.totalorder %s21, 0
      %p213 = por %p211, %p212
      %p214 = scmp.ne.s32.totalorder %s203, %s206
      %p215 = scmp.eq.s32.totalorder %s26, 1
      %p216 = por %p214, %p215
      %p217 = scmp.ne.s32.totalorder %s206, %s207
      %p218 = scmp.eq.s32.totalorder %s26, 0
      %p219 = por %p217, %p218
      %p220 = scmp.ne.s32.totalorder %s206, %s207
      %p221 = scmp.eq.s32.totalorder %s27, 1
      %p222 = por %p220, %p221
      %p224 = scmp.ne.s32.totalorder %s207, %s223
      %p225 = scmp.eq.s32.totalorder %s27, 0
      %p226 = por %p224, %p225
      %s227 = ssub.s32 %s21, %s28
      %p228 = scmp.eq.s32.totalorder %s227, 0
      %s230 = sadd.s32 %s229, 1
      %s231 = scalar_select %p228, %s229, %s230
      %p234 = pneg %p228
      %p235 = scmp.eq.s32.totalorder %s21, 1
      %p236 = por %p234, %p235
      %p237 = scmp.ne.s32.totalorder %s229, %s232
      %p238 = scmp.eq.s32.totalorder %s21, 0
      %p239 = por %p237, %p238
      %p240 = scmp.ne.s32.totalorder %s229, %s232
      %p241 = scmp.eq.s32.totalorder %s26, 1
      %p242 = por %p240, %p241
      %p243 = scmp.ne.s32.totalorder %s232, %s233
      %p244 = scmp.eq.s32.totalorder %s26, 0
      %p245 = por %p243, %p244
      %p246 = scmp.ne.s32.totalorder %s232, %s233
      %p247 = scmp.eq.s32.totalorder %s27, 1
      %p248 = por %p246, %p247
      %p250 = scmp.ne.s32.totalorder %s233, %s249
      %p251 = scmp.eq.s32.totalorder %s27, 0
      %p252 = por %p250, %p251
      %s253 = ssub.s32 %s21, %s28
      %p254 = scmp.eq.s32.totalorder %s253, 0
      %s256 = sadd.s32 %s255, 1
      %s257 = scalar_select %p254, %s255, %s256
      %p260 = pneg %p254
      %p261 = scmp.eq.s32.totalorder %s21, 1
      %p262 = por %p260, %p261
      %p263 = scmp.ne.s32.totalorder %s255, %s258
      %p264 = scmp.eq.s32.totalorder %s21, 0
      %p265 = por %p263, %p264
      %p266 = scmp.ne.s32.totalorder %s255, %s258
      %p267 = scmp.eq.s32.totalorder %s26, 1
      %p268 = por %p266, %p267
      %p269 = scmp.ne.s32.totalorder %s258, %s259
      %p270 = scmp.eq.s32.totalorder %s26, 0
      %p271 = por %p269, %p270
      %p272 = scmp.ne.s32.totalorder %s258, %s259
      %p273 = scmp.eq.s32.totalorder %s27, 1
      %p274 = por %p272, %p273
      %p276 = scmp.ne.s32.totalorder %s259, %s275
      %p277 = scmp.eq.s32.totalorder %s27, 0
      %p278 = por %p276, %p277
      %s279 = ssub.s32 %s21, %s28
      %p280 = scmp.eq.s32.totalorder %s279, 0
      %s282 = sadd.s32 %s281, 1
      %s283 = scalar_select %p280, %s281, %s282
      %p286 = pneg %p280
      %p287 = scmp.eq.s32.totalorder %s21, 1
      %p288 = por %p286, %p287
      %p289 = scmp.ne.s32.totalorder %s281, %s284
      %p290 = scmp.eq.s32.totalorder %s21, 0
      %p291 = por %p289, %p290
      %p292 = scmp.ne.s32.totalorder %s281, %s284
      %p293 = scmp.eq.s32.totalorder %s26, 1
      %p294 = por %p292, %p293
      %p295 = scmp.ne.s32.totalorder %s284, %s285
      %p296 = scmp.eq.s32.totalorder %s26, 0
      %p297 = por %p295, %p296
      %p298 = scmp.ne.s32.totalorder %s284, %s285
      %p299 = scmp.eq.s32.totalorder %s27, 1
      %p300 = por %p298, %p299
      %p302 = scmp.ne.s32.totalorder %s285, %s301
      %p303 = scmp.eq.s32.totalorder %s27, 0
      %p304 = por %p302, %p303
      %s305 = ssub.s32 %s21, %s28
      %p306 = scmp.eq.s32.totalorder %s305, 0
      %s308 = sadd.s32 %s307, 1
      %s309 = scalar_select %p306, %s307, %s308
      %p312 = pneg %p306
      %p313 = scmp.eq.s32.totalorder %s21, 1
      %p314 = por %p312, %p313
      %p315 = scmp.ne.s32.totalorder %s307, %s310
      %p316 = scmp.eq.s32.totalorder %s21, 0
      %p317 = por %p315, %p316
      %p318 = scmp.ne.s32.totalorder %s307, %s310
      %p319 = scmp.eq.s32.totalorder %s26, 1
      %p320 = por %p318, %p319
      %p321 = scmp.ne.s32.totalorder %s310, %s311
      %p322 = scmp.eq.s32.totalorder %s26, 0
      %p323 = por %p321, %p322
      %p324 = scmp.ne.s32.totalorder %s310, %s311
      %p325 = scmp.eq.s32.totalorder %s27, 1
      %p326 = por %p324, %p325
      %p328 = scmp.ne.s32.totalorder %s311, %s327
      %p329 = scmp.eq.s32.totalorder %s27, 0
      %p330 = por %p328, %p329
      %s331 = ssub.s32 %s21, %s28
      %p332 = scmp.eq.s32.totalorder %s331, 0
      %s334 = sadd.s32 %s333, 1
      %s335 = scalar_select %p332, %s333, %s334
      %p338 = pneg %p332
      %p339 = scmp.eq.s32.totalorder %s21, 1
      %p340 = por %p338, %p339
      %p341 = scmp.ne.s32.totalorder %s333, %s336
      %p342 = scmp.eq.s32.totalorder %s21, 0
      %p343 = por %p341, %p342
      %p344 = scmp.ne.s32.totalorder %s333, %s336
      %p345 = scmp.eq.s32.totalorder %s26, 1
      %p346 = por %p344, %p345
      %p347 = scmp.ne.s32.totalorder %s336, %s337
      %p348 = scmp.eq.s32.totalorder %s26, 0
      %p349 = por %p347, %p348
      %p350 = scmp.ne.s32.totalorder %s336, %s337
      %p351 = scmp.eq.s32.totalorder %s27, 1
      %p352 = por %p350, %p351
      %p354 = scmp.ne.s32.totalorder %s337, %s353
      %p355 = scmp.eq.s32.totalorder %s27, 0
      %p356 = por %p354, %p355
      %s357 = ssub.s32 %s21, %s28
      %p358 = scmp.eq.s32.totalorder %s357, 0
      %s360 = sadd.s32 %s359, 1
      %s361 = scalar_select %p358, %s359, %s360
      %p364 = pneg %p358
      %p365 = scmp.eq.s32.totalorder %s21, 1
      %p366 = por %p364, %p365
      %p367 = scmp.ne.s32.totalorder %s359, %s362
      %p368 = scmp.eq.s32.totalorder %s21, 0
      %p369 = por %p367, %p368
      %p370 = scmp.ne.s32.totalorder %s359, %s362
      %p371 = scmp.eq.s32.totalorder %s26, 1
      %p372 = por %p370, %p371
      %p373 = scmp.ne.s32.totalorder %s362, %s363
      %p374 = scmp.eq.s32.totalorder %s26, 0
      %p375 = por %p373, %p374
      %p376 = scmp.ne.s32.totalorder %s362, %s363
      %p377 = scmp.eq.s32.totalorder %s27, 1
      %p378 = por %p376, %p377
      %p380 = scmp.ne.s32.totalorder %s363, %s379
      %p381 = scmp.eq.s32.totalorder %s27, 0
      %p382 = por %p380, %p381
      %s384 = sadd.s32 %s383, 1
      %p387 = scmp.eq.s32.totalorder %s21, 1
      %p388 = scmp.ne.s32.totalorder %s383, %s385
      %p389 = scmp.eq.s32.totalorder %s21, 0
      %p390 = por %p388, %p389
      %p391 = scmp.ne.s32.totalorder %s383, %s385
      %p392 = scmp.eq.s32.totalorder %s26, 1
      %p393 = por %p391, %p392
      %p394 = scmp.ne.s32.totalorder %s385, %s386
      %p395 = scmp.eq.s32.totalorder %s26, 0
      %p396 = por %p394, %p395
      %p397 = scmp.ne.s32.totalorder %s385, %s386
      %p398 = scmp.eq.s32.totalorder %s27, 1
      %p399 = por %p397, %p398
      %p401 = scmp.ne.s32.totalorder %s386, %s400
      %p402 = scmp.eq.s32.totalorder %s27, 0
      %p403 = por %p401, %p402
      %p404 = scmp.le.s32.totalorder 1, %s21
      %p405 = scmp.lt.s32.totalorder %s21, 3
      %p406 = pnand %p404, %p405
      %p407 = pneg %p406
      // Predicated region
      $region9: #{tpu_custom_call.1} parent=5 // pred_check
        _
      $region10: #{tpu_custom_call.1} parent=5 // pred_check_branch
        %409 = sbr.rel (%p406) target = $region12
      $region11: #{tpu_custom_call.1} parent=5 // pred_region
        %s410 = ssub.s32 %s21, 1
        // Predicated region
        $region13: #{tpu_custom_call.1} parent=11 // pred_check
          %p411 = pneg %p42
        $region14: #{tpu_custom_call.1} parent=11 // pred_check_branch
          %413 = sbr.rel (%p411) target = $region16
        $region15: #{tpu_custom_call.1} parent=11 // pred_region
          _
        $region16: #{tpu_custom_call.1} parent=11 // pred_fallthru
          _
        // Predicated region
        $region17: #{tpu_custom_call.1} parent=11 // pred_check
          %p414 = pneg %p63
        $region18: #{tpu_custom_call.1} parent=11 // pred_check_branch
          %416 = sbr.rel (%p414) target = $region20
        $region19: #{tpu_custom_call.1} parent=11 // pred_region
          _
        $region20: #{tpu_custom_call.1} parent=11 // pred_fallthru
          _
      $region12: #{tpu_custom_call.1} parent=5 // pred_fallthru
        _
      %p417 = scmp.lt.s32.totalorder %s21, 2
      // Predicated region
      $region21: #{tpu_custom_call.1} parent=5 // pred_check
        %p418 = pneg %p417
      $region22: #{tpu_custom_call.1} parent=5 // pred_check_branch
        %420 = sbr.rel (%p418) target = $region24
      $region23: #{tpu_custom_call.1} parent=5 // pred_region
        // Predicated region
        $region25: #{tpu_custom_call.1} parent=23 // pred_check
          %p421 = pneg %p83
        $region26: #{tpu_custom_call.1} parent=23 // pred_check_branch
          %423 = sbr.rel (%p421) target = $region28
        $region27: #{tpu_custom_call.1} parent=23 // pred_region
          %p424 = scmp.lt.s32.totalorder %s21, 1
          %s425 = scalar_select %p424, %s21, 1
          %s426 = smul.addr %s425, 16
          %s427 = smul.addr %s426, 4
          %s428 = scalar_lea.vmem %s2, %s427
        $region28: #{tpu_custom_call.1} parent=23 // pred_fallthru
          _
        // Predicated region
        $region29: #{tpu_custom_call.1} parent=23 // pred_check
          %p429 = pneg %p109
        $region30: #{tpu_custom_call.1} parent=23 // pred_check_branch
          %431 = sbr.rel (%p429) target = $region32
        $region31: #{tpu_custom_call.1} parent=23 // pred_region
          %p432 = scmp.lt.s32.totalorder %s21, 1
          %s433 = scalar_select %p432, %s21, 1
          %s434 = smul.addr %s433, 4
          %s435 = scalar_lea.vmem %s3, %s434
        $region32: #{tpu_custom_call.1} parent=23 // pred_fallthru
          _
        // Predicated region
        $region33: #{tpu_custom_call.1} parent=23 // pred_check
          %p436 = pneg %p135
        $region34: #{tpu_custom_call.1} parent=23 // pred_check_branch
          %438 = sbr.rel (%p436) target = $region36
        $region35: #{tpu_custom_call.1} parent=23 // pred_region
          %p439 = scmp.lt.s32.totalorder %s21, 1
          %s440 = scalar_select %p439, %s21, 1
          %s441 = smul.addr %s440, 4
          %s442 = smul.addr %s441, 4
          %s443 = scalar_lea.vmem %s4, %s442
        $region36: #{tpu_custom_call.1} parent=23 // pred_fallthru
          _
        // Predicated region
        $region37: #{tpu_custom_call.1} parent=23 // pred_check
          %p444 = pneg %p161
        $region38: #{tpu_custom_call.1} parent=23 // pred_check_branch
          %446 = sbr.rel (%p444) target = $region40
        $region39: #{tpu_custom_call.1} parent=23 // pred_region
          %p447 = scmp.lt.s32.totalorder %s21, 1
          %s448 = scalar_select %p447, %s21, 1
          %s449 = scalar_lea.vmem %s5, %s448
        $region40: #{tpu_custom_call.1} parent=23 // pred_fallthru
          _
        // Predicated region
        $region41: #{tpu_custom_call.1} parent=23 // pred_check
          %p450 = pneg %p187
        $region42: #{tpu_custom_call.1} parent=23 // pred_check_branch
          %452 = sbr.rel (%p450) target = $region44
        $region43: #{tpu_custom_call.1} parent=23 // pred_region
          %p453 = scmp.lt.s32.totalorder %s21, 1
          %s454 = scalar_select %p453, %s21, 1
          %s455 = scalar_lea.vmem %s6, %s454
        $region44: #{tpu_custom_call.1} parent=23 // pred_fallthru
          _
        // Predicated region
        $region45: #{tpu_custom_call.1} parent=23 // pred_check
          %p456 = pneg %p213
        $region46: #{tpu_custom_call.1} parent=23 // pred_check_branch
          %458 = sbr.rel (%p456) target = $region48
        $region47: #{tpu_custom_call.1} parent=23 // pred_region
          %p459 = scmp.lt.s32.totalorder %s21, 1
          %s460 = scalar_select %p459, %s21, 1
          %s461 = scalar_lea.vmem %s7, %s460
        $region48: #{tpu_custom_call.1} parent=23 // pred_fallthru
          _
        // Predicated region
        $region49: #{tpu_custom_call.1} parent=23 // pred_check
          %p462 = pneg %p239
        $region50: #{tpu_custom_call.1} parent=23 // pred_check_branch
          %464 = sbr.rel (%p462) target = $region52
        $region51: #{tpu_custom_call.1} parent=23 // pred_region
          %p465 = scmp.lt.s32.totalorder %s21, 1
          %s466 = scalar_select %p465, %s21, 1
          %s467 = smul.addr %s466, 64
          %s468 = smul.addr %s467, 4
          %s469 = scalar_lea.vmem %s8, %s468
        $region52: #{tpu_custom_call.1} parent=23 // pred_fallthru
          _
        // Predicated region
        $region53: #{tpu_custom_call.1} parent=23 // pred_check
          %p470 = pneg %p265
        $region54: #{tpu_custom_call.1} parent=23 // pred_check_branch
          %472 = sbr.rel (%p470) target = $region56
        $region55: #{tpu_custom_call.1} parent=23 // pred_region
          %p473 = scmp.lt.s32.totalorder %s21, 1
          %s474 = scalar_select %p473, %s21, 1
          %s475 = smul.addr %s474, 16
          %s476 = scalar_lea.vmem %s9, %s475
        $region56: #{tpu_custom_call.1} parent=23 // pred_fallthru
          _
        // Predicated region
        $region57: #{tpu_custom_call.1} parent=23 // pred_check
          %p477 = pneg %p291
        $region58: #{tpu_custom_call.1} parent=23 // pred_check_branch
          %479 = sbr.rel (%p477) target = $region60
        $region59: #{tpu_custom_call.1} parent=23 // pred_region
          %p480 = scmp.lt.s32.totalorder %s21, 1
          %s481 = scalar_select %p480, %s21, 1
          %s482 = smul.addr %s481, 256
          %s483 = smul.addr %s482, 4
          %s484 = scalar_lea.vmem %s10, %s483
        $region60: #{tpu_custom_call.1} parent=23 // pred_fallthru
          _
        // Predicated region
        $region61: #{tpu_custom_call.1} parent=23 // pred_check
          %p485 = pneg %p317
        $region62: #{tpu_custom_call.1} parent=23 // pred_check_branch
          %487 = sbr.rel (%p485) target = $region64
        $region63: #{tpu_custom_call.1} parent=23 // pred_region
          %p488 = scmp.lt.s32.totalorder %s21, 1
          %s489 = scalar_select %p488, %s21, 1
          %s490 = scalar_lea.vmem %s11, %s489
        $region64: #{tpu_custom_call.1} parent=23 // pred_fallthru
          _
        // Predicated region
        $region65: #{tpu_custom_call.1} parent=23 // pred_check
          %p491 = pneg %p343
        $region66: #{tpu_custom_call.1} parent=23 // pred_check_branch
          %493 = sbr.rel (%p491) target = $region68
        $region67: #{tpu_custom_call.1} parent=23 // pred_region
          %p494 = scmp.lt.s32.totalorder %s21, 1
          %s495 = scalar_select %p494, %s21, 1
          %s496 = scalar_lea.vmem %s12, %s495
        $region68: #{tpu_custom_call.1} parent=23 // pred_fallthru
          _
        // Predicated region
        $region69: #{tpu_custom_call.1} parent=23 // pred_check
          %p497 = pneg %p369
        $region70: #{tpu_custom_call.1} parent=23 // pred_check_branch
          %499 = sbr.rel (%p497) target = $region72
        $region71: #{tpu_custom_call.1} parent=23 // pred_region
          %p500 = scmp.lt.s32.totalorder %s21, 1
          %s501 = scalar_select %p500, %s21, 1
          %s502 = scalar_lea.vmem %s13, %s501
        $region72: #{tpu_custom_call.1} parent=23 // pred_fallthru
          _
      $region24: #{tpu_custom_call.1} parent=5 // pred_fallthru
        _
      %p503 = scmp.le.s32.totalorder 1, %s21
      %p504 = scmp.lt.s32.totalorder %s21, 3
      %p505 = pnand %p503, %p504
      %p506 = pneg %p505
      // Predicated region
      $region73: #{tpu_custom_call.1} parent=5 // pred_check
        _
      $region74: #{tpu_custom_call.1} parent=5 // pred_check_branch
        %508 = sbr.rel (%p505) target = $region76
      $region75: #{tpu_custom_call.1} parent=5 // pred_region
        %s509 = ssub.s32 %s21, 1
        %p510 = pneg %p42
        %p511 = pneg %p39
        %p512 = pneg %p63
        %p513 = pneg %p60
        %p514 = scmp.lt.s32.totalorder %s26, 1
        %s515 = scalar_select %p514, %s26, 1
        %s516 = smul.addr %s515, 16
        %s517 = smul.addr %s516, 4
        %s518 = scalar_lea.vmem %s2, %s517
        %p519 = pneg %p89
        %p520 = pneg %p86
        %p521 = scmp.lt.s32.totalorder %s26, 1
        %s522 = scalar_select %p521, %s26, 1
        %s523 = smul.addr %s522, 4
        %s524 = scalar_lea.vmem %s3, %s523
        %p525 = pneg %p115
        %p526 = pneg %p112
        %p527 = scmp.lt.s32.totalorder %s26, 1
        %s528 = scalar_select %p527, %s26, 1
        %s529 = smul.addr %s528, 4
        %s530 = smul.addr %s529, 4
        %s531 = scalar_lea.vmem %s4, %s530
        %p532 = pneg %p141
        %p533 = pneg %p138
        %p534 = scmp.lt.s32.totalorder %s26, 1
        %s535 = scalar_select %p534, %s26, 1
        %s536 = scalar_lea.vmem %s5, %s535
        %p537 = pneg %p167
        %p538 = pneg %p164
        %p539 = scmp.lt.s32.totalorder %s26, 1
        %s540 = scalar_select %p539, %s26, 1
        %s541 = scalar_lea.vmem %s6, %s540
        %p542 = pneg %p193
        %p543 = pneg %p190
        %p544 = scmp.lt.s32.totalorder %s26, 1
        %s545 = scalar_select %p544, %s26, 1
        %s546 = scalar_lea.vmem %s7, %s545
        %p547 = pneg %p219
        %p548 = pneg %p216
        %p549 = scmp.lt.s32.totalorder %s26, 1
        %s550 = scalar_select %p549, %s26, 1
        %s551 = smul.addr %s550, 64
        %s552 = smul.addr %s551, 4
        %s553 = scalar_lea.vmem %s8, %s552
        %p554 = pneg %p245
        %p555 = pneg %p242
        %p556 = scmp.lt.s32.totalorder %s26, 1
        %s557 = scalar_select %p556, %s26, 1
        %s558 = smul.addr %s557, 16
        %s559 = scalar_lea.vmem %s9, %s558
        %p560 = pneg %p271
        %p561 = pneg %p268
        %p562 = scmp.lt.s32.totalorder %s26, 1
        %s563 = scalar_select %p562, %s26, 1
        %s564 = smul.addr %s563, 256
        %s565 = smul.addr %s564, 4
        %s566 = scalar_lea.vmem %s10, %s565
        %p567 = pneg %p297
        %p568 = pneg %p294
        %p569 = scmp.lt.s32.totalorder %s26, 1
        %s570 = scalar_select %p569, %s26, 1
        %s571 = scalar_lea.vmem %s11, %s570
        %p572 = pneg %p323
        %p573 = pneg %p320
        %p574 = scmp.lt.s32.totalorder %s26, 1
        %s575 = scalar_select %p574, %s26, 1
        %s576 = scalar_lea.vmem %s12, %s575
        %p577 = pneg %p349
        %p578 = pneg %p346
        %p579 = scmp.lt.s32.totalorder %s26, 1
        %s580 = scalar_select %p579, %s26, 1
        %s581 = scalar_lea.vmem %s13, %s580
        %p582 = pneg %p375
        %p583 = pneg %p372
        %p584 = pneg %p396
        %p585 = pneg %p393
        %p586 = scmp.lt.s32.totalorder %s26, 1
        %s587 = scalar_select %p586, %s26, 1
        %s588 = smul.addr %s587, 16
        %s589 = smul.addr %s588, 4
        %s590 = scalar_lea.vmem %s2, %s589
        %p591 = scmp.lt.s32.totalorder %s26, 1
        %s592 = scalar_select %p591, %s26, 1
        %s593 = smul.addr %s592, 4
        %s594 = scalar_lea.vmem %s3, %s593
        %p595 = scmp.lt.s32.totalorder %s26, 1
        %s596 = scalar_select %p595, %s26, 1
        %s597 = smul.addr %s596, 4
        %s598 = smul.addr %s597, 4
        %s599 = scalar_lea.vmem %s4, %s598
        %p600 = scmp.lt.s32.totalorder %s26, 1
        %s601 = scalar_select %p600, %s26, 1
        %s602 = scalar_lea.vmem %s5, %s601
        %p603 = scmp.lt.s32.totalorder %s26, 1
        %s604 = scalar_select %p603, %s26, 1
        %s605 = scalar_lea.vmem %s6, %s604
        %p606 = scmp.lt.s32.totalorder %s26, 1
        %s607 = scalar_select %p606, %s26, 1
        %s608 = scalar_lea.vmem %s7, %s607
        %p609 = scmp.lt.s32.totalorder %s26, 1
        %s610 = scalar_select %p609, %s26, 1
        %s611 = smul.addr %s610, 64
        %s612 = smul.addr %s611, 4
        %s613 = scalar_lea.vmem %s8, %s612
        %p614 = scmp.lt.s32.totalorder %s26, 1
        %s615 = scalar_select %p614, %s26, 1
        %s616 = smul.addr %s615, 16
        %s617 = scalar_lea.vmem %s9, %s616
        %p618 = scmp.lt.s32.totalorder %s26, 1
        %s619 = scalar_select %p618, %s26, 1
        %s620 = smul.addr %s619, 256
        %s621 = smul.addr %s620, 4
        %s622 = scalar_lea.vmem %s10, %s621
        %p623 = scmp.lt.s32.totalorder %s26, 1
        %s624 = scalar_select %p623, %s26, 1
        %s625 = scalar_lea.vmem %s11, %s624
        %p626 = scmp.lt.s32.totalorder %s26, 1
        %s627 = scalar_select %p626, %s26, 1
        %s628 = scalar_lea.vmem %s12, %s627
        %p629 = scmp.lt.s32.totalorder %s26, 1
        %s630 = scalar_select %p629, %s26, 1
        %s631 = scalar_lea.vmem %s13, %s630
        %p633 = scmp.eq.s32.totalorder %s26, 0
        // Predicated region
        $region77: #{tpu_custom_call.1} parent=75 // pred_check
          %p634 = pneg %p633
        $region78: #{tpu_custom_call.1} parent=75 // pred_check_branch
          %636 = sbr.rel (%p634) target = $region80
        $region79: #{tpu_custom_call.1} parent=75 // pred_region
          %v637 = vld [vmem:[%s0] sm:$0xff]
          %v638 = vld [vmem:[%s0 + $0x8] sm:$0xff]
          %vm639 = vcmask 261120
          %640 = vst.msk [vmem:[#allocation2] sm:$0xff] %vm639, %v637
          %641 = vst.msk [vmem:[#allocation2 + $0x8] sm:$0xff] %vm639, %v638
        $region80: #{tpu_custom_call.1} parent=75 // pred_fallthru
          _
        %v642 = vld [vmem:[#allocation2] sm:$0xff]
        %v643 = vld [vmem:[#allocation2 + $0x8] sm:$0xff]
        %v644 = vpack.c.bf16 %v642, %v642
        %v645 = vpack.c.bf16 %v643, %v643
        %v646 = vld [vmem:[%s590] sm:$0xf]
        %v647 = vld [vmem:[%s590 + $0x4] sm:$0xf]
        %v648 = vld [vmem:[%s590 + $0x8] sm:$0xf]
        %v649 = vld [vmem:[%s590 + $0xc] sm:$0xf]
        %v650 = vld [vmem:[%s590 + $0x10] sm:$0xf]
        %v651 = vld [vmem:[%s590 + $0x14] sm:$0xf]
        %v652 = vld [vmem:[%s590 + $0x18] sm:$0xf]
        %v653 = vld [vmem:[%s590 + $0x1c] sm:$0xf]
        %v654 = vld [vmem:[%s590 + $0x20] sm:$0xf]
        %v655 = vld [vmem:[%s590 + $0x24] sm:$0xf]
        %v656 = vld [vmem:[%s590 + $0x28] sm:$0xf]
        %v657 = vld [vmem:[%s590 + $0x2c] sm:$0xf]
        %v658 = vld [vmem:[%s590 + $0x30] sm:$0xf]
        %v659 = vld [vmem:[%s590 + $0x34] sm:$0xf]
        %v660 = vld [vmem:[%s590 + $0x38] sm:$0xf]
        %v661 = vld [vmem:[%s590 + $0x3c] sm:$0xf]
        %v662 = vld [vmem:[%s594] sm:$0x1]
        %v663 = vld [vmem:[%s594 + $0x1] sm:$0x1]
        %v664 = vld [vmem:[%s594 + $0x2] sm:$0x1]
        %v665 = vld [vmem:[%s594 + $0x3] sm:$0x1]
        %v670 = vlaneseq
        %v671 = vshrl.u32 %v670, 7
        %v672 = vsub.s32 0, %v671
        %v673 = vrot.slane %v662, %v672
        %v674 = vlaneseq
        %v675 = vshrl.u32 %v674, 7
        %v676 = vsub.s32 0, %v675
        %v677 = vrot.slane %v663, %v676
        %v678 = vlaneseq
        %v679 = vshrl.u32 %v678, 7
        %v680 = vsub.s32 0, %v679
        %v681 = vrot.slane %v664, %v680
        %v682 = vlaneseq
        %v683 = vshrl.u32 %v682, 7
        %v684 = vsub.s32 0, %v683
        %v685 = vrot.slane %v665, %v684
        %v694 = vunpack.c.l.b16 %v646
        %v695 = vunpack.c.l.b16 %v647
        %v696 = vunpack.c.l.b16 %v648
        %v697 = vunpack.c.l.b16 %v649
        %v698 = vpack.c.b16 %v695, %v694
        %v699 = vpack.c.b16 %v697, %v696
        %vm702 = vcmask 261120
        %v704 = vsel %vm702, %v644, 0
        %706 = vmatprep.subr.bf16.mxu0 0
        %707 = vmatpush1.bf16.msra.mxu0 0
        %708 = vmatprep.subr.bf16.mxu0 0
        %709 = vmatpush1.bf16.msra.mxu0 0
        %710 = vmatprep.subr.bf16.mxu0 0
        %711 = vmatpush1.bf16.msra.mxu0 0
        %712 = vmatprep.subr.bf16.mxu0 0
        %713 = vmatpush1.bf16.msra.mxu0 0
        %714 = vmatprep.subr.bf16.mxu0 0
        %715 = vmatpush1.bf16.msra.mxu0 0
        %716 = vmatprep.subr.bf16.mxu0 0
        %717 = vmatpush1.bf16.msra.mxu0 0
        %718 = vmatprep.subr.bf16.mxu0 0
        %719 = vmatpush1.bf16.msra.mxu0 %v699
        %720 = vmatprep.subr.bf16.mxu0 0
        %721 = vmatpush1.bf16.msra.mxu0 %v698
        %722 = vmatprep.subr.bf16.mxu0 0
        %723 = vmatpush2.bf16.msra.mxu0 0
        %724 = vmatprep.subr.bf16.mxu0 0
        %725 = vmatpush2.bf16.msra.mxu0 0
        %726 = vmatprep.subr.bf16.mxu0 0
        %727 = vmatpush2.bf16.msra.mxu0 0
        %728 = vmatprep.subr.bf16.mxu0 0
        %729 = vmatpush2.bf16.msra.mxu0 0
        %730 = vmatprep.subr.bf16.mxu0 0
        %731 = vmatpush2.bf16.msra.mxu0 0
        %732 = vmatprep.subr.bf16.mxu0 0
        %733 = vmatpush2.bf16.msra.mxu0 0
        %734 = vmatprep.subr.bf16.mxu0 0
        %735 = vmatpush2.bf16.msra.mxu0 0
        %736 = vmatprep.subr.bf16.mxu0 0
        %737 = vmatpush2.bf16.msra.mxu0 0
        %738 = vmatprep.mubr.bf16.mxu0 0
        %739 = vmatmul.mubr.bf16.gmra.mxu0 %v704
        %v740 = vpop.f32.mrf.mxu0
        %v741 = vadd.f32 %v673, %v740
        %v742 = vpop.f32.mrf.mxu0
        %v743 = vpop.f32.mrf.mxu0
        %v744 = vpop.f32.mrf.mxu0
        %745 = vdwg.mxu0
        %v750 = vunpack.c.l.b16 %v650
        %v751 = vunpack.c.l.b16 %v651
        %v752 = vunpack.c.l.b16 %v652
        %v753 = vunpack.c.l.b16 %v653
        %v754 = vpack.c.b16 %v751, %v750
        %v755 = vpack.c.b16 %v753, %v752
        %758 = vmatprep.subr.bf16.mxu0 0
        %759 = vmatpush1.bf16.msra.mxu0 0
        %760 = vmatprep.subr.bf16.mxu0 0
        %761 = vmatpush1.bf16.msra.mxu0 0
        %762 = vmatprep.subr.bf16.mxu0 0
        %763 = vmatpush1.bf16.msra.mxu0 0
        %764 = vmatprep.subr.bf16.mxu0 0
        %765 = vmatpush1.bf16.msra.mxu0 0
        %766 = vmatprep.subr.bf16.mxu0 0
        %767 = vmatpush1.bf16.msra.mxu0 0
        %768 = vmatprep.subr.bf16.mxu0 0
        %769 = vmatpush1.bf16.msra.mxu0 0
        %770 = vmatprep.subr.bf16.mxu0 0
        %771 = vmatpush1.bf16.msra.mxu0 %v755
        %772 = vmatprep.subr.bf16.mxu0 0
        %773 = vmatpush1.bf16.msra.mxu0 %v754
        %774 = vmatprep.subr.bf16.mxu0 0
        %775 = vmatpush2.bf16.msra.mxu0 0
        %776 = vmatprep.subr.bf16.mxu0 0
        %777 = vmatpush2.bf16.msra.mxu0 0
        %778 = vmatprep.subr.bf16.mxu0 0
        %779 = vmatpush2.bf16.msra.mxu0 0
        %780 = vmatprep.subr.bf16.mxu0 0
        %781 = vmatpush2.bf16.msra.mxu0 0
        %782 = vmatprep.subr.bf16.mxu0 0
        %783 = vmatpush2.bf16.msra.mxu0 0
        %784 = vmatprep.subr.bf16.mxu0 0
        %785 = vmatpush2.bf16.msra.mxu0 0
        %786 = vmatprep.subr.bf16.mxu0 0
        %787 = vmatpush2.bf16.msra.mxu0 0
        %788 = vmatprep.subr.bf16.mxu0 0
        %789 = vmatpush2.bf16.msra.mxu0 0
        %790 = vmatprep.mubr.bf16.mxu0 0
        %791 = vmatmul.mubr.bf16.gmra.mxu0 %v704
        %v792 = vpop.f32.mrf.mxu0
        %v793 = vadd.f32 %v677, %v792
        %v794 = vpop.f32.mrf.mxu0
        %v795 = vpop.f32.mrf.mxu0
        %v796 = vpop.f32.mrf.mxu0
        %797 = vdwg.mxu0
        %v802 = vunpack.c.l.b16 %v654
        %v803 = vunpack.c.l.b16 %v655
        %v804 = vunpack.c.l.b16 %v656
        %v805 = vunpack.c.l.b16 %v657
        %v806 = vpack.c.b16 %v803, %v802
        %v807 = vpack.c.b16 %v805, %v804
        %810 = vmatprep.subr.bf16.mxu0 0
        %811 = vmatpush1.bf16.msra.mxu0 0
        %812 = vmatprep.subr.bf16.mxu0 0
        %813 = vmatpush1.bf16.msra.mxu0 0
        %814 = vmatprep.subr.bf16.mxu0 0
        %815 = vmatpush1.bf16.msra.mxu0 0
        %816 = vmatprep.subr.bf16.mxu0 0
        %817 = vmatpush1.bf16.msra.mxu0 0
        %818 = vmatprep.subr.bf16.mxu0 0
        %819 = vmatpush1.bf16.msra.mxu0 0
        %820 = vmatprep.subr.bf16.mxu0 0
        %821 = vmatpush1.bf16.msra.mxu0 0
        %822 = vmatprep.subr.bf16.mxu0 0
        %823 = vmatpush1.bf16.msra.mxu0 %v807
        %824 = vmatprep.subr.bf16.mxu0 0
        %825 = vmatpush1.bf16.msra.mxu0 %v806
        %826 = vmatprep.subr.bf16.mxu0 0
        %827 = vmatpush2.bf16.msra.mxu0 0
        %828 = vmatprep.subr.bf16.mxu0 0
        %829 = vmatpush2.bf16.msra.mxu0 0
        %830 = vmatprep.subr.bf16.mxu0 0
        %831 = vmatpush2.bf16.msra.mxu0 0
        %832 = vmatprep.subr.bf16.mxu0 0
        %833 = vmatpush2.bf16.msra.mxu0 0
        %834 = vmatprep.subr.bf16.mxu0 0
        %835 = vmatpush2.bf16.msra.mxu0 0
        %836 = vmatprep.subr.bf16.mxu0 0
        %837 = vmatpush2.bf16.msra.mxu0 0
        %838 = vmatprep.subr.bf16.mxu0 0
        %839 = vmatpush2.bf16.msra.mxu0 0
        %840 = vmatprep.subr.bf16.mxu0 0
        %841 = vmatpush2.bf16.msra.mxu0 0
        %842 = vmatprep.mubr.bf16.mxu0 0
        %843 = vmatmul.mubr.bf16.gmra.mxu0 %v704
        %v844 = vpop.f32.mrf.mxu0
        %v845 = vadd.f32 %v681, %v844
        %v846 = vpop.f32.mrf.mxu0
        %v847 = vpop.f32.mrf.mxu0
        %v848 = vpop.f32.mrf.mxu0
        %849 = vdwg.mxu0
        %v854 = vunpack.c.l.b16 %v658
        %v855 = vunpack.c.l.b16 %v659
        %v856 = vunpack.c.l.b16 %v660
        %v857 = vunpack.c.l.b16 %v661
        %v858 = vpack.c.b16 %v855, %v854
        %v859 = vpack.c.b16 %v857, %v856
        %862 = vmatprep.subr.bf16.mxu0 0
        %863 = vmatpush1.bf16.msra.mxu0 0
        %864 = vmatprep.subr.bf16.mxu0 0
        %865 = vmatpush1.bf16.msra.mxu0 0
        %866 = vmatprep.subr.bf16.mxu0 0
        %867 = vmatpush1.bf16.msra.mxu0 0
        %868 = vmatprep.subr.bf16.mxu0 0
        %869 = vmatpush1.bf16.msra.mxu0 0
        %870 = vmatprep.subr.bf16.mxu0 0
        %871 = vmatpush1.bf16.msra.mxu0 0
        %872 = vmatprep.subr.bf16.mxu0 0
        %873 = vmatpush1.bf16.msra.mxu0 0
        %874 = vmatprep.subr.bf16.mxu0 0
        %875 = vmatpush1.bf16.msra.mxu0 %v859
        %876 = vmatprep.subr.bf16.mxu0 0
        %877 = vmatpush1.bf16.msra.mxu0 %v858
        %878 = vmatprep.subr.bf16.mxu0 0
        %879 = vmatpush2.bf16.msra.mxu0 0
        %880 = vmatprep.subr.bf16.mxu0 0
        %881 = vmatpush2.bf16.msra.mxu0 0
        %882 = vmatprep.subr.bf16.mxu0 0
        %883 = vmatpush2.bf16.msra.mxu0 0
        %884 = vmatprep.subr.bf16.mxu0 0
        %885 = vmatpush2.bf16.msra.mxu0 0
        %886 = vmatprep.subr.bf16.mxu0 0
        %887 = vmatpush2.bf16.msra.mxu0 0
        %888 = vmatprep.subr.bf16.mxu0 0
        %889 = vmatpush2.bf16.msra.mxu0 0
        %890 = vmatprep.subr.bf16.mxu0 0
        %891 = vmatpush2.bf16.msra.mxu0 0
        %892 = vmatprep.subr.bf16.mxu0 0
        %893 = vmatpush2.bf16.msra.mxu0 0
        %894 = vmatprep.mubr.bf16.mxu0 0
        %895 = vmatmul.mubr.bf16.gmra.mxu0 %v704
        %v896 = vpop.f32.mrf.mxu0
        %v897 = vadd.f32 %v685, %v896
        %v898 = vpop.f32.mrf.mxu0
        %v899 = vpop.f32.mrf.mxu0
        %v900 = vpop.f32.mrf.mxu0
        %901 = vdwg.mxu0
        %v903 = vsel %vm702, %v645, 0
        %905 = vmatprep.subr.bf16.mxu0 0
        %906 = vmatpush1.bf16.msra.mxu0 0
        %907 = vmatprep.subr.bf16.mxu0 0
        %908 = vmatpush1.bf16.msra.mxu0 0
        %909 = vmatprep.subr.bf16.mxu0 0
        %910 = vmatpush1.bf16.msra.mxu0 0
        %911 = vmatprep.subr.bf16.mxu0 0
        %912 = vmatpush1.bf16.msra.mxu0 0
        %913 = vmatprep.subr.bf16.mxu0 0
        %914 = vmatpush1.bf16.msra.mxu0 0
        %915 = vmatprep.subr.bf16.mxu0 0
        %916 = vmatpush1.bf16.msra.mxu0 0
        %917 = vmatprep.subr.bf16.mxu0 0
        %918 = vmatpush1.bf16.msra.mxu0 %v699
        %919 = vmatprep.subr.bf16.mxu0 0
        %920 = vmatpush1.bf16.msra.mxu0 %v698
        %921 = vmatprep.subr.bf16.mxu0 0
        %922 = vmatpush2.bf16.msra.mxu0 0
        %923 = vmatprep.subr.bf16.mxu0 0
        %924 = vmatpush2.bf16.msra.mxu0 0
        %925 = vmatprep.subr.bf16.mxu0 0
        %926 = vmatpush2.bf16.msra.mxu0 0
        %927 = vmatprep.subr.bf16.mxu0 0
        %928 = vmatpush2.bf16.msra.mxu0 0
        %929 = vmatprep.subr.bf16.mxu0 0
        %930 = vmatpush2.bf16.msra.mxu0 0
        %931 = vmatprep.subr.bf16.mxu0 0
        %932 = vmatpush2.bf16.msra.mxu0 0
        %933 = vmatprep.subr.bf16.mxu0 0
        %934 = vmatpush2.bf16.msra.mxu0 0
        %935 = vmatprep.subr.bf16.mxu0 0
        %936 = vmatpush2.bf16.msra.mxu0 0
        %937 = vmatprep.mubr.bf16.mxu0 0
        %938 = vmatmul.mubr.bf16.gmra.mxu0 %v903
        %v939 = vpop.f32.mrf.mxu0
        %v940 = vadd.f32 %v673, %v939
        %v941 = vpop.f32.mrf.mxu0
        %v942 = vpop.f32.mrf.mxu0
        %v943 = vpop.f32.mrf.mxu0
        %944 = vdwg.mxu0
        %945 = vmatprep.subr.bf16.mxu0 0
        %946 = vmatpush1.bf16.msra.mxu0 0
        %947 = vmatprep.subr.bf16.mxu0 0
        %948 = vmatpush1.bf16.msra.mxu0 0
        %949 = vmatprep.subr.bf16.mxu0 0
        %950 = vmatpush1.bf16.msra.mxu0 0
        %951 = vmatprep.subr.bf16.mxu0 0
        %952 = vmatpush1.bf16.msra.mxu0 0
        %953 = vmatprep.subr.bf16.mxu0 0
        %954 = vmatpush1.bf16.msra.mxu0 0
        %955 = vmatprep.subr.bf16.mxu0 0
        %956 = vmatpush1.bf16.msra.mxu0 0
        %957 = vmatprep.subr.bf16.mxu0 0
        %958 = vmatpush1.bf16.msra.mxu0 %v755
        %959 = vmatprep.subr.bf16.mxu0 0
        %960 = vmatpush1.bf16.msra.mxu0 %v754
        %961 = vmatprep.subr.bf16.mxu0 0
        %962 = vmatpush2.bf16.msra.mxu0 0
        %963 = vmatprep.subr.bf16.mxu0 0
        %964 = vmatpush2.bf16.msra.mxu0 0
        %965 = vmatprep.subr.bf16.mxu0 0
        %966 = vmatpush2.bf16.msra.mxu0 0
        %967 = vmatprep.subr.bf16.mxu0 0
        %968 = vmatpush2.bf16.msra.mxu0 0
        %969 = vmatprep.subr.bf16.mxu0 0
        %970 = vmatpush2.bf16.msra.mxu0 0
        %971 = vmatprep.subr.bf16.mxu0 0
        %972 = vmatpush2.bf16.msra.mxu0 0
        %973 = vmatprep.subr.bf16.mxu0 0
        %974 = vmatpush2.bf16.msra.mxu0 0
        %975 = vmatprep.subr.bf16.mxu0 0
        %976 = vmatpush2.bf16.msra.mxu0 0
        %977 = vmatprep.mubr.bf16.mxu0 0
        %978 = vmatmul.mubr.bf16.gmra.mxu0 %v903
        %v979 = vpop.f32.mrf.mxu0
        %v980 = vadd.f32 %v677, %v979
        %v981 = vpop.f32.mrf.mxu0
        %v982 = vpop.f32.mrf.mxu0
        %v983 = vpop.f32.mrf.mxu0
        %984 = vdwg.mxu0
        %985 = vmatprep.subr.bf16.mxu0 0
        %986 = vmatpush1.bf16.msra.mxu0 0
        %987 = vmatprep.subr.bf16.mxu0 0
        %988 = vmatpush1.bf16.msra.mxu0 0
        %989 = vmatprep.subr.bf16.mxu0 0
        %990 = vmatpush1.bf16.msra.mxu0 0
        %991 = vmatprep.subr.bf16.mxu0 0
        %992 = vmatpush1.bf16.msra.mxu0 0
        %993 = vmatprep.subr.bf16.mxu0 0
        %994 = vmatpush1.bf16.msra.mxu0 0
        %995 = vmatprep.subr.bf16.mxu0 0
        %996 = vmatpush1.bf16.msra.mxu0 0
        %997 = vmatprep.subr.bf16.mxu0 0
        %998 = vmatpush1.bf16.msra.mxu0 %v807
        %999 = vmatprep.subr.bf16.mxu0 0
        %1000 = vmatpush1.bf16.msra.mxu0 %v806
        %1001 = vmatprep.subr.bf16.mxu0 0
        %1002 = vmatpush2.bf16.msra.mxu0 0
        %1003 = vmatprep.subr.bf16.mxu0 0
        %1004 = vmatpush2.bf16.msra.mxu0 0
        %1005 = vmatprep.subr.bf16.mxu0 0
        %1006 = vmatpush2.bf16.msra.mxu0 0
        %1007 = vmatprep.subr.bf16.mxu0 0
        %1008 = vmatpush2.bf16.msra.mxu0 0
        %1009 = vmatprep.subr.bf16.mxu0 0
        %1010 = vmatpush2.bf16.msra.mxu0 0
        %1011 = vmatprep.subr.bf16.mxu0 0
        %1012 = vmatpush2.bf16.msra.mxu0 0
        %1013 = vmatprep.subr.bf16.mxu0 0
        %1014 = vmatpush2.bf16.msra.mxu0 0
        %1015 = vmatprep.subr.bf16.mxu0 0
        %1016 = vmatpush2.bf16.msra.mxu0 0
        %1017 = vmatprep.mubr.bf16.mxu0 0
        %1018 = vmatmul.mubr.bf16.gmra.mxu0 %v903
        %v1019 = vpop.f32.mrf.mxu0
        %v1020 = vadd.f32 %v681, %v1019
        %v1021 = vpop.f32.mrf.mxu0
        %v1022 = vpop.f32.mrf.mxu0
        %v1023 = vpop.f32.mrf.mxu0
        %1024 = vdwg.mxu0
        %1025 = vmatprep.subr.bf16.mxu0 0
        %1026 = vmatpush1.bf16.msra.mxu0 0
        %1027 = vmatprep.subr.bf16.mxu0 0
        %1028 = vmatpush1.bf16.msra.mxu0 0
        %1029 = vmatprep.subr.bf16.mxu0 0
        %1030 = vmatpush1.bf16.msra.mxu0 0
        %1031 = vmatprep.subr.bf16.mxu0 0
        %1032 = vmatpush1.bf16.msra.mxu0 0
        %1033 = vmatprep.subr.bf16.mxu0 0
        %1034 = vmatpush1.bf16.msra.mxu0 0
        %1035 = vmatprep.subr.bf16.mxu0 0
        %1036 = vmatpush1.bf16.msra.mxu0 0
        %1037 = vmatprep.subr.bf16.mxu0 0
        %1038 = vmatpush1.bf16.msra.mxu0 %v859
        %1039 = vmatprep.subr.bf16.mxu0 0
        %1040 = vmatpush1.bf16.msra.mxu0 %v858
        %1041 = vmatprep.subr.bf16.mxu0 0
        %1042 = vmatpush2.bf16.msra.mxu0 0
        %1043 = vmatprep.subr.bf16.mxu0 0
        %1044 = vmatpush2.bf16.msra.mxu0 0
        %1045 = vmatprep.subr.bf16.mxu0 0
        %1046 = vmatpush2.bf16.msra.mxu0 0
        %1047 = vmatprep.subr.bf16.mxu0 0
        %1048 = vmatpush2.bf16.msra.mxu0 0
        %1049 = vmatprep.subr.bf16.mxu0 0
        %1050 = vmatpush2.bf16.msra.mxu0 0
        %1051 = vmatprep.subr.bf16.mxu0 0
        %1052 = vmatpush2.bf16.msra.mxu0 0
        %1053 = vmatprep.subr.bf16.mxu0 0
        %1054 = vmatpush2.bf16.msra.mxu0 0
        %1055 = vmatprep.subr.bf16.mxu0 0
        %1056 = vmatpush2.bf16.msra.mxu0 0
        %1057 = vmatprep.mubr.bf16.mxu0 0
        %1058 = vmatmul.mubr.bf16.gmra.mxu0 %v903
        %v1059 = vpop.f32.mrf.mxu0
        %v1060 = vadd.f32 %v685, %v1059
        %v1061 = vpop.f32.mrf.mxu0
        %v1062 = vpop.f32.mrf.mxu0
        %v1063 = vpop.f32.mrf.mxu0
        %1064 = vdwg.mxu0
        %v1065 = vpack.c.bf16 %v741, %v741
        %v1066 = vpack.c.bf16 %v793, %v793
        %v1067 = vpack.c.bf16 %v845, %v845
        %v1068 = vpack.c.bf16 %v897, %v897
        %v1069 = vpack.c.bf16 %v940, %v940
        %v1070 = vpack.c.bf16 %v980, %v980
        %v1071 = vpack.c.bf16 %v1020, %v1020
        %v1072 = vpack.c.bf16 %v1060, %v1060
        %v1073 = vld [vmem:[%s1] sm:$0x3]
        %v1076 = vunpack.c.l.s4 1966171168
        %v1077 = vunpack.c.0.s8 %v1076
        %v1078 = vlaneseq
        %v1079 = vshrl.u32 %v1078, 7
        %v1080 = vsub.s32 %v1077, %v1079
        %v1081 = vrot.slane %v1073, %v1080
        %v1082 = vcombine.high %v1081, %v1081
        %v1084 = vunpack.c.l.s4 1966171168
        %v1085 = vunpack.c.0.s8 %v1084
        %v1086 = vlaneseq
        %v1087 = vshrl.u32 %v1086, 7
        %v1088 = vsub.s32 %v1085, %v1087
        %v1089 = vrot.slane %v1081, %v1088
        %v1091 = vunpack.c.l.s4 1966171168
        %v1092 = vunpack.c.0.s8 %v1091
        %v1093 = vlaneseq
        %v1094 = vshrl.u32 %v1093, 7
        %v1095 = vsub.s32 %v1092, %v1094
        %v1096 = vrot.slane %v1082, %v1095
        %1098 = vrot.lane.b32.xlu0 %v1065, 120
        %v1099 = vpop.permute.xlu0 %1098
        %vm1100 = vcmask 64512
        %v1102 = vsel %vm1100, %v1065, 0
        %v1105 = vsel %vm1100, %v1099, 0
        %1107 = vmatprep.subr.bf16.mxu0 0
        %1108 = vmatpush1.bf16.xpose.msra.mxu0 0
        %1109 = vmatprep.subr.bf16.mxu0 0
        %1110 = vmatpush1.bf16.xpose.msra.mxu0 0
        %1111 = vmatprep.subr.bf16.mxu0 0
        %1112 = vmatpush1.bf16.xpose.msra.mxu0 0
        %1113 = vmatprep.subr.bf16.mxu0 0
        %1114 = vmatpush1.bf16.xpose.msra.mxu0 0
        %1115 = vmatprep.subr.bf16.mxu0 0
        %1116 = vmatpush1.bf16.xpose.msra.mxu0 0
        %1117 = vmatprep.subr.bf16.mxu0 0
        %1118 = vmatpush1.bf16.xpose.msra.mxu0 0
        %1119 = vmatprep.subr.bf16.mxu0 0
        %1120 = vmatpush1.bf16.xpose.msra.mxu0 0
        %1121 = vmatprep.subr.bf16.mxu0 0
        %1122 = vmatpush1.bf16.xpose.msra.mxu0 %v1105
        %1123 = vmatprep.subr.bf16.mxu0 0
        %1124 = vmatpush2.bf16.xpose.msra.mxu0 0
        %1125 = vmatprep.subr.bf16.mxu0 0
        %1126 = vmatpush2.bf16.xpose.msra.mxu0 0
        %1127 = vmatprep.subr.bf16.mxu0 0
        %1128 = vmatpush2.bf16.xpose.msra.mxu0 0
        %1129 = vmatprep.subr.bf16.mxu0 0
        %1130 = vmatpush2.bf16.xpose.msra.mxu0 0
        %1131 = vmatprep.subr.bf16.mxu0 0
        %1132 = vmatpush2.bf16.xpose.msra.mxu0 0
        %1133 = vmatprep.subr.bf16.mxu0 0
        %1134 = vmatpush2.bf16.xpose.msra.mxu0 0
        %1135 = vmatprep.subr.bf16.mxu0 0
        %1136 = vmatpush2.bf16.xpose.msra.mxu0 0
        %1137 = vmatprep.subr.bf16.mxu0 0
        %1138 = vmatpush2.bf16.xpose.msra.mxu0 0
        %1139 = vmatprep.mubr.bf16.mxu0 0
        %1140 = vmatmul.mubr.bf16.gmra.mxu0 %v1102
        %v1141 = vpop.f32.mrf.mxu0
        %v1142 = vadd.f32 0.0, %v1141
        %v1143 = vpop.f32.mrf.mxu0
        %v1144 = vpop.f32.mrf.mxu0
        %v1145 = vpop.f32.mrf.mxu0
        %1146 = vdwg.mxu0
        %1148 = vrot.lane.b32.xlu0 %v1066, 120
        %v1149 = vpop.permute.xlu0 %1148
        %v1151 = vsel %vm1100, %v1066, 0
        %v1154 = vsel %vm1100, %v1149, 0
        %1156 = vmatprep.subr.bf16.mxu0 0
        %1157 = vmatpush1.bf16.xpose.msra.mxu0 0
        %1158 = vmatprep.subr.bf16.mxu0 0
        %1159 = vmatpush1.bf16.xpose.msra.mxu0 0
        %1160 = vmatprep.subr.bf16.mxu0 0
        %1161 = vmatpush1.bf16.xpose.msra.mxu0 0
        %1162 = vmatprep.subr.bf16.mxu0 0
        %1163 = vmatpush1.bf16.xpose.msra.mxu0 0
        %1164 = vmatprep.subr.bf16.mxu0 0
        %1165 = vmatpush1.bf16.xpose.msra.mxu0 0
        %1166 = vmatprep.subr.bf16.mxu0 0
        %1167 = vmatpush1.bf16.xpose.msra.mxu0 0
        %1168 = vmatprep.subr.bf16.mxu0 0
        %1169 = vmatpush1.bf16.xpose.msra.mxu0 0
        %1170 = vmatprep.subr.bf16.mxu0 0
        %1171 = vmatpush1.bf16.xpose.msra.mxu0 %v1154
        %1172 = vmatprep.subr.bf16.mxu0 0
        %1173 = vmatpush2.bf16.xpose.msra.mxu0 0
        %1174 = vmatprep.subr.bf16.mxu0 0
        %1175 = vmatpush2.bf16.xpose.msra.mxu0 0
        %1176 = vmatprep.subr.bf16.mxu0 0
        %1177 = vmatpush2.bf16.xpose.msra.mxu0 0
        %1178 = vmatprep.subr.bf16.mxu0 0
        %1179 = vmatpush2.bf16.xpose.msra.mxu0 0
        %1180 = vmatprep.subr.bf16.mxu0 0
        %1181 = vmatpush2.bf16.xpose.msra.mxu0 0
        %1182 = vmatprep.subr.bf16.mxu0 0
        %1183 = vmatpush2.bf16.xpose.msra.mxu0 0
        %1184 = vmatprep.subr.bf16.mxu0 0
        %1185 = vmatpush2.bf16.xpose.msra.mxu0 0
        %1186 = vmatprep.subr.bf16.mxu0 0
        %1187 = vmatpush2.bf16.xpose.msra.mxu0 0
        %1188 = vmatprep.mubr.bf16.mxu0 0
        %1189 = vmatmul.mubr.bf16.gmra.mxu0 %v1151
        %v1190 = vpop.f32.mrf.mxu0
        %v1191 = vadd.f32 0.0, %v1190
        %v1192 = vpop.f32.mrf.mxu0
        %v1193 = vpop.f32.mrf.mxu0
        %v1194 = vpop.f32.mrf.mxu0
        %1195 = vdwg.mxu0
        %1197 = vrot.lane.b32.xlu0 %v1067, 120
        %v1198 = vpop.permute.xlu0 %1197
        %v1200 = vsel %vm1100, %v1067, 0
        %v1203 = vsel %vm1100, %v1198, 0
        %1205 = vmatprep.subr.bf16.mxu0 0
        %1206 = vmatpush1.bf16.xpose.msra.mxu0 0
        %1207 = vmatprep.subr.bf16.mxu0 0
        %1208 = vmatpush1.bf16.xpose.msra.mxu0 0
        %1209 = vmatprep.subr.bf16.mxu0 0
        %1210 = vmatpush1.bf16.xpose.msra.mxu0 0
        %1211 = vmatprep.subr.bf16.mxu0 0
        %1212 = vmatpush1.bf16.xpose.msra.mxu0 0
        %1213 = vmatprep.subr.bf16.mxu0 0
        %1214 = vmatpush1.bf16.xpose.msra.mxu0 0
        %1215 = vmatprep.subr.bf16.mxu0 0
        %1216 = vmatpush1.bf16.xpose.msra.mxu0 0
        %1217 = vmatprep.subr.bf16.mxu0 0
        %1218 = vmatpush1.bf16.xpose.msra.mxu0 0
        %1219 = vmatprep.subr.bf16.mxu0 0
        %1220 = vmatpush1.bf16.xpose.msra.mxu0 %v1203
        %1221 = vmatprep.subr.bf16.mxu0 0
        %1222 = vmatpush2.bf16.xpose.msra.mxu0 0
        %1223 = vmatprep.subr.bf16.mxu0 0
        %1224 = vmatpush2.bf16.xpose.msra.mxu0 0
        %1225 = vmatprep.subr.bf16.mxu0 0
        %1226 = vmatpush2.bf16.xpose.msra.mxu0 0
        %1227 = vmatprep.subr.bf16.mxu0 0
        %1228 = vmatpush2.bf16.xpose.msra.mxu0 0
        %1229 = vmatprep.subr.bf16.mxu0 0
        %1230 = vmatpush2.bf16.xpose.msra.mxu0 0
        %1231 = vmatprep.subr.bf16.mxu0 0
        %1232 = vmatpush2.bf16.xpose.msra.mxu0 0
        %1233 = vmatprep.subr.bf16.mxu0 0
        %1234 = vmatpush2.bf16.xpose.msra.mxu0 0
        %1235 = vmatprep.subr.bf16.mxu0 0
        %1236 = vmatpush2.bf16.xpose.msra.mxu0 0
        %1237 = vmatprep.mubr.bf16.mxu0 0
        %1238 = vmatmul.mubr.bf16.gmra.mxu0 %v1200
        %v1239 = vpop.f32.mrf.mxu0
        %v1240 = vadd.f32 0.0, %v1239
        %v1241 = vpop.f32.mrf.mxu0
        %v1242 = vpop.f32.mrf.mxu0
        %v1243 = vpop.f32.mrf.mxu0
        %1244 = vdwg.mxu0
        %1246 = vrot.lane.b32.xlu0 %v1068, 120
        %v1247 = vpop.permute.xlu0 %1246
        %v1249 = vsel %vm1100, %v1068, 0
        %v1252 = vsel %vm1100, %v1247, 0
        %1254 = vmatprep.subr.bf16.mxu0 0
        %1255 = vmatpush1.bf16.xpose.msra.mxu0 0
        %1256 = vmatprep.subr.bf16.mxu0 0
        %1257 = vmatpush1.bf16.xpose.msra.mxu0 0
        %1258 = vmatprep.subr.bf16.mxu0 0
        %1259 = vmatpush1.bf16.xpose.msra.mxu0 0
        %1260 = vmatprep.subr.bf16.mxu0 0
        %1261 = vmatpush1.bf16.xpose.msra.mxu0 0
        %1262 = vmatprep.subr.bf16.mxu0 0
        %1263 = vmatpush1.bf16.xpose.msra.mxu0 0
        %1264 = vmatprep.subr.bf16.mxu0 0
        %1265 = vmatpush1.bf16.xpose.msra.mxu0 0
        %1266 = vmatprep.subr.bf16.mxu0 0
        %1267 = vmatpush1.bf16.xpose.msra.mxu0 0
        %1268 = vmatprep.subr.bf16.mxu0 0
        %1269 = vmatpush1.bf16.xpose.msra.mxu0 %v1252
        %1270 = vmatprep.subr.bf16.mxu0 0
        %1271 = vmatpush2.bf16.xpose.msra.mxu0 0
        %1272 = vmatprep.subr.bf16.mxu0 0
        %1273 = vmatpush2.bf16.xpose.msra.mxu0 0
        %1274 = vmatprep.subr.bf16.mxu0 0
        %1275 = vmatpush2.bf16.xpose.msra.mxu0 0
        %1276 = vmatprep.subr.bf16.mxu0 0
        %1277 = vmatpush2.bf16.xpose.msra.mxu0 0
        %1278 = vmatprep.subr.bf16.mxu0 0
        %1279 = vmatpush2.bf16.xpose.msra.mxu0 0
        %1280 = vmatprep.subr.bf16.mxu0 0
        %1281 = vmatpush2.bf16.xpose.msra.mxu0 0
        %1282 = vmatprep.subr.bf16.mxu0 0
        %1283 = vmatpush2.bf16.xpose.msra.mxu0 0
        %1284 = vmatprep.subr.bf16.mxu0 0
        %1285 = vmatpush2.bf16.xpose.msra.mxu0 0
        %1286 = vmatprep.mubr.bf16.mxu0 0
        %1287 = vmatmul.mubr.bf16.gmra.mxu0 %v1249
        %v1288 = vpop.f32.mrf.mxu0
        %v1289 = vadd.f32 0.0, %v1288
        %v1290 = vpop.f32.mrf.mxu0
        %v1291 = vpop.f32.mrf.mxu0
        %v1292 = vpop.f32.mrf.mxu0
        %1293 = vdwg.mxu0
        %1295 = vrot.lane.b32.xlu0 %v1069, 120
        %v1296 = vpop.permute.xlu0 %1295
        %v1298 = vsel %vm1100, %v1069, 0
        %v1301 = vsel %vm1100, %v1296, 0
        %1303 = vmatprep.subr.bf16.mxu0 0
        %1304 = vmatpush1.bf16.xpose.msra.mxu0 0
        %1305 = vmatprep.subr.bf16.mxu0 0
        %1306 = vmatpush1.bf16.xpose.msra.mxu0 0
        %1307 = vmatprep.subr.bf16.mxu0 0
        %1308 = vmatpush1.bf16.xpose.msra.mxu0 0
        %1309 = vmatprep.subr.bf16.mxu0 0
        %1310 = vmatpush1.bf16.xpose.msra.mxu0 0
        %1311 = vmatprep.subr.bf16.mxu0 0
        %1312 = vmatpush1.bf16.xpose.msra.mxu0 0
        %1313 = vmatprep.subr.bf16.mxu0 0
        %1314 = vmatpush1.bf16.xpose.msra.mxu0 0
        %1315 = vmatprep.subr.bf16.mxu0 0
        %1316 = vmatpush1.bf16.xpose.msra.mxu0 0
        %1317 = vmatprep.subr.bf16.mxu0 0
        %1318 = vmatpush1.bf16.xpose.msra.mxu0 %v1301
        %1319 = vmatprep.subr.bf16.mxu0 0
        %1320 = vmatpush2.bf16.xpose.msra.mxu0 0
        %1321 = vmatprep.subr.bf16.mxu0 0
        %1322 = vmatpush2.bf16.xpose.msra.mxu0 0
        %1323 = vmatprep.subr.bf16.mxu0 0
        %1324 = vmatpush2.bf16.xpose.msra.mxu0 0
        %1325 = vmatprep.subr.bf16.mxu0 0
        %1326 = vmatpush2.bf16.xpose.msra.mxu0 0
        %1327 = vmatprep.subr.bf16.mxu0 0
        %1328 = vmatpush2.bf16.xpose.msra.mxu0 0
        %1329 = vmatprep.subr.bf16.mxu0 0
        %1330 = vmatpush2.bf16.xpose.msra.mxu0 0
        %1331 = vmatprep.subr.bf16.mxu0 0
        %1332 = vmatpush2.bf16.xpose.msra.mxu0 0
        %1333 = vmatprep.subr.bf16.mxu0 0
        %1334 = vmatpush2.bf16.xpose.msra.mxu0 0
        %1335 = vmatprep.mubr.bf16.mxu0 0
        %1336 = vmatmul.mubr.bf16.gmra.mxu0 %v1298
        %v1337 = vpop.f32.mrf.mxu0
        %v1338 = vadd.f32 0.0, %v1337
        %v1339 = vpop.f32.mrf.mxu0
        %v1340 = vpop.f32.mrf.mxu0
        %v1341 = vpop.f32.mrf.mxu0
        %1342 = vdwg.mxu0
        %1344 = vrot.lane.b32.xlu0 %v1070, 120
        %v1345 = vpop.permute.xlu0 %1344
        %v1347 = vsel %vm1100, %v1070, 0
        %v1350 = vsel %vm1100, %v1345, 0
        %1352 = vmatprep.subr.bf16.mxu0 0
        %1353 = vmatpush1.bf16.xpose.msra.mxu0 0
        %1354 = vmatprep.subr.bf16.mxu0 0
        %1355 = vmatpush1.bf16.xpose.msra.mxu0 0
        %1356 = vmatprep.subr.bf16.mxu0 0
        %1357 = vmatpush1.bf16.xpose.msra.mxu0 0
        %1358 = vmatprep.subr.bf16.mxu0 0
        %1359 = vmatpush1.bf16.xpose.msra.mxu0 0
        %1360 = vmatprep.subr.bf16.mxu0 0
        %1361 = vmatpush1.bf16.xpose.msra.mxu0 0
        %1362 = vmatprep.subr.bf16.mxu0 0
        %1363 = vmatpush1.bf16.xpose.msra.mxu0 0
        %1364 = vmatprep.subr.bf16.mxu0 0
        %1365 = vmatpush1.bf16.xpose.msra.mxu0 0
        %1366 = vmatprep.subr.bf16.mxu0 0
        %1367 = vmatpush1.bf16.xpose.msra.mxu0 %v1350
        %1368 = vmatprep.subr.bf16.mxu0 0
        %1369 = vmatpush2.bf16.xpose.msra.mxu0 0
        %1370 = vmatprep.subr.bf16.mxu0 0
        %1371 = vmatpush2.bf16.xpose.msra.mxu0 0
        %1372 = vmatprep.subr.bf16.mxu0 0
        %1373 = vmatpush2.bf16.xpose.msra.mxu0 0
        %1374 = vmatprep.subr.bf16.mxu0 0
        %1375 = vmatpush2.bf16.xpose.msra.mxu0 0
        %1376 = vmatprep.subr.bf16.mxu0 0
        %1377 = vmatpush2.bf16.xpose.msra.mxu0 0
        %1378 = vmatprep.subr.bf16.mxu0 0
        %1379 = vmatpush2.bf16.xpose.msra.mxu0 0
        %1380 = vmatprep.subr.bf16.mxu0 0
        %1381 = vmatpush2.bf16.xpose.msra.mxu0 0
        %1382 = vmatprep.subr.bf16.mxu0 0
        %1383 = vmatpush2.bf16.xpose.msra.mxu0 0
        %1384 = vmatprep.mubr.bf16.mxu0 0
        %1385 = vmatmul.mubr.bf16.gmra.mxu0 %v1347
        %v1386 = vpop.f32.mrf.mxu0
        %v1387 = vadd.f32 0.0, %v1386
        %v1388 = vpop.f32.mrf.mxu0
        %v1389 = vpop.f32.mrf.mxu0
        %v1390 = vpop.f32.mrf.mxu0
        %1391 = vdwg.mxu0
        %1393 = vrot.lane.b32.xlu0 %v1071, 120
        %v1394 = vpop.permute.xlu0 %1393
        %v1396 = vsel %vm1100, %v1071, 0
        %v1399 = vsel %vm1100, %v1394, 0
        %1401 = vmatprep.subr.bf16.mxu0 0
        %1402 = vmatpush1.bf16.xpose.msra.mxu0 0
        %1403 = vmatprep.subr.bf16.mxu0 0
        %1404 = vmatpush1.bf16.xpose.msra.mxu0 0
        %1405 = vmatprep.subr.bf16.mxu0 0
        %1406 = vmatpush1.bf16.xpose.msra.mxu0 0
        %1407 = vmatprep.subr.bf16.mxu0 0
        %1408 = vmatpush1.bf16.xpose.msra.mxu0 0
        %1409 = vmatprep.subr.bf16.mxu0 0
        %1410 = vmatpush1.bf16.xpose.msra.mxu0 0
        %1411 = vmatprep.subr.bf16.mxu0 0
        %1412 = vmatpush1.bf16.xpose.msra.mxu0 0
        %1413 = vmatprep.subr.bf16.mxu0 0
        %1414 = vmatpush1.bf16.xpose.msra.mxu0 0
        %1415 = vmatprep.subr.bf16.mxu0 0
        %1416 = vmatpush1.bf16.xpose.msra.mxu0 %v1399
        %1417 = vmatprep.subr.bf16.mxu0 0
        %1418 = vmatpush2.bf16.xpose.msra.mxu0 0
        %1419 = vmatprep.subr.bf16.mxu0 0
        %1420 = vmatpush2.bf16.xpose.msra.mxu0 0
        %1421 = vmatprep.subr.bf16.mxu0 0
        %1422 = vmatpush2.bf16.xpose.msra.mxu0 0
        %1423 = vmatprep.subr.bf16.mxu0 0
        %1424 = vmatpush2.bf16.xpose.msra.mxu0 0
        %1425 = vmatprep.subr.bf16.mxu0 0
        %1426 = vmatpush2.bf16.xpose.msra.mxu0 0
        %1427 = vmatprep.subr.bf16.mxu0 0
        %1428 = vmatpush2.bf16.xpose.msra.mxu0 0
        %1429 = vmatprep.subr.bf16.mxu0 0
        %1430 = vmatpush2.bf16.xpose.msra.mxu0 0
        %1431 = vmatprep.subr.bf16.mxu0 0
        %1432 = vmatpush2.bf16.xpose.msra.mxu0 0
        %1433 = vmatprep.mubr.bf16.mxu0 0
        %1434 = vmatmul.mubr.bf16.gmra.mxu0 %v1396
        %v1435 = vpop.f32.mrf.mxu0
        %v1436 = vadd.f32 0.0, %v1435
        %v1437 = vpop.f32.mrf.mxu0
        %v1438 = vpop.f32.mrf.mxu0
        %v1439 = vpop.f32.mrf.mxu0
        %1440 = vdwg.mxu0
        %1442 = vrot.lane.b32.xlu0 %v1072, 120
        %v1443 = vpop.permute.xlu0 %1442
        %v1445 = vsel %vm1100, %v1072, 0
        %v1448 = vsel %vm1100, %v1443, 0
        %1450 = vmatprep.subr.bf16.mxu0 0
        %1451 = vmatpush1.bf16.xpose.msra.mxu0 0
        %1452 = vmatprep.subr.bf16.mxu0 0
        %1453 = vmatpush1.bf16.xpose.msra.mxu0 0
        %1454 = vmatprep.subr.bf16.mxu0 0
        %1455 = vmatpush1.bf16.xpose.msra.mxu0 0
        %1456 = vmatprep.subr.bf16.mxu0 0
        %1457 = vmatpush1.bf16.xpose.msra.mxu0 0
        %1458 = vmatprep.subr.bf16.mxu0 0
        %1459 = vmatpush1.bf16.xpose.msra.mxu0 0
        %1460 = vmatprep.subr.bf16.mxu0 0
        %1461 = vmatpush1.bf16.xpose.msra.mxu0 0
        %1462 = vmatprep.subr.bf16.mxu0 0
        %1463 = vmatpush1.bf16.xpose.msra.mxu0 0
        %1464 = vmatprep.subr.bf16.mxu0 0
        %1465 = vmatpush1.bf16.xpose.msra.mxu0 %v1448
        %1466 = vmatprep.subr.bf16.mxu0 0
        %1467 = vmatpush2.bf16.xpose.msra.mxu0 0
        %1468 = vmatprep.subr.bf16.mxu0 0
        %1469 = vmatpush2.bf16.xpose.msra.mxu0 0
        %1470 = vmatprep.subr.bf16.mxu0 0
        %1471 = vmatpush2.bf16.xpose.msra.mxu0 0
        %1472 = vmatprep.subr.bf16.mxu0 0
        %1473 = vmatpush2.bf16.xpose.msra.mxu0 0
        %1474 = vmatprep.subr.bf16.mxu0 0
        %1475 = vmatpush2.bf16.xpose.msra.mxu0 0
        %1476 = vmatprep.subr.bf16.mxu0 0
        %1477 = vmatpush2.bf16.xpose.msra.mxu0 0
        %1478 = vmatprep.subr.bf16.mxu0 0
        %1479 = vmatpush2.bf16.xpose.msra.mxu0 0
        %1480 = vmatprep.subr.bf16.mxu0 0
        %1481 = vmatpush2.bf16.xpose.msra.mxu0 0
        %1482 = vmatprep.mubr.bf16.mxu0 0
        %1483 = vmatmul.mubr.bf16.gmra.mxu0 %v1445
        %v1484 = vpop.f32.mrf.mxu0
        %v1485 = vadd.f32 0.0, %v1484
        %v1486 = vpop.f32.mrf.mxu0
        %v1487 = vpop.f32.mrf.mxu0
        %v1488 = vpop.f32.mrf.mxu0
        %1489 = vdwg.mxu0
        %v1490 = vmul.f32 %v1142, 0.35355338
        %v1491 = vmul.f32 %v1191, 0.35355338
        %v1492 = vmul.f32 %v1240, 0.35355338
        %v1493 = vmul.f32 %v1289, 0.35355338
        %v1494 = vmul.f32 %v1338, 0.35355338
        %v1495 = vmul.f32 %v1387, 0.35355338
        %v1496 = vmul.f32 %v1436, 0.35355338
        %v1497 = vmul.f32 %v1485, 0.35355338
        %v1498 = vlaneseq
        %v1499 = vshrl.u32 %v1498, 7
        %v1500 = vsub.s32 0, %v1499
        %v1501 = vrot.slane %v1089, %v1500
        %v1502 = vlaneseq
        %v1503 = vshrl.u32 %v1502, 7
        %v1504 = vsub.s32 0, %v1503
        %v1505 = vrot.slane %v1096, %v1504
        %v1508 = vadd.f32 %v1490, %v1501
        %v1509 = vadd.f32 %v1491, %v1501
        %v1510 = vadd.f32 %v1492, %v1501
        %v1511 = vadd.f32 %v1493, %v1501
        %v1512 = vadd.f32 %v1494, %v1505
        %v1513 = vadd.f32 %v1495, %v1505
        %v1514 = vadd.f32 %v1496, %v1505
        %v1515 = vadd.f32 %v1497, %v1505
        %v1516 = vsel %vm1100, %v1508, -inf
        %1517 = vmax.xlane.f32.xlu0 %v1516
        %v1518 = vpop.xlane.xlu0 %1517
        %v1519 = vsel %vm1100, %v1509, -inf
        %1520 = vmax.xlane.f32.xlu0 %v1519
        %v1521 = vpop.xlane.xlu0 %1520
        %v1522 = vsel %vm1100, %v1510, -inf
        %1523 = vmax.xlane.f32.xlu0 %v1522
        %v1524 = vpop.xlane.xlu0 %1523
        %v1525 = vsel %vm1100, %v1511, -inf
        %1526 = vmax.xlane.f32.xlu0 %v1525
        %v1527 = vpop.xlane.xlu0 %1526
        %v1528 = vsel %vm1100, %v1512, -inf
        %1529 = vmax.xlane.f32.xlu0 %v1528
        %v1530 = vpop.xlane.xlu0 %1529
        %v1531 = vsel %vm1100, %v1513, -inf
        %1532 = vmax.xlane.f32.xlu0 %v1531
        %v1533 = vpop.xlane.xlu0 %1532
        %v1534 = vsel %vm1100, %v1514, -inf
        %1535 = vmax.xlane.f32.xlu0 %v1534
        %v1536 = vpop.xlane.xlu0 %1535
        %v1537 = vsel %vm1100, %v1515, -inf
        %1538 = vmax.xlane.f32.xlu0 %v1537
        %v1539 = vpop.xlane.xlu0 %1538
        %v1540 = vsub.f32 %v1508, %v1518
        %v1541 = vsub.f32 %v1509, %v1521
        %v1542 = vsub.f32 %v1510, %v1524
        %v1543 = vsub.f32 %v1511, %v1527
        %v1544 = vsub.f32 %v1512, %v1530
        %v1545 = vsub.f32 %v1513, %v1533
        %v1546 = vsub.f32 %v1514, %v1536
        %v1547 = vsub.f32 %v1515, %v1539
        %v1548 = vmul.f32 %v1540, 1.442695
        %v1549 = vpow.pop %v1548
        %v1550 = vmul.f32 %v1541, 1.442695
        %v1551 = vpow.pop %v1550
        %v1552 = vmul.f32 %v1542, 1.442695
        %v1553 = vpow.pop %v1552
        %v1554 = vmul.f32 %v1543, 1.442695
        %v1555 = vpow.pop %v1554
        %v1556 = vmul.f32 %v1544, 1.442695
        %v1557 = vpow.pop %v1556
        %v1558 = vmul.f32 %v1545, 1.442695
        %v1559 = vpow.pop %v1558
        %v1560 = vmul.f32 %v1546, 1.442695
        %v1561 = vpow.pop %v1560
        %v1562 = vmul.f32 %v1547, 1.442695
        %v1563 = vpow.pop %v1562
        %v1564 = vsel %vm1100, %v1549, 0.0
        %1565 = vadd.xlane.f32.xlu0 %v1564
        %v1566 = vpop.xlane.xlu0 %1565
        %v1567 = vsel %vm1100, %v1551, 0.0
        %1568 = vadd.xlane.f32.xlu0 %v1567
        %v1569 = vpop.xlane.xlu0 %1568
        %v1570 = vsel %vm1100, %v1553, 0.0
        %1571 = vadd.xlane.f32.xlu0 %v1570
        %v1572 = vpop.xlane.xlu0 %1571
        %v1573 = vsel %vm1100, %v1555, 0.0
        %1574 = vadd.xlane.f32.xlu0 %v1573
        %v1575 = vpop.xlane.xlu0 %1574
        %v1576 = vsel %vm1100, %v1557, 0.0
        %1577 = vadd.xlane.f32.xlu0 %v1576
        %v1578 = vpop.xlane.xlu0 %1577
        %v1579 = vsel %vm1100, %v1559, 0.0
        %1580 = vadd.xlane.f32.xlu0 %v1579
        %v1581 = vpop.xlane.xlu0 %1580
        %v1582 = vsel %vm1100, %v1561, 0.0
        %1583 = vadd.xlane.f32.xlu0 %v1582
        %v1584 = vpop.xlane.xlu0 %1583
        %v1585 = vsel %vm1100, %v1563, 0.0
        %1586 = vadd.xlane.f32.xlu0 %v1585
        %v1587 = vpop.xlane.xlu0 %1586
        %v1588 = vrcp.pop %v1566
        %v1589 = vrcp.pop %v1569
        %v1590 = vrcp.pop %v1572
        %v1591 = vrcp.pop %v1575
        %v1592 = vrcp.pop %v1578
        %v1593 = vrcp.pop %v1581
        %v1594 = vrcp.pop %v1584
        %v1595 = vrcp.pop %v1587
        %v1596 = vmul.f32 %v1549, %v1588
        %v1597 = vmul.f32 %v1551, %v1589
        %v1598 = vmul.f32 %v1553, %v1590
        %v1599 = vmul.f32 %v1555, %v1591
        %v1600 = vmul.f32 %v1557, %v1592
        %v1601 = vmul.f32 %v1559, %v1593
        %v1602 = vmul.f32 %v1561, %v1594
        %v1603 = vmul.f32 %v1563, %v1595
        %v1604 = vpack.c.bf16 %v1596, %v1596
        %v1605 = vpack.c.bf16 %v1597, %v1597
        %v1606 = vpack.c.bf16 %v1598, %v1598
        %v1607 = vpack.c.bf16 %v1599, %v1599
        %v1608 = vpack.c.bf16 %v1600, %v1600
        %v1609 = vpack.c.bf16 %v1601, %v1601
        %v1610 = vpack.c.bf16 %v1602, %v1602
        %v1611 = vpack.c.bf16 %v1603, %v1603
        %1612 = vrot.lane.b32.xlu0 %v1065, 112
        %v1613 = vpop.permute.xlu0 %1612
        %v1615 = vsel %vm1100, %v1604, 0
        %vm1617 = vcmask 1043456
        %v1619 = vsel %vm1617, %v1613, 0
        %1621 = vmatprep.subr.bf16.mxu0 0
        %1622 = vmatpush1.bf16.msra.mxu0 0
        %1623 = vmatprep.subr.bf16.mxu0 0
        %1624 = vmatpush1.bf16.msra.mxu0 0
        %1625 = vmatprep.subr.bf16.mxu0 0
        %1626 = vmatpush1.bf16.msra.mxu0 0
        %1627 = vmatprep.subr.bf16.mxu0 0
        %1628 = vmatpush1.bf16.msra.mxu0 0
        %1629 = vmatprep.subr.bf16.mxu0 0
        %1630 = vmatpush1.bf16.msra.mxu0 0
        %1631 = vmatprep.subr.bf16.mxu0 0
        %1632 = vmatpush1.bf16.msra.mxu0 0
        %1633 = vmatprep.subr.bf16.mxu0 0
        %1634 = vmatpush1.bf16.msra.mxu0 0
        %1635 = vmatprep.subr.bf16.mxu0 0
        %1636 = vmatpush1.bf16.msra.mxu0 %v1619
        %1637 = vmatprep.subr.bf16.mxu0 0
        %1638 = vmatpush2.bf16.msra.mxu0 0
        %1639 = vmatprep.subr.bf16.mxu0 0
        %1640 = vmatpush2.bf16.msra.mxu0 0
        %1641 = vmatprep.subr.bf16.mxu0 0
        %1642 = vmatpush2.bf16.msra.mxu0 0
        %1643 = vmatprep.subr.bf16.mxu0 0
        %1644 = vmatpush2.bf16.msra.mxu0 0
        %1645 = vmatprep.subr.bf16.mxu0 0
        %1646 = vmatpush2.bf16.msra.mxu0 0
        %1647 = vmatprep.subr.bf16.mxu0 0
        %1648 = vmatpush2.bf16.msra.mxu0 0
        %1649 = vmatprep.subr.bf16.mxu0 0
        %1650 = vmatpush2.bf16.msra.mxu0 0
        %1651 = vmatprep.subr.bf16.mxu0 0
        %1652 = vmatpush2.bf16.msra.mxu0 0
        %1653 = vmatprep.mubr.bf16.mxu0 0
        %1654 = vmatmul.mubr.bf16.gmra.mxu0 %v1615
        %v1655 = vpop.f32.mrf.mxu0
        %v1656 = vadd.f32 0.0, %v1655
        %v1657 = vpop.f32.mrf.mxu0
        %v1658 = vpop.f32.mrf.mxu0
        %v1659 = vpop.f32.mrf.mxu0
        %1660 = vdwg.mxu0
        %1661 = vrot.lane.b32.xlu0 %v1066, 112
        %v1662 = vpop.permute.xlu0 %1661
        %v1664 = vsel %vm1100, %v1605, 0
        %v1667 = vsel %vm1617, %v1662, 0
        %1669 = vmatprep.subr.bf16.mxu0 0
        %1670 = vmatpush1.bf16.msra.mxu0 0
        %1671 = vmatprep.subr.bf16.mxu0 0
        %1672 = vmatpush1.bf16.msra.mxu0 0
        %1673 = vmatprep.subr.bf16.mxu0 0
        %1674 = vmatpush1.bf16.msra.mxu0 0
        %1675 = vmatprep.subr.bf16.mxu0 0
        %1676 = vmatpush1.bf16.msra.mxu0 0
        %1677 = vmatprep.subr.bf16.mxu0 0
        %1678 = vmatpush1.bf16.msra.mxu0 0
        %1679 = vmatprep.subr.bf16.mxu0 0
        %1680 = vmatpush1.bf16.msra.mxu0 0
        %1681 = vmatprep.subr.bf16.mxu0 0
        %1682 = vmatpush1.bf16.msra.mxu0 0
        %1683 = vmatprep.subr.bf16.mxu0 0
        %1684 = vmatpush1.bf16.msra.mxu0 %v1667
        %1685 = vmatprep.subr.bf16.mxu0 0
        %1686 = vmatpush2.bf16.msra.mxu0 0
        %1687 = vmatprep.subr.bf16.mxu0 0
        %1688 = vmatpush2.bf16.msra.mxu0 0
        %1689 = vmatprep.subr.bf16.mxu0 0
        %1690 = vmatpush2.bf16.msra.mxu0 0
        %1691 = vmatprep.subr.bf16.mxu0 0
        %1692 = vmatpush2.bf16.msra.mxu0 0
        %1693 = vmatprep.subr.bf16.mxu0 0
        %1694 = vmatpush2.bf16.msra.mxu0 0
        %1695 = vmatprep.subr.bf16.mxu0 0
        %1696 = vmatpush2.bf16.msra.mxu0 0
        %1697 = vmatprep.subr.bf16.mxu0 0
        %1698 = vmatpush2.bf16.msra.mxu0 0
        %1699 = vmatprep.subr.bf16.mxu0 0
        %1700 = vmatpush2.bf16.msra.mxu0 0
        %1701 = vmatprep.mubr.bf16.mxu0 0
        %1702 = vmatmul.mubr.bf16.gmra.mxu0 %v1664
        %v1703 = vpop.f32.mrf.mxu0
        %v1704 = vadd.f32 0.0, %v1703
        %v1705 = vpop.f32.mrf.mxu0
        %v1706 = vpop.f32.mrf.mxu0
        %v1707 = vpop.f32.mrf.mxu0
        %1708 = vdwg.mxu0
        %1709 = vrot.lane.b32.xlu0 %v1067, 112
        %v1710 = vpop.permute.xlu0 %1709
        %v1712 = vsel %vm1100, %v1606, 0
        %v1715 = vsel %vm1617, %v1710, 0
        %1717 = vmatprep.subr.bf16.mxu0 0
        %1718 = vmatpush1.bf16.msra.mxu0 0
        %1719 = vmatprep.subr.bf16.mxu0 0
        %1720 = vmatpush1.bf16.msra.mxu0 0
        %1721 = vmatprep.subr.bf16.mxu0 0
        %1722 = vmatpush1.bf16.msra.mxu0 0
        %1723 = vmatprep.subr.bf16.mxu0 0
        %1724 = vmatpush1.bf16.msra.mxu0 0
        %1725 = vmatprep.subr.bf16.mxu0 0
        %1726 = vmatpush1.bf16.msra.mxu0 0
        %1727 = vmatprep.subr.bf16.mxu0 0
        %1728 = vmatpush1.bf16.msra.mxu0 0
        %1729 = vmatprep.subr.bf16.mxu0 0
        %1730 = vmatpush1.bf16.msra.mxu0 0
        %1731 = vmatprep.subr.bf16.mxu0 0
        %1732 = vmatpush1.bf16.msra.mxu0 %v1715
        %1733 = vmatprep.subr.bf16.mxu0 0
        %1734 = vmatpush2.bf16.msra.mxu0 0
        %1735 = vmatprep.subr.bf16.mxu0 0
        %1736 = vmatpush2.bf16.msra.mxu0 0
        %1737 = vmatprep.subr.bf16.mxu0 0
        %1738 = vmatpush2.bf16.msra.mxu0 0
        %1739 = vmatprep.subr.bf16.mxu0 0
        %1740 = vmatpush2.bf16.msra.mxu0 0
        %1741 = vmatprep.subr.bf16.mxu0 0
        %1742 = vmatpush2.bf16.msra.mxu0 0
        %1743 = vmatprep.subr.bf16.mxu0 0
        %1744 = vmatpush2.bf16.msra.mxu0 0
        %1745 = vmatprep.subr.bf16.mxu0 0
        %1746 = vmatpush2.bf16.msra.mxu0 0
        %1747 = vmatprep.subr.bf16.mxu0 0
        %1748 = vmatpush2.bf16.msra.mxu0 0
        %1749 = vmatprep.mubr.bf16.mxu0 0
        %1750 = vmatmul.mubr.bf16.gmra.mxu0 %v1712
        %v1751 = vpop.f32.mrf.mxu0
        %v1752 = vadd.f32 0.0, %v1751
        %v1753 = vpop.f32.mrf.mxu0
        %v1754 = vpop.f32.mrf.mxu0
        %v1755 = vpop.f32.mrf.mxu0
        %1756 = vdwg.mxu0
        %1757 = vrot.lane.b32.xlu0 %v1068, 112
        %v1758 = vpop.permute.xlu0 %1757
        %v1760 = vsel %vm1100, %v1607, 0
        %v1763 = vsel %vm1617, %v1758, 0
        %1765 = vmatprep.subr.bf16.mxu0 0
        %1766 = vmatpush1.bf16.msra.mxu0 0
        %1767 = vmatprep.subr.bf16.mxu0 0
        %1768 = vmatpush1.bf16.msra.mxu0 0
        %1769 = vmatprep.subr.bf16.mxu0 0
        %1770 = vmatpush1.bf16.msra.mxu0 0
        %1771 = vmatprep.subr.bf16.mxu0 0
        %1772 = vmatpush1.bf16.msra.mxu0 0
        %1773 = vmatprep.subr.bf16.mxu0 0
        %1774 = vmatpush1.bf16.msra.mxu0 0
        %1775 = vmatprep.subr.bf16.mxu0 0
        %1776 = vmatpush1.bf16.msra.mxu0 0
        %1777 = vmatprep.subr.bf16.mxu0 0
        %1778 = vmatpush1.bf16.msra.mxu0 0
        %1779 = vmatprep.subr.bf16.mxu0 0
        %1780 = vmatpush1.bf16.msra.mxu0 %v1763
        %1781 = vmatprep.subr.bf16.mxu0 0
        %1782 = vmatpush2.bf16.msra.mxu0 0
        %1783 = vmatprep.subr.bf16.mxu0 0
        %1784 = vmatpush2.bf16.msra.mxu0 0
        %1785 = vmatprep.subr.bf16.mxu0 0
        %1786 = vmatpush2.bf16.msra.mxu0 0
        %1787 = vmatprep.subr.bf16.mxu0 0
        %1788 = vmatpush2.bf16.msra.mxu0 0
        %1789 = vmatprep.subr.bf16.mxu0 0
        %1790 = vmatpush2.bf16.msra.mxu0 0
        %1791 = vmatprep.subr.bf16.mxu0 0
        %1792 = vmatpush2.bf16.msra.mxu0 0
        %1793 = vmatprep.subr.bf16.mxu0 0
        %1794 = vmatpush2.bf16.msra.mxu0 0
        %1795 = vmatprep.subr.bf16.mxu0 0
        %1796 = vmatpush2.bf16.msra.mxu0 0
        %1797 = vmatprep.mubr.bf16.mxu0 0
        %1798 = vmatmul.mubr.bf16.gmra.mxu0 %v1760
        %v1799 = vpop.f32.mrf.mxu0
        %v1800 = vadd.f32 0.0, %v1799
        %v1801 = vpop.f32.mrf.mxu0
        %v1802 = vpop.f32.mrf.mxu0
        %v1803 = vpop.f32.mrf.mxu0
        %1804 = vdwg.mxu0
        %1805 = vrot.lane.b32.xlu0 %v1069, 112
        %v1806 = vpop.permute.xlu0 %1805
        %v1808 = vsel %vm1100, %v1608, 0
        %v1811 = vsel %vm1617, %v1806, 0
        %1813 = vmatprep.subr.bf16.mxu0 0
        %1814 = vmatpush1.bf16.msra.mxu0 0
        %1815 = vmatprep.subr.bf16.mxu0 0
        %1816 = vmatpush1.bf16.msra.mxu0 0
        %1817 = vmatprep.subr.bf16.mxu0 0
        %1818 = vmatpush1.bf16.msra.mxu0 0
        %1819 = vmatprep.subr.bf16.mxu0 0
        %1820 = vmatpush1.bf16.msra.mxu0 0
        %1821 = vmatprep.subr.bf16.mxu0 0
        %1822 = vmatpush1.bf16.msra.mxu0 0
        %1823 = vmatprep.subr.bf16.mxu0 0
        %1824 = vmatpush1.bf16.msra.mxu0 0
        %1825 = vmatprep.subr.bf16.mxu0 0
        %1826 = vmatpush1.bf16.msra.mxu0 0
        %1827 = vmatprep.subr.bf16.mxu0 0
        %1828 = vmatpush1.bf16.msra.mxu0 %v1811
        %1829 = vmatprep.subr.bf16.mxu0 0
        %1830 = vmatpush2.bf16.msra.mxu0 0
        %1831 = vmatprep.subr.bf16.mxu0 0
        %1832 = vmatpush2.bf16.msra.mxu0 0
        %1833 = vmatprep.subr.bf16.mxu0 0
        %1834 = vmatpush2.bf16.msra.mxu0 0
        %1835 = vmatprep.subr.bf16.mxu0 0
        %1836 = vmatpush2.bf16.msra.mxu0 0
        %1837 = vmatprep.subr.bf16.mxu0 0
        %1838 = vmatpush2.bf16.msra.mxu0 0
        %1839 = vmatprep.subr.bf16.mxu0 0
        %1840 = vmatpush2.bf16.msra.mxu0 0
        %1841 = vmatprep.subr.bf16.mxu0 0
        %1842 = vmatpush2.bf16.msra.mxu0 0
        %1843 = vmatprep.subr.bf16.mxu0 0
        %1844 = vmatpush2.bf16.msra.mxu0 0
        %1845 = vmatprep.mubr.bf16.mxu0 0
        %1846 = vmatmul.mubr.bf16.gmra.mxu0 %v1808
        %v1847 = vpop.f32.mrf.mxu0
        %v1848 = vadd.f32 0.0, %v1847
        %v1849 = vpop.f32.mrf.mxu0
        %v1850 = vpop.f32.mrf.mxu0
        %v1851 = vpop.f32.mrf.mxu0
        %1852 = vdwg.mxu0
        %1853 = vrot.lane.b32.xlu0 %v1070, 112
        %v1854 = vpop.permute.xlu0 %1853
        %v1856 = vsel %vm1100, %v1609, 0
        %v1859 = vsel %vm1617, %v1854, 0
        %1861 = vmatprep.subr.bf16.mxu0 0
        %1862 = vmatpush1.bf16.msra.mxu0 0
        %1863 = vmatprep.subr.bf16.mxu0 0
        %1864 = vmatpush1.bf16.msra.mxu0 0
        %1865 = vmatprep.subr.bf16.mxu0 0
        %1866 = vmatpush1.bf16.msra.mxu0 0
        %1867 = vmatprep.subr.bf16.mxu0 0
        %1868 = vmatpush1.bf16.msra.mxu0 0
        %1869 = vmatprep.subr.bf16.mxu0 0
        %1870 = vmatpush1.bf16.msra.mxu0 0
        %1871 = vmatprep.subr.bf16.mxu0 0
        %1872 = vmatpush1.bf16.msra.mxu0 0
        %1873 = vmatprep.subr.bf16.mxu0 0
        %1874 = vmatpush1.bf16.msra.mxu0 0
        %1875 = vmatprep.subr.bf16.mxu0 0
        %1876 = vmatpush1.bf16.msra.mxu0 %v1859
        %1877 = vmatprep.subr.bf16.mxu0 0
        %1878 = vmatpush2.bf16.msra.mxu0 0
        %1879 = vmatprep.subr.bf16.mxu0 0
        %1880 = vmatpush2.bf16.msra.mxu0 0
        %1881 = vmatprep.subr.bf16.mxu0 0
        %1882 = vmatpush2.bf16.msra.mxu0 0
        %1883 = vmatprep.subr.bf16.mxu0 0
        %1884 = vmatpush2.bf16.msra.mxu0 0
        %1885 = vmatprep.subr.bf16.mxu0 0
        %1886 = vmatpush2.bf16.msra.mxu0 0
        %1887 = vmatprep.subr.bf16.mxu0 0
        %1888 = vmatpush2.bf16.msra.mxu0 0
        %1889 = vmatprep.subr.bf16.mxu0 0
        %1890 = vmatpush2.bf16.msra.mxu0 0
        %1891 = vmatprep.subr.bf16.mxu0 0
        %1892 = vmatpush2.bf16.msra.mxu0 0
        %1893 = vmatprep.mubr.bf16.mxu0 0
        %1894 = vmatmul.mubr.bf16.gmra.mxu0 %v1856
        %v1895 = vpop.f32.mrf.mxu0
        %v1896 = vadd.f32 0.0, %v1895
        %v1897 = vpop.f32.mrf.mxu0
        %v1898 = vpop.f32.mrf.mxu0
        %v1899 = vpop.f32.mrf.mxu0
        %1900 = vdwg.mxu0
        %1901 = vrot.lane.b32.xlu0 %v1071, 112
        %v1902 = vpop.permute.xlu0 %1901
        %v1904 = vsel %vm1100, %v1610, 0
        %v1907 = vsel %vm1617, %v1902, 0
        %1909 = vmatprep.subr.bf16.mxu0 0
        %1910 = vmatpush1.bf16.msra.mxu0 0
        %1911 = vmatprep.subr.bf16.mxu0 0
        %1912 = vmatpush1.bf16.msra.mxu0 0
        %1913 = vmatprep.subr.bf16.mxu0 0
        %1914 = vmatpush1.bf16.msra.mxu0 0
        %1915 = vmatprep.subr.bf16.mxu0 0
        %1916 = vmatpush1.bf16.msra.mxu0 0
        %1917 = vmatprep.subr.bf16.mxu0 0
        %1918 = vmatpush1.bf16.msra.mxu0 0
        %1919 = vmatprep.subr.bf16.mxu0 0
        %1920 = vmatpush1.bf16.msra.mxu0 0
        %1921 = vmatprep.subr.bf16.mxu0 0
        %1922 = vmatpush1.bf16.msra.mxu0 0
        %1923 = vmatprep.subr.bf16.mxu0 0
        %1924 = vmatpush1.bf16.msra.mxu0 %v1907
        %1925 = vmatprep.subr.bf16.mxu0 0
        %1926 = vmatpush2.bf16.msra.mxu0 0
        %1927 = vmatprep.subr.bf16.mxu0 0
        %1928 = vmatpush2.bf16.msra.mxu0 0
        %1929 = vmatprep.subr.bf16.mxu0 0
        %1930 = vmatpush2.bf16.msra.mxu0 0
        %1931 = vmatprep.subr.bf16.mxu0 0
        %1932 = vmatpush2.bf16.msra.mxu0 0
        %1933 = vmatprep.subr.bf16.mxu0 0
        %1934 = vmatpush2.bf16.msra.mxu0 0
        %1935 = vmatprep.subr.bf16.mxu0 0
        %1936 = vmatpush2.bf16.msra.mxu0 0
        %1937 = vmatprep.subr.bf16.mxu0 0
        %1938 = vmatpush2.bf16.msra.mxu0 0
        %1939 = vmatprep.subr.bf16.mxu0 0
        %1940 = vmatpush2.bf16.msra.mxu0 0
        %1941 = vmatprep.mubr.bf16.mxu0 0
        %1942 = vmatmul.mubr.bf16.gmra.mxu0 %v1904
        %v1943 = vpop.f32.mrf.mxu0
        %v1944 = vadd.f32 0.0, %v1943
        %v1945 = vpop.f32.mrf.mxu0
        %v1946 = vpop.f32.mrf.mxu0
        %v1947 = vpop.f32.mrf.mxu0
        %1948 = vdwg.mxu0
        %1949 = vrot.lane.b32.xlu0 %v1072, 112
        %v1950 = vpop.permute.xlu0 %1949
        %v1952 = vsel %vm1100, %v1611, 0
        %v1955 = vsel %vm1617, %v1950, 0
        %1957 = vmatprep.subr.bf16.mxu0 0
        %1958 = vmatpush1.bf16.msra.mxu0 0
        %1959 = vmatprep.subr.bf16.mxu0 0
        %1960 = vmatpush1.bf16.msra.mxu0 0
        %1961 = vmatprep.subr.bf16.mxu0 0
        %1962 = vmatpush1.bf16.msra.mxu0 0
        %1963 = vmatprep.subr.bf16.mxu0 0
        %1964 = vmatpush1.bf16.msra.mxu0 0
        %1965 = vmatprep.subr.bf16.mxu0 0
        %1966 = vmatpush1.bf16.msra.mxu0 0
        %1967 = vmatprep.subr.bf16.mxu0 0
        %1968 = vmatpush1.bf16.msra.mxu0 0
        %1969 = vmatprep.subr.bf16.mxu0 0
        %1970 = vmatpush1.bf16.msra.mxu0 0
        %1971 = vmatprep.subr.bf16.mxu0 0
        %1972 = vmatpush1.bf16.msra.mxu0 %v1955
        %1973 = vmatprep.subr.bf16.mxu0 0
        %1974 = vmatpush2.bf16.msra.mxu0 0
        %1975 = vmatprep.subr.bf16.mxu0 0
        %1976 = vmatpush2.bf16.msra.mxu0 0
        %1977 = vmatprep.subr.bf16.mxu0 0
        %1978 = vmatpush2.bf16.msra.mxu0 0
        %1979 = vmatprep.subr.bf16.mxu0 0
        %1980 = vmatpush2.bf16.msra.mxu0 0
        %1981 = vmatprep.subr.bf16.mxu0 0
        %1982 = vmatpush2.bf16.msra.mxu0 0
        %1983 = vmatprep.subr.bf16.mxu0 0
        %1984 = vmatpush2.bf16.msra.mxu0 0
        %1985 = vmatprep.subr.bf16.mxu0 0
        %1986 = vmatpush2.bf16.msra.mxu0 0
        %1987 = vmatprep.subr.bf16.mxu0 0
        %1988 = vmatpush2.bf16.msra.mxu0 0
        %1989 = vmatprep.mubr.bf16.mxu0 0
        %1990 = vmatmul.mubr.bf16.gmra.mxu0 %v1952
        %v1991 = vpop.f32.mrf.mxu0
        %v1992 = vadd.f32 0.0, %v1991
        %v1993 = vpop.f32.mrf.mxu0
        %v1994 = vpop.f32.mrf.mxu0
        %v1995 = vpop.f32.mrf.mxu0
        %1996 = vdwg.mxu0
        %v1997 = vld [vmem:[%s599] sm:$0xf]
        %v1998 = vld [vmem:[%s599 + $0x4] sm:$0xf]
        %v1999 = vld [vmem:[%s599 + $0x8] sm:$0xf]
        %v2000 = vld [vmem:[%s599 + $0xc] sm:$0xf]
        %v2001 = vpack.c.bf16 %v1656, %v1656
        %v2002 = vpack.c.bf16 %v1704, %v1704
        %v2003 = vpack.c.bf16 %v1752, %v1752
        %v2004 = vpack.c.bf16 %v1800, %v1800
        %v2005 = vpack.c.bf16 %v1848, %v1848
        %v2006 = vpack.c.bf16 %v1896, %v1896
        %v2007 = vpack.c.bf16 %v1944, %v1944
        %v2008 = vpack.c.bf16 %v1992, %v1992
        %v2010 = vsel %vm1100, %v2001, 0
        %v2013 = vsel %vm1617, %v1997, 0
        %2015 = vmatprep.subr.bf16.mxu0 0
        %2016 = vmatpush1.bf16.msra.mxu0 0
        %2017 = vmatprep.subr.bf16.mxu0 0
        %2018 = vmatpush1.bf16.msra.mxu0 0
        %2019 = vmatprep.subr.bf16.mxu0 0
        %2020 = vmatpush1.bf16.msra.mxu0 0
        %2021 = vmatprep.subr.bf16.mxu0 0
        %2022 = vmatpush1.bf16.msra.mxu0 0
        %2023 = vmatprep.subr.bf16.mxu0 0
        %2024 = vmatpush1.bf16.msra.mxu0 0
        %2025 = vmatprep.subr.bf16.mxu0 0
        %2026 = vmatpush1.bf16.msra.mxu0 0
        %2027 = vmatprep.subr.bf16.mxu0 0
        %2028 = vmatpush1.bf16.msra.mxu0 0
        %2029 = vmatprep.subr.bf16.mxu0 0
        %2030 = vmatpush1.bf16.msra.mxu0 %v2013
        %2031 = vmatprep.subr.bf16.mxu0 0
        %2032 = vmatpush2.bf16.msra.mxu0 0
        %2033 = vmatprep.subr.bf16.mxu0 0
        %2034 = vmatpush2.bf16.msra.mxu0 0
        %2035 = vmatprep.subr.bf16.mxu0 0
        %2036 = vmatpush2.bf16.msra.mxu0 0
        %2037 = vmatprep.subr.bf16.mxu0 0
        %2038 = vmatpush2.bf16.msra.mxu0 0
        %2039 = vmatprep.subr.bf16.mxu0 0
        %2040 = vmatpush2.bf16.msra.mxu0 0
        %2041 = vmatprep.subr.bf16.mxu0 0
        %2042 = vmatpush2.bf16.msra.mxu0 0
        %2043 = vmatprep.subr.bf16.mxu0 0
        %2044 = vmatpush2.bf16.msra.mxu0 0
        %2045 = vmatprep.subr.bf16.mxu0 0
        %2046 = vmatpush2.bf16.msra.mxu0 0
        %2047 = vmatprep.mubr.bf16.mxu0 0
        %2048 = vmatmul.mubr.bf16.gmra.mxu0 %v2010
        %v2049 = vpop.f32.mrf.mxu0
        %v2050 = vadd.f32 0.0, %v2049
        %v2051 = vpop.f32.mrf.mxu0
        %v2052 = vpop.f32.mrf.mxu0
        %v2053 = vpop.f32.mrf.mxu0
        %2054 = vdwg.mxu0
        %v2056 = vsel %vm1100, %v2002, 0
        %v2059 = vsel %vm1617, %v1998, 0
        %2061 = vmatprep.subr.bf16.mxu0 0
        %2062 = vmatpush1.bf16.msra.mxu0 0
        %2063 = vmatprep.subr.bf16.mxu0 0
        %2064 = vmatpush1.bf16.msra.mxu0 0
        %2065 = vmatprep.subr.bf16.mxu0 0
        %2066 = vmatpush1.bf16.msra.mxu0 0
        %2067 = vmatprep.subr.bf16.mxu0 0
        %2068 = vmatpush1.bf16.msra.mxu0 0
        %2069 = vmatprep.subr.bf16.mxu0 0
        %2070 = vmatpush1.bf16.msra.mxu0 0
        %2071 = vmatprep.subr.bf16.mxu0 0
        %2072 = vmatpush1.bf16.msra.mxu0 0
        %2073 = vmatprep.subr.bf16.mxu0 0
        %2074 = vmatpush1.bf16.msra.mxu0 0
        %2075 = vmatprep.subr.bf16.mxu0 0
        %2076 = vmatpush1.bf16.msra.mxu0 %v2059
        %2077 = vmatprep.subr.bf16.mxu0 0
        %2078 = vmatpush2.bf16.msra.mxu0 0
        %2079 = vmatprep.subr.bf16.mxu0 0
        %2080 = vmatpush2.bf16.msra.mxu0 0
        %2081 = vmatprep.subr.bf16.mxu0 0
        %2082 = vmatpush2.bf16.msra.mxu0 0
        %2083 = vmatprep.subr.bf16.mxu0 0
        %2084 = vmatpush2.bf16.msra.mxu0 0
        %2085 = vmatprep.subr.bf16.mxu0 0
        %2086 = vmatpush2.bf16.msra.mxu0 0
        %2087 = vmatprep.subr.bf16.mxu0 0
        %2088 = vmatpush2.bf16.msra.mxu0 0
        %2089 = vmatprep.subr.bf16.mxu0 0
        %2090 = vmatpush2.bf16.msra.mxu0 0
        %2091 = vmatprep.subr.bf16.mxu0 0
        %2092 = vmatpush2.bf16.msra.mxu0 0
        %2093 = vmatprep.mubr.bf16.mxu0 0
        %2094 = vmatmul.mubr.bf16.gmra.mxu0 %v2056
        %v2095 = vpop.f32.mrf.mxu0
        %v2096 = vadd.f32 0.0, %v2095
        %v2097 = vpop.f32.mrf.mxu0
        %v2098 = vpop.f32.mrf.mxu0
        %v2099 = vpop.f32.mrf.mxu0
        %2100 = vdwg.mxu0
        %v2102 = vsel %vm1100, %v2003, 0
        %v2105 = vsel %vm1617, %v1999, 0
        %2107 = vmatprep.subr.bf16.mxu0 0
        %2108 = vmatpush1.bf16.msra.mxu0 0
        %2109 = vmatprep.subr.bf16.mxu0 0
        %2110 = vmatpush1.bf16.msra.mxu0 0
        %2111 = vmatprep.subr.bf16.mxu0 0
        %2112 = vmatpush1.bf16.msra.mxu0 0
        %2113 = vmatprep.subr.bf16.mxu0 0
        %2114 = vmatpush1.bf16.msra.mxu0 0
        %2115 = vmatprep.subr.bf16.mxu0 0
        %2116 = vmatpush1.bf16.msra.mxu0 0
        %2117 = vmatprep.subr.bf16.mxu0 0
        %2118 = vmatpush1.bf16.msra.mxu0 0
        %2119 = vmatprep.subr.bf16.mxu0 0
        %2120 = vmatpush1.bf16.msra.mxu0 0
        %2121 = vmatprep.subr.bf16.mxu0 0
        %2122 = vmatpush1.bf16.msra.mxu0 %v2105
        %2123 = vmatprep.subr.bf16.mxu0 0
        %2124 = vmatpush2.bf16.msra.mxu0 0
        %2125 = vmatprep.subr.bf16.mxu0 0
        %2126 = vmatpush2.bf16.msra.mxu0 0
        %2127 = vmatprep.subr.bf16.mxu0 0
        %2128 = vmatpush2.bf16.msra.mxu0 0
        %2129 = vmatprep.subr.bf16.mxu0 0
        %2130 = vmatpush2.bf16.msra.mxu0 0
        %2131 = vmatprep.subr.bf16.mxu0 0
        %2132 = vmatpush2.bf16.msra.mxu0 0
        %2133 = vmatprep.subr.bf16.mxu0 0
        %2134 = vmatpush2.bf16.msra.mxu0 0
        %2135 = vmatprep.subr.bf16.mxu0 0
        %2136 = vmatpush2.bf16.msra.mxu0 0
        %2137 = vmatprep.subr.bf16.mxu0 0
        %2138 = vmatpush2.bf16.msra.mxu0 0
        %2139 = vmatprep.mubr.bf16.mxu0 0
        %2140 = vmatmul.mubr.bf16.gmra.mxu0 %v2102
        %v2141 = vpop.f32.mrf.mxu0
        %v2142 = vadd.f32 0.0, %v2141
        %v2143 = vpop.f32.mrf.mxu0
        %v2144 = vpop.f32.mrf.mxu0
        %v2145 = vpop.f32.mrf.mxu0
        %2146 = vdwg.mxu0
        %v2148 = vsel %vm1100, %v2004, 0
        %v2151 = vsel %vm1617, %v2000, 0
        %2153 = vmatprep.subr.bf16.mxu0 0
        %2154 = vmatpush1.bf16.msra.mxu0 0
        %2155 = vmatprep.subr.bf16.mxu0 0
        %2156 = vmatpush1.bf16.msra.mxu0 0
        %2157 = vmatprep.subr.bf16.mxu0 0
        %2158 = vmatpush1.bf16.msra.mxu0 0
        %2159 = vmatprep.subr.bf16.mxu0 0
        %2160 = vmatpush1.bf16.msra.mxu0 0
        %2161 = vmatprep.subr.bf16.mxu0 0
        %2162 = vmatpush1.bf16.msra.mxu0 0
        %2163 = vmatprep.subr.bf16.mxu0 0
        %2164 = vmatpush1.bf16.msra.mxu0 0
        %2165 = vmatprep.subr.bf16.mxu0 0
        %2166 = vmatpush1.bf16.msra.mxu0 0
        %2167 = vmatprep.subr.bf16.mxu0 0
        %2168 = vmatpush1.bf16.msra.mxu0 %v2151
        %2169 = vmatprep.subr.bf16.mxu0 0
        %2170 = vmatpush2.bf16.msra.mxu0 0
        %2171 = vmatprep.subr.bf16.mxu0 0
        %2172 = vmatpush2.bf16.msra.mxu0 0
        %2173 = vmatprep.subr.bf16.mxu0 0
        %2174 = vmatpush2.bf16.msra.mxu0 0
        %2175 = vmatprep.subr.bf16.mxu0 0
        %2176 = vmatpush2.bf16.msra.mxu0 0
        %2177 = vmatprep.subr.bf16.mxu0 0
        %2178 = vmatpush2.bf16.msra.mxu0 0
        %2179 = vmatprep.subr.bf16.mxu0 0
        %2180 = vmatpush2.bf16.msra.mxu0 0
        %2181 = vmatprep.subr.bf16.mxu0 0
        %2182 = vmatpush2.bf16.msra.mxu0 0
        %2183 = vmatprep.subr.bf16.mxu0 0
        %2184 = vmatpush2.bf16.msra.mxu0 0
        %2185 = vmatprep.mubr.bf16.mxu0 0
        %2186 = vmatmul.mubr.bf16.gmra.mxu0 %v2148
        %v2187 = vpop.f32.mrf.mxu0
        %v2188 = vadd.f32 0.0, %v2187
        %v2189 = vpop.f32.mrf.mxu0
        %v2190 = vpop.f32.mrf.mxu0
        %v2191 = vpop.f32.mrf.mxu0
        %2192 = vdwg.mxu0
        %v2194 = vsel %vm1100, %v2005, 0
        %2196 = vmatprep.subr.bf16.mxu0 0
        %2197 = vmatpush1.bf16.msra.mxu0 0
        %2198 = vmatprep.subr.bf16.mxu0 0
        %2199 = vmatpush1.bf16.msra.mxu0 0
        %2200 = vmatprep.subr.bf16.mxu0 0
        %2201 = vmatpush1.bf16.msra.mxu0 0
        %2202 = vmatprep.subr.bf16.mxu0 0
        %2203 = vmatpush1.bf16.msra.mxu0 0
        %2204 = vmatprep.subr.bf16.mxu0 0
        %2205 = vmatpush1.bf16.msra.mxu0 0
        %2206 = vmatprep.subr.bf16.mxu0 0
        %2207 = vmatpush1.bf16.msra.mxu0 0
        %2208 = vmatprep.subr.bf16.mxu0 0
        %2209 = vmatpush1.bf16.msra.mxu0 0
        %2210 = vmatprep.subr.bf16.mxu0 0
        %2211 = vmatpush1.bf16.msra.mxu0 %v2013
        %2212 = vmatprep.subr.bf16.mxu0 0
        %2213 = vmatpush2.bf16.msra.mxu0 0
        %2214 = vmatprep.subr.bf16.mxu0 0
        %2215 = vmatpush2.bf16.msra.mxu0 0
        %2216 = vmatprep.subr.bf16.mxu0 0
        %2217 = vmatpush2.bf16.msra.mxu0 0
        %2218 = vmatprep.subr.bf16.mxu0 0
        %2219 = vmatpush2.bf16.msra.mxu0 0
        %2220 = vmatprep.subr.bf16.mxu0 0
        %2221 = vmatpush2.bf16.msra.mxu0 0
        %2222 = vmatprep.subr.bf16.mxu0 0
        %2223 = vmatpush2.bf16.msra.mxu0 0
        %2224 = vmatprep.subr.bf16.mxu0 0
        %2225 = vmatpush2.bf16.msra.mxu0 0
        %2226 = vmatprep.subr.bf16.mxu0 0
        %2227 = vmatpush2.bf16.msra.mxu0 0
        %2228 = vmatprep.mubr.bf16.mxu0 0
        %2229 = vmatmul.mubr.bf16.gmra.mxu0 %v2194
        %v2230 = vpop.f32.mrf.mxu0
        %v2231 = vadd.f32 0.0, %v2230
        %v2232 = vpop.f32.mrf.mxu0
        %v2233 = vpop.f32.mrf.mxu0
        %v2234 = vpop.f32.mrf.mxu0
        %2235 = vdwg.mxu0
        %v2237 = vsel %vm1100, %v2006, 0
        %2239 = vmatprep.subr.bf16.mxu0 0
        %2240 = vmatpush1.bf16.msra.mxu0 0
        %2241 = vmatprep.subr.bf16.mxu0 0
        %2242 = vmatpush1.bf16.msra.mxu0 0
        %2243 = vmatprep.subr.bf16.mxu0 0
        %2244 = vmatpush1.bf16.msra.mxu0 0
        %2245 = vmatprep.subr.bf16.mxu0 0
        %2246 = vmatpush1.bf16.msra.mxu0 0
        %2247 = vmatprep.subr.bf16.mxu0 0
        %2248 = vmatpush1.bf16.msra.mxu0 0
        %2249 = vmatprep.subr.bf16.mxu0 0
        %2250 = vmatpush1.bf16.msra.mxu0 0
        %2251 = vmatprep.subr.bf16.mxu0 0
        %2252 = vmatpush1.bf16.msra.mxu0 0
        %2253 = vmatprep.subr.bf16.mxu0 0
        %2254 = vmatpush1.bf16.msra.mxu0 %v2059
        %2255 = vmatprep.subr.bf16.mxu0 0
        %2256 = vmatpush2.bf16.msra.mxu0 0
        %2257 = vmatprep.subr.bf16.mxu0 0
        %2258 = vmatpush2.bf16.msra.mxu0 0
        %2259 = vmatprep.subr.bf16.mxu0 0
        %2260 = vmatpush2.bf16.msra.mxu0 0
        %2261 = vmatprep.subr.bf16.mxu0 0
        %2262 = vmatpush2.bf16.msra.mxu0 0
        %2263 = vmatprep.subr.bf16.mxu0 0
        %2264 = vmatpush2.bf16.msra.mxu0 0
        %2265 = vmatprep.subr.bf16.mxu0 0
        %2266 = vmatpush2.bf16.msra.mxu0 0
        %2267 = vmatprep.subr.bf16.mxu0 0
        %2268 = vmatpush2.bf16.msra.mxu0 0
        %2269 = vmatprep.subr.bf16.mxu0 0
        %2270 = vmatpush2.bf16.msra.mxu0 0
        %2271 = vmatprep.mubr.bf16.mxu0 0
        %2272 = vmatmul.mubr.bf16.gmra.mxu0 %v2237
        %v2273 = vpop.f32.mrf.mxu0
        %v2274 = vadd.f32 0.0, %v2273
        %v2275 = vpop.f32.mrf.mxu0
        %v2276 = vpop.f32.mrf.mxu0
        %v2277 = vpop.f32.mrf.mxu0
        %2278 = vdwg.mxu0
        %v2280 = vsel %vm1100, %v2007, 0
        %2282 = vmatprep.subr.bf16.mxu0 0
        %2283 = vmatpush1.bf16.msra.mxu0 0
        %2284 = vmatprep.subr.bf16.mxu0 0
        %2285 = vmatpush1.bf16.msra.mxu0 0
        %2286 = vmatprep.subr.bf16.mxu0 0
        %2287 = vmatpush1.bf16.msra.mxu0 0
        %2288 = vmatprep.subr.bf16.mxu0 0
        %2289 = vmatpush1.bf16.msra.mxu0 0
        %2290 = vmatprep.subr.bf16.mxu0 0
        %2291 = vmatpush1.bf16.msra.mxu0 0
        %2292 = vmatprep.subr.bf16.mxu0 0
        %2293 = vmatpush1.bf16.msra.mxu0 0
        %2294 = vmatprep.subr.bf16.mxu0 0
        %2295 = vmatpush1.bf16.msra.mxu0 0
        %2296 = vmatprep.subr.bf16.mxu0 0
        %2297 = vmatpush1.bf16.msra.mxu0 %v2105
        %2298 = vmatprep.subr.bf16.mxu0 0
        %2299 = vmatpush2.bf16.msra.mxu0 0
        %2300 = vmatprep.subr.bf16.mxu0 0
        %2301 = vmatpush2.bf16.msra.mxu0 0
        %2302 = vmatprep.subr.bf16.mxu0 0
        %2303 = vmatpush2.bf16.msra.mxu0 0
        %2304 = vmatprep.subr.bf16.mxu0 0
        %2305 = vmatpush2.bf16.msra.mxu0 0
        %2306 = vmatprep.subr.bf16.mxu0 0
        %2307 = vmatpush2.bf16.msra.mxu0 0
        %2308 = vmatprep.subr.bf16.mxu0 0
        %2309 = vmatpush2.bf16.msra.mxu0 0
        %2310 = vmatprep.subr.bf16.mxu0 0
        %2311 = vmatpush2.bf16.msra.mxu0 0
        %2312 = vmatprep.subr.bf16.mxu0 0
        %2313 = vmatpush2.bf16.msra.mxu0 0
        %2314 = vmatprep.mubr.bf16.mxu0 0
        %2315 = vmatmul.mubr.bf16.gmra.mxu0 %v2280
        %v2316 = vpop.f32.mrf.mxu0
        %v2317 = vadd.f32 0.0, %v2316
        %v2318 = vpop.f32.mrf.mxu0
        %v2319 = vpop.f32.mrf.mxu0
        %v2320 = vpop.f32.mrf.mxu0
        %2321 = vdwg.mxu0
        %v2323 = vsel %vm1100, %v2008, 0
        %2325 = vmatprep.subr.bf16.mxu0 0
        %2326 = vmatpush1.bf16.msra.mxu0 0
        %2327 = vmatprep.subr.bf16.mxu0 0
        %2328 = vmatpush1.bf16.msra.mxu0 0
        %2329 = vmatprep.subr.bf16.mxu0 0
        %2330 = vmatpush1.bf16.msra.mxu0 0
        %2331 = vmatprep.subr.bf16.mxu0 0
        %2332 = vmatpush1.bf16.msra.mxu0 0
        %2333 = vmatprep.subr.bf16.mxu0 0
        %2334 = vmatpush1.bf16.msra.mxu0 0
        %2335 = vmatprep.subr.bf16.mxu0 0
        %2336 = vmatpush1.bf16.msra.mxu0 0
        %2337 = vmatprep.subr.bf16.mxu0 0
        %2338 = vmatpush1.bf16.msra.mxu0 0
        %2339 = vmatprep.subr.bf16.mxu0 0
        %2340 = vmatpush1.bf16.msra.mxu0 %v2151
        %2341 = vmatprep.subr.bf16.mxu0 0
        %2342 = vmatpush2.bf16.msra.mxu0 0
        %2343 = vmatprep.subr.bf16.mxu0 0
        %2344 = vmatpush2.bf16.msra.mxu0 0
        %2345 = vmatprep.subr.bf16.mxu0 0
        %2346 = vmatpush2.bf16.msra.mxu0 0
        %2347 = vmatprep.subr.bf16.mxu0 0
        %2348 = vmatpush2.bf16.msra.mxu0 0
        %2349 = vmatprep.subr.bf16.mxu0 0
        %2350 = vmatpush2.bf16.msra.mxu0 0
        %2351 = vmatprep.subr.bf16.mxu0 0
        %2352 = vmatpush2.bf16.msra.mxu0 0
        %2353 = vmatprep.subr.bf16.mxu0 0
        %2354 = vmatpush2.bf16.msra.mxu0 0
        %2355 = vmatprep.subr.bf16.mxu0 0
        %2356 = vmatpush2.bf16.msra.mxu0 0
        %2357 = vmatprep.mubr.bf16.mxu0 0
        %2358 = vmatmul.mubr.bf16.gmra.mxu0 %v2323
        %v2359 = vpop.f32.mrf.mxu0
        %v2360 = vadd.f32 0.0, %v2359
        %v2361 = vpop.f32.mrf.mxu0
        %v2362 = vpop.f32.mrf.mxu0
        %v2363 = vpop.f32.mrf.mxu0
        %2364 = vdwg.mxu0
        %v2365 = vadd.f32 %v2050, %v2096
        %v2366 = vadd.f32 %v2231, %v2274
        %v2367 = vadd.f32 %v2365, %v2142
        %v2368 = vadd.f32 %v2366, %v2317
        %v2369 = vadd.f32 %v2367, %v2188
        %v2370 = vadd.f32 %v2368, %v2360
        %v2371 = vld [vmem:[%s602] sm:$0x1]
        %v2373 = vlaneseq
        %v2374 = vshrl.u32 %v2373, 7
        %v2375 = vsub.s32 0, %v2374
        %v2376 = vrot.slane %v2371, %v2375
        %v2378 = vadd.f32 %v2369, %v2376
        %v2379 = vadd.f32 %v2370, %v2376
        %v2380 = vadd.f32 %v642, %v2378
        %v2381 = vadd.f32 %v643, %v2379
        %v2382 = vsel %vm702, %v2380, 0.0
        %2383 = vadd.xlane.f32.xlu0 %v2382
        %v2384 = vpop.xlane.xlu0 %2383
        %v2385 = vsel %vm702, %v2381, 0.0
        %2386 = vadd.xlane.f32.xlu0 %v2385
        %v2387 = vpop.xlane.xlu0 %2386
        %v2388 = vrcp.pop 32.0
        %v2389 = vmul.f32 %v2384, %v2388
        %v2390 = vmul.f32 %v2387, %v2388
        %v2391 = vsub.f32 %v2380, %v2389
        %v2392 = vsub.f32 %v2381, %v2390
        %v2393 = vmul.f32 %v2391, %v2391
        %v2394 = vmul.f32 %v2392, %v2392
        %v2395 = vsel %vm702, %v2393, 0.0
        %2396 = vadd.xlane.f32.xlu0 %v2395
        %v2397 = vpop.xlane.xlu0 %2396
        %v2398 = vsel %vm702, %v2394, 0.0
        %2399 = vadd.xlane.f32.xlu0 %v2398
        %v2400 = vpop.xlane.xlu0 %2399
        %v2401 = vmul.f32 %v2397, %v2388
        %v2402 = vmul.f32 %v2400, %v2388
        %v2403 = vadd.f32 %v2401, 1e-05
        %v2404 = vadd.f32 %v2402, 1e-05
        %v2405 = vrsqrt.pop %v2403
        %v2406 = vrsqrt.pop %v2404
        %v2407 = vmul.f32 %v2391, %v2405
        %v2408 = vmul.f32 %v2392, %v2406
        %v2409 = vld [vmem:[%s605] sm:$0x1]
        %v2411 = vlaneseq
        %v2412 = vshrl.u32 %v2411, 7
        %v2413 = vsub.s32 0, %v2412
        %v2414 = vrot.slane %v2409, %v2413
        %v2416 = vmul.f32 %v2407, %v2414
        %v2417 = vmul.f32 %v2408, %v2414
        %v2418 = vld [vmem:[%s608] sm:$0x1]
        %v2420 = vlaneseq
        %v2421 = vshrl.u32 %v2420, 7
        %v2422 = vsub.s32 0, %v2421
        %v2423 = vrot.slane %v2418, %v2422
        %v2425 = vadd.f32 %v2416, %v2423
        %v2426 = vadd.f32 %v2417, %v2423
        %v2427 = vpack.c.bf16 %v2426, %v2425
        %v2428 = vld [vmem:[%s613] sm:$0xff]
        %v2429 = vld [vmem:[%s613 + $0x8] sm:$0xff]
        %v2430 = vld [vmem:[%s613 + $0x40] sm:$0xff]
        %v2431 = vld [vmem:[%s613 + $0x48] sm:$0xff]
        %v2432 = vld [vmem:[%s613 + $0x80] sm:$0xff]
        %v2433 = vld [vmem:[%s613 + $0x88] sm:$0xff]
        %v2434 = vld [vmem:[%s613 + $0xc0] sm:$0xff]
        %v2435 = vld [vmem:[%s613 + $0xc8] sm:$0xff]
        %v2436 = vld [vmem:[%s617] sm:$0xf]
        %v2438 = vlaneseq
        %v2439 = vshrl.u32 %v2438, 7
        %v2440 = vsub.s32 0, %v2439
        %v2441 = vrot.slane %v2436, %v2440
        %v2442 = vlaneseq
        %v2443 = vshrl.u32 %v2442, 7
        %v2444 = vsub.s32 1, %v2443
        %v2445 = vrot.slane %v2436, %v2444
        %v2446 = vlaneseq
        %v2447 = vshrl.u32 %v2446, 7
        %v2448 = vsub.s32 2, %v2447
        %v2449 = vrot.slane %v2436, %v2448
        %v2450 = vlaneseq
        %v2451 = vshrl.u32 %v2450, 7
        %v2452 = vsub.s32 3, %v2451
        %v2453 = vrot.slane %v2436, %v2452
        %v2466 = vunpack.c.l.b16 %v2428
        %v2467 = vunpack.c.h.b16 %v2428
        %v2468 = vunpack.c.l.b16 %v2429
        %v2469 = vunpack.c.h.b16 %v2429
        %v2470 = vunpack.c.l.b16 %v2430
        %v2471 = vunpack.c.h.b16 %v2430
        %v2472 = vunpack.c.l.b16 %v2431
        %v2473 = vunpack.c.h.b16 %v2431
        %v2474 = vunpack.c.l.b16 %v2432
        %v2475 = vunpack.c.h.b16 %v2432
        %v2476 = vunpack.c.l.b16 %v2433
        %v2477 = vunpack.c.h.b16 %v2433
        %v2478 = vunpack.c.l.b16 %v2434
        %v2479 = vunpack.c.h.b16 %v2434
        %v2480 = vunpack.c.l.b16 %v2435
        %v2481 = vunpack.c.h.b16 %v2435
        %v2482 = vpack.c.b16 %v2470, %v2466
        %v2483 = vpack.c.b16 %v2471, %v2467
        %v2484 = vpack.c.b16 %v2472, %v2468
        %v2485 = vpack.c.b16 %v2473, %v2469
        %v2486 = vpack.c.b16 %v2478, %v2474
        %v2487 = vpack.c.b16 %v2479, %v2475
        %v2488 = vpack.c.b16 %v2480, %v2476
        %v2489 = vpack.c.b16 %v2481, %v2477
        %v2499 = vsel %vm702, %v2427, 0
        %2501 = vmatprep.subr.bf16.mxu0 0
        %2502 = vmatpush1.bf16.msra.mxu0 0
        %2503 = vmatprep.subr.bf16.mxu0 0
        %2504 = vmatpush1.bf16.msra.mxu0 0
        %2505 = vmatprep.subr.bf16.mxu0 0
        %2506 = vmatpush1.bf16.msra.mxu0 0
        %2507 = vmatprep.subr.bf16.mxu0 0
        %2508 = vmatpush1.bf16.msra.mxu0 0
        %2509 = vmatprep.subr.bf16.mxu0 0
        %2510 = vmatpush1.bf16.msra.mxu0 0
        %2511 = vmatprep.subr.bf16.mxu0 0
        %2512 = vmatpush1.bf16.msra.mxu0 0
        %2513 = vmatprep.subr.bf16.mxu0 %v2487
        %2514 = vmatpush1.bf16.msra.mxu0 %v2486
        %2515 = vmatprep.subr.bf16.mxu0 %v2483
        %2516 = vmatpush1.bf16.msra.mxu0 %v2482
        %2517 = vmatprep.subr.bf16.mxu0 0
        %2518 = vmatpush2.bf16.msra.mxu0 0
        %2519 = vmatprep.subr.bf16.mxu0 0
        %2520 = vmatpush2.bf16.msra.mxu0 0
        %2521 = vmatprep.subr.bf16.mxu0 0
        %2522 = vmatpush2.bf16.msra.mxu0 0
        %2523 = vmatprep.subr.bf16.mxu0 0
        %2524 = vmatpush2.bf16.msra.mxu0 0
        %2525 = vmatprep.subr.bf16.mxu0 0
        %2526 = vmatpush2.bf16.msra.mxu0 0
        %2527 = vmatprep.subr.bf16.mxu0 0
        %2528 = vmatpush2.bf16.msra.mxu0 0
        %2529 = vmatprep.subr.bf16.mxu0 0
        %2530 = vmatpush2.bf16.msra.mxu0 0
        %2531 = vmatprep.subr.bf16.mxu0 0
        %2532 = vmatpush2.bf16.msra.mxu0 0
        %2533 = vmatprep.mubr.bf16.mxu0 0
        %2534 = vmatmul.mubr.bf16.gmra.mxu0 %v2499
        %v2535 = vpop.f32.mrf.mxu0
        %v2536 = vadd.f32 %v2441, %v2535
        %v2537 = vpop.f32.mrf.mxu0
        %v2538 = vadd.f32 %v2445, %v2537
        %v2539 = vpop.f32.mrf.mxu0
        %v2540 = vadd.f32 %v2441, %v2539
        %v2541 = vpop.f32.mrf.mxu0
        %v2542 = vadd.f32 %v2445, %v2541
        %2543 = vdwg.mxu0
        %2544 = vmatprep.subr.bf16.mxu0 0
        %2545 = vmatpush1.bf16.msra.mxu0 0
        %2546 = vmatprep.subr.bf16.mxu0 0
        %2547 = vmatpush1.bf16.msra.mxu0 0
        %2548 = vmatprep.subr.bf16.mxu0 0
        %2549 = vmatpush1.bf16.msra.mxu0 0
        %2550 = vmatprep.subr.bf16.mxu0 0
        %2551 = vmatpush1.bf16.msra.mxu0 0
        %2552 = vmatprep.subr.bf16.mxu0 0
        %2553 = vmatpush1.bf16.msra.mxu0 0
        %2554 = vmatprep.subr.bf16.mxu0 0
        %2555 = vmatpush1.bf16.msra.mxu0 0
        %2556 = vmatprep.subr.bf16.mxu0 %v2489
        %2557 = vmatpush1.bf16.msra.mxu0 %v2488
        %2558 = vmatprep.subr.bf16.mxu0 %v2485
        %2559 = vmatpush1.bf16.msra.mxu0 %v2484
        %2560 = vmatprep.subr.bf16.mxu0 0
        %2561 = vmatpush2.bf16.msra.mxu0 0
        %2562 = vmatprep.subr.bf16.mxu0 0
        %2563 = vmatpush2.bf16.msra.mxu0 0
        %2564 = vmatprep.subr.bf16.mxu0 0
        %2565 = vmatpush2.bf16.msra.mxu0 0
        %2566 = vmatprep.subr.bf16.mxu0 0
        %2567 = vmatpush2.bf16.msra.mxu0 0
        %2568 = vmatprep.subr.bf16.mxu0 0
        %2569 = vmatpush2.bf16.msra.mxu0 0
        %2570 = vmatprep.subr.bf16.mxu0 0
        %2571 = vmatpush2.bf16.msra.mxu0 0
        %2572 = vmatprep.subr.bf16.mxu0 0
        %2573 = vmatpush2.bf16.msra.mxu0 0
        %2574 = vmatprep.subr.bf16.mxu0 0
        %2575 = vmatpush2.bf16.msra.mxu0 0
        %2576 = vmatprep.mubr.bf16.mxu0 0
        %2577 = vmatmul.mubr.bf16.gmra.mxu0 %v2499
        %v2578 = vpop.f32.mrf.mxu0
        %v2579 = vadd.f32 %v2449, %v2578
        %v2580 = vpop.f32.mrf.mxu0
        %v2581 = vadd.f32 %v2453, %v2580
        %v2582 = vpop.f32.mrf.mxu0
        %v2583 = vadd.f32 %v2449, %v2582
        %v2584 = vpop.f32.mrf.mxu0
        %v2585 = vadd.f32 %v2453, %v2584
        %2586 = vdwg.mxu0
        %v2587 = vmax.f32 %v2536, 0.0
        %v2588 = vmax.f32 %v2538, 0.0
        %v2589 = vmax.f32 %v2579, 0.0
        %v2590 = vmax.f32 %v2581, 0.0
        %v2591 = vmax.f32 %v2540, 0.0
        %v2592 = vmax.f32 %v2542, 0.0
        %v2593 = vmax.f32 %v2583, 0.0
        %v2594 = vmax.f32 %v2585, 0.0
        %v2595 = vpack.c.bf16 %v2591, %v2587
        %v2596 = vpack.c.bf16 %v2592, %v2588
        %v2597 = vpack.c.bf16 %v2593, %v2589
        %v2598 = vpack.c.bf16 %v2594, %v2590
        %v2599 = vld [vmem:[%s622] sm:$0xf]
        %v2600 = vld [vmem:[%s622 + $0x4] sm:$0xf]
        %v2601 = vld [vmem:[%s622 + $0x8] sm:$0xf]
        %v2602 = vld [vmem:[%s622 + $0xc] sm:$0xf]
        %v2603 = vld [vmem:[%s622 + $0x10] sm:$0xf]
        %v2604 = vld [vmem:[%s622 + $0x14] sm:$0xf]
        %v2605 = vld [vmem:[%s622 + $0x18] sm:$0xf]
        %v2606 = vld [vmem:[%s622 + $0x1c] sm:$0xf]
        %v2607 = vld [vmem:[%s622 + $0x20] sm:$0xf]
        %v2608 = vld [vmem:[%s622 + $0x24] sm:$0xf]
        %v2609 = vld [vmem:[%s622 + $0x28] sm:$0xf]
        %v2610 = vld [vmem:[%s622 + $0x2c] sm:$0xf]
        %v2611 = vld [vmem:[%s622 + $0x30] sm:$0xf]
        %v2612 = vld [vmem:[%s622 + $0x34] sm:$0xf]
        %v2613 = vld [vmem:[%s622 + $0x38] sm:$0xf]
        %v2614 = vld [vmem:[%s622 + $0x3c] sm:$0xf]
        %v2615 = vld [vmem:[%s622 + $0x40] sm:$0xf]
        %v2616 = vld [vmem:[%s622 + $0x44] sm:$0xf]
        %v2617 = vld [vmem:[%s622 + $0x48] sm:$0xf]
        %v2618 = vld [vmem:[%s622 + $0x4c] sm:$0xf]
        %v2619 = vld [vmem:[%s622 + $0x50] sm:$0xf]
        %v2620 = vld [vmem:[%s622 + $0x54] sm:$0xf]
        %v2621 = vld [vmem:[%s622 + $0x58] sm:$0xf]
        %v2622 = vld [vmem:[%s622 + $0x5c] sm:$0xf]
        %v2623 = vld [vmem:[%s622 + $0x60] sm:$0xf]
        %v2624 = vld [vmem:[%s622 + $0x64] sm:$0xf]
        %v2625 = vld [vmem:[%s622 + $0x68] sm:$0xf]
        %v2626 = vld [vmem:[%s622 + $0x6c] sm:$0xf]
        %v2627 = vld [vmem:[%s622 + $0x70] sm:$0xf]
        %v2628 = vld [vmem:[%s622 + $0x74] sm:$0xf]
        %v2629 = vld [vmem:[%s622 + $0x78] sm:$0xf]
        %v2630 = vld [vmem:[%s622 + $0x7c] sm:$0xf]
        %v2631 = vld [vmem:[%s622 + $0x80] sm:$0xf]
        %v2632 = vld [vmem:[%s622 + $0x84] sm:$0xf]
        %v2633 = vld [vmem:[%s622 + $0x88] sm:$0xf]
        %v2634 = vld [vmem:[%s622 + $0x8c] sm:$0xf]
        %v2635 = vld [vmem:[%s622 + $0x90] sm:$0xf]
        %v2636 = vld [vmem:[%s622 + $0x94] sm:$0xf]
        %v2637 = vld [vmem:[%s622 + $0x98] sm:$0xf]
        %v2638 = vld [vmem:[%s622 + $0x9c] sm:$0xf]
        %v2639 = vld [vmem:[%s622 + $0xa0] sm:$0xf]
        %v2640 = vld [vmem:[%s622 + $0xa4] sm:$0xf]
        %v2641 = vld [vmem:[%s622 + $0xa8] sm:$0xf]
        %v2642 = vld [vmem:[%s622 + $0xac] sm:$0xf]
        %v2643 = vld [vmem:[%s622 + $0xb0] sm:$0xf]
        %v2644 = vld [vmem:[%s622 + $0xb4] sm:$0xf]
        %v2645 = vld [vmem:[%s622 + $0xb8] sm:$0xf]
        %v2646 = vld [vmem:[%s622 + $0xbc] sm:$0xf]
        %v2647 = vld [vmem:[%s622 + $0xc0] sm:$0xf]
        %v2648 = vld [vmem:[%s622 + $0xc4] sm:$0xf]
        %v2649 = vld [vmem:[%s622 + $0xc8] sm:$0xf]
        %v2650 = vld [vmem:[%s622 + $0xcc] sm:$0xf]
        %v2651 = vld [vmem:[%s622 + $0xd0] sm:$0xf]
        %v2652 = vld [vmem:[%s622 + $0xd4] sm:$0xf]
        %v2653 = vld [vmem:[%s622 + $0xd8] sm:$0xf]
        %v2654 = vld [vmem:[%s622 + $0xdc] sm:$0xf]
        %v2655 = vld [vmem:[%s622 + $0xe0] sm:$0xf]
        %v2656 = vld [vmem:[%s622 + $0xe4] sm:$0xf]
        %v2657 = vld [vmem:[%s622 + $0xe8] sm:$0xf]
        %v2658 = vld [vmem:[%s622 + $0xec] sm:$0xf]
        %v2659 = vld [vmem:[%s622 + $0xf0] sm:$0xf]
        %v2660 = vld [vmem:[%s622 + $0xf4] sm:$0xf]
        %v2661 = vld [vmem:[%s622 + $0xf8] sm:$0xf]
        %v2662 = vld [vmem:[%s622 + $0xfc] sm:$0xf]
        %v2663 = vld [vmem:[%s613 + $0x10] sm:$0xff]
        %v2664 = vld [vmem:[%s613 + $0x18] sm:$0xff]
        %v2665 = vld [vmem:[%s613 + $0x50] sm:$0xff]
        %v2666 = vld [vmem:[%s613 + $0x58] sm:$0xff]
        %v2667 = vld [vmem:[%s613 + $0x90] sm:$0xff]
        %v2668 = vld [vmem:[%s613 + $0x98] sm:$0xff]
        %v2669 = vld [vmem:[%s613 + $0xd0] sm:$0xff]
        %v2670 = vld [vmem:[%s613 + $0xd8] sm:$0xff]
        %v2671 = vld [vmem:[%s617 + $0x4] sm:$0xf]
        %v2673 = vlaneseq
        %v2674 = vshrl.u32 %v2673, 7
        %v2675 = vsub.s32 0, %v2674
        %v2676 = vrot.slane %v2671, %v2675
        %v2677 = vlaneseq
        %v2678 = vshrl.u32 %v2677, 7
        %v2679 = vsub.s32 1, %v2678
        %v2680 = vrot.slane %v2671, %v2679
        %v2681 = vlaneseq
        %v2682 = vshrl.u32 %v2681, 7
        %v2683 = vsub.s32 2, %v2682
        %v2684 = vrot.slane %v2671, %v2683
        %v2685 = vlaneseq
        %v2686 = vshrl.u32 %v2685, 7
        %v2687 = vsub.s32 3, %v2686
        %v2688 = vrot.slane %v2671, %v2687
        %v2701 = vunpack.c.l.b16 %v2663
        %v2702 = vunpack.c.h.b16 %v2663
        %v2703 = vunpack.c.l.b16 %v2664
        %v2704 = vunpack.c.h.b16 %v2664
        %v2705 = vunpack.c.l.b16 %v2665
        %v2706 = vunpack.c.h.b16 %v2665
        %v2707 = vunpack.c.l.b16 %v2666
        %v2708 = vunpack.c.h.b16 %v2666
        %v2709 = vunpack.c.l.b16 %v2667
        %v2710 = vunpack.c.h.b16 %v2667
        %v2711 = vunpack.c.l.b16 %v2668
        %v2712 = vunpack.c.h.b16 %v2668
        %v2713 = vunpack.c.l.b16 %v2669
        %v2714 = vunpack.c.h.b16 %v2669
        %v2715 = vunpack.c.l.b16 %v2670
        %v2716 = vunpack.c.h.b16 %v2670
        %v2717 = vpack.c.b16 %v2705, %v2701
        %v2718 = vpack.c.b16 %v2706, %v2702
        %v2719 = vpack.c.b16 %v2707, %v2703
        %v2720 = vpack.c.b16 %v2708, %v2704
        %v2721 = vpack.c.b16 %v2713, %v2709
        %v2722 = vpack.c.b16 %v2714, %v2710
        %v2723 = vpack.c.b16 %v2715, %v2711
        %v2724 = vpack.c.b16 %v2716, %v2712
        %2733 = vmatprep.subr.bf16.mxu0 0
        %2734 = vmatpush1.bf16.msra.mxu0 0
        %2735 = vmatprep.subr.bf16.mxu0 0
        %2736 = vmatpush1.bf16.msra.mxu0 0
        %2737 = vmatprep.subr.bf16.mxu0 0
        %2738 = vmatpush1.bf16.msra.mxu0 0
        %2739 = vmatprep.subr.bf16.mxu0 0
        %2740 = vmatpush1.bf16.msra.mxu0 0
        %2741 = vmatprep.subr.bf16.mxu0 0
        %2742 = vmatpush1.bf16.msra.mxu0 0
        %2743 = vmatprep.subr.bf16.mxu0 0
        %2744 = vmatpush1.bf16.msra.mxu0 0
        %2745 = vmatprep.subr.bf16.mxu0 %v2722
        %2746 = vmatpush1.bf16.msra.mxu0 %v2721
        %2747 = vmatprep.subr.bf16.mxu0 %v2718
        %2748 = vmatpush1.bf16.msra.mxu0 %v2717
        %2749 = vmatprep.subr.bf16.mxu0 0
        %2750 = vmatpush2.bf16.msra.mxu0 0
        %2751 = vmatprep.subr.bf16.mxu0 0
        %2752 = vmatpush2.bf16.msra.mxu0 0
        %2753 = vmatprep.subr.bf16.mxu0 0
        %2754 = vmatpush2.bf16.msra.mxu0 0
        %2755 = vmatprep.subr.bf16.mxu0 0
        %2756 = vmatpush2.bf16.msra.mxu0 0
        %2757 = vmatprep.subr.bf16.mxu0 0
        %2758 = vmatpush2.bf16.msra.mxu0 0
        %2759 = vmatprep.subr.bf16.mxu0 0
        %2760 = vmatpush2.bf16.msra.mxu0 0
        %2761 = vmatprep.subr.bf16.mxu0 0
        %2762 = vmatpush2.bf16.msra.mxu0 0
        %2763 = vmatprep.subr.bf16.mxu0 0
        %2764 = vmatpush2.bf16.msra.mxu0 0
        %2765 = vmatprep.mubr.bf16.mxu0 0
        %2766 = vmatmul.mubr.bf16.gmra.mxu0 %v2499
        %v2767 = vpop.f32.mrf.mxu0
        %v2768 = vadd.f32 %v2676, %v2767
        %v2769 = vpop.f32.mrf.mxu0
        %v2770 = vadd.f32 %v2680, %v2769
        %v2771 = vpop.f32.mrf.mxu0
        %v2772 = vadd.f32 %v2676, %v2771
        %v2773 = vpop.f32.mrf.mxu0
        %v2774 = vadd.f32 %v2680, %v2773
        %2775 = vdwg.mxu0
        %2776 = vmatprep.subr.bf16.mxu0 0
        %2777 = vmatpush1.bf16.msra.mxu0 0
        %2778 = vmatprep.subr.bf16.mxu0 0
        %2779 = vmatpush1.bf16.msra.mxu0 0
        %2780 = vmatprep.subr.bf16.mxu0 0
        %2781 = vmatpush1.bf16.msra.mxu0 0
        %2782 = vmatprep.subr.bf16.mxu0 0
        %2783 = vmatpush1.bf16.msra.mxu0 0
        %2784 = vmatprep.subr.bf16.mxu0 0
        %2785 = vmatpush1.bf16.msra.mxu0 0
        %2786 = vmatprep.subr.bf16.mxu0 0
        %2787 = vmatpush1.bf16.msra.mxu0 0
        %2788 = vmatprep.subr.bf16.mxu0 %v2724
        %2789 = vmatpush1.bf16.msra.mxu0 %v2723
        %2790 = vmatprep.subr.bf16.mxu0 %v2720
        %2791 = vmatpush1.bf16.msra.mxu0 %v2719
        %2792 = vmatprep.subr.bf16.mxu0 0
        %2793 = vmatpush2.bf16.msra.mxu0 0
        %2794 = vmatprep.subr.bf16.mxu0 0
        %2795 = vmatpush2.bf16.msra.mxu0 0
        %2796 = vmatprep.subr.bf16.mxu0 0
        %2797 = vmatpush2.bf16.msra.mxu0 0
        %2798 = vmatprep.subr.bf16.mxu0 0
        %2799 = vmatpush2.bf16.msra.mxu0 0
        %2800 = vmatprep.subr.bf16.mxu0 0
        %2801 = vmatpush2.bf16.msra.mxu0 0
        %2802 = vmatprep.subr.bf16.mxu0 0
        %2803 = vmatpush2.bf16.msra.mxu0 0
        %2804 = vmatprep.subr.bf16.mxu0 0
        %2805 = vmatpush2.bf16.msra.mxu0 0
        %2806 = vmatprep.subr.bf16.mxu0 0
        %2807 = vmatpush2.bf16.msra.mxu0 0
        %2808 = vmatprep.mubr.bf16.mxu0 0
        %2809 = vmatmul.mubr.bf16.gmra.mxu0 %v2499
        %v2810 = vpop.f32.mrf.mxu0
        %v2811 = vadd.f32 %v2684, %v2810
        %v2812 = vpop.f32.mrf.mxu0
        %v2813 = vadd.f32 %v2688, %v2812
        %v2814 = vpop.f32.mrf.mxu0
        %v2815 = vadd.f32 %v2684, %v2814
        %v2816 = vpop.f32.mrf.mxu0
        %v2817 = vadd.f32 %v2688, %v2816
        %2818 = vdwg.mxu0
        %v2819 = vmax.f32 %v2768, 0.0
        %v2820 = vmax.f32 %v2770, 0.0
        %v2821 = vmax.f32 %v2811, 0.0
        %v2822 = vmax.f32 %v2813, 0.0
        %v2823 = vmax.f32 %v2772, 0.0
        %v2824 = vmax.f32 %v2774, 0.0
        %v2825 = vmax.f32 %v2815, 0.0
        %v2826 = vmax.f32 %v2817, 0.0
        %v2827 = vpack.c.bf16 %v2823, %v2819
        %v2828 = vpack.c.bf16 %v2824, %v2820
        %v2829 = vpack.c.bf16 %v2825, %v2821
        %v2830 = vpack.c.bf16 %v2826, %v2822
        %v2831 = vld [vmem:[%s622 + $0x100] sm:$0xf]
        %v2832 = vld [vmem:[%s622 + $0x104] sm:$0xf]
        %v2833 = vld [vmem:[%s622 + $0x108] sm:$0xf]
        %v2834 = vld [vmem:[%s622 + $0x10c] sm:$0xf]
        %v2835 = vld [vmem:[%s622 + $0x110] sm:$0xf]
        %v2836 = vld [vmem:[%s622 + $0x114] sm:$0xf]
        %v2837 = vld [vmem:[%s622 + $0x118] sm:$0xf]
        %v2838 = vld [vmem:[%s622 + $0x11c] sm:$0xf]
        %v2839 = vld [vmem:[%s622 + $0x120] sm:$0xf]
        %v2840 = vld [vmem:[%s622 + $0x124] sm:$0xf]
        %v2841 = vld [vmem:[%s622 + $0x128] sm:$0xf]
        %v2842 = vld [vmem:[%s622 + $0x12c] sm:$0xf]
        %v2843 = vld [vmem:[%s622 + $0x130] sm:$0xf]
        %v2844 = vld [vmem:[%s622 + $0x134] sm:$0xf]
        %v2845 = vld [vmem:[%s622 + $0x138] sm:$0xf]
        %v2846 = vld [vmem:[%s622 + $0x13c] sm:$0xf]
        %v2847 = vld [vmem:[%s622 + $0x140] sm:$0xf]
        %v2848 = vld [vmem:[%s622 + $0x144] sm:$0xf]
        %v2849 = vld [vmem:[%s622 + $0x148] sm:$0xf]
        %v2850 = vld [vmem:[%s622 + $0x14c] sm:$0xf]
        %v2851 = vld [vmem:[%s622 + $0x150] sm:$0xf]
        %v2852 = vld [vmem:[%s622 + $0x154] sm:$0xf]
        %v2853 = vld [vmem:[%s622 + $0x158] sm:$0xf]
        %v2854 = vld [vmem:[%s622 + $0x15c] sm:$0xf]
        %v2855 = vld [vmem:[%s622 + $0x160] sm:$0xf]
        %v2856 = vld [vmem:[%s622 + $0x164] sm:$0xf]
        %v2857 = vld [vmem:[%s622 + $0x168] sm:$0xf]
        %v2858 = vld [vmem:[%s622 + $0x16c] sm:$0xf]
        %v2859 = vld [vmem:[%s622 + $0x170] sm:$0xf]
        %v2860 = vld [vmem:[%s622 + $0x174] sm:$0xf]
        %v2861 = vld [vmem:[%s622 + $0x178] sm:$0xf]
        %v2862 = vld [vmem:[%s622 + $0x17c] sm:$0xf]
        %v2863 = vld [vmem:[%s622 + $0x180] sm:$0xf]
        %v2864 = vld [vmem:[%s622 + $0x184] sm:$0xf]
        %v2865 = vld [vmem:[%s622 + $0x188] sm:$0xf]
        %v2866 = vld [vmem:[%s622 + $0x18c] sm:$0xf]
        %v2867 = vld [vmem:[%s622 + $0x190] sm:$0xf]
        %v2868 = vld [vmem:[%s622 + $0x194] sm:$0xf]
        %v2869 = vld [vmem:[%s622 + $0x198] sm:$0xf]
        %v2870 = vld [vmem:[%s622 + $0x19c] sm:$0xf]
        %v2871 = vld [vmem:[%s622 + $0x1a0] sm:$0xf]
        %v2872 = vld [vmem:[%s622 + $0x1a4] sm:$0xf]
        %v2873 = vld [vmem:[%s622 + $0x1a8] sm:$0xf]
        %v2874 = vld [vmem:[%s622 + $0x1ac] sm:$0xf]
        %v2875 = vld [vmem:[%s622 + $0x1b0] sm:$0xf]
        %v2876 = vld [vmem:[%s622 + $0x1b4] sm:$0xf]
        %v2877 = vld [vmem:[%s622 + $0x1b8] sm:$0xf]
        %v2878 = vld [vmem:[%s622 + $0x1bc] sm:$0xf]
        %v2879 = vld [vmem:[%s622 + $0x1c0] sm:$0xf]
        %v2880 = vld [vmem:[%s622 + $0x1c4] sm:$0xf]
        %v2881 = vld [vmem:[%s622 + $0x1c8] sm:$0xf]
        %v2882 = vld [vmem:[%s622 + $0x1cc] sm:$0xf]
        %v2883 = vld [vmem:[%s622 + $0x1d0] sm:$0xf]
        %v2884 = vld [vmem:[%s622 + $0x1d4] sm:$0xf]
        %v2885 = vld [vmem:[%s622 + $0x1d8] sm:$0xf]
        %v2886 = vld [vmem:[%s622 + $0x1dc] sm:$0xf]
        %v2887 = vld [vmem:[%s622 + $0x1e0] sm:$0xf]
        %v2888 = vld [vmem:[%s622 + $0x1e4] sm:$0xf]
        %v2889 = vld [vmem:[%s622 + $0x1e8] sm:$0xf]
        %v2890 = vld [vmem:[%s622 + $0x1ec] sm:$0xf]
        %v2891 = vld [vmem:[%s622 + $0x1f0] sm:$0xf]
        %v2892 = vld [vmem:[%s622 + $0x1f4] sm:$0xf]
        %v2893 = vld [vmem:[%s622 + $0x1f8] sm:$0xf]
        %v2894 = vld [vmem:[%s622 + $0x1fc] sm:$0xf]
        %v2959 = vunpack.c.l.b16 %v2831
        %v2960 = vunpack.c.l.b16 %v2832
        %v2961 = vunpack.c.l.b16 %v2833
        %v2962 = vunpack.c.l.b16 %v2834
        %v2963 = vunpack.c.l.b16 %v2835
        %v2964 = vunpack.c.l.b16 %v2836
        %v2965 = vunpack.c.l.b16 %v2837
        %v2966 = vunpack.c.l.b16 %v2838
        %v2967 = vunpack.c.l.b16 %v2839
        %v2968 = vunpack.c.l.b16 %v2840
        %v2969 = vunpack.c.l.b16 %v2841
        %v2970 = vunpack.c.l.b16 %v2842
        %v2971 = vunpack.c.l.b16 %v2843
        %v2972 = vunpack.c.l.b16 %v2844
        %v2973 = vunpack.c.l.b16 %v2845
        %v2974 = vunpack.c.l.b16 %v2846
        %v2975 = vunpack.c.l.b16 %v2847
        %v2976 = vunpack.c.l.b16 %v2848
        %v2977 = vunpack.c.l.b16 %v2849
        %v2978 = vunpack.c.l.b16 %v2850
        %v2979 = vunpack.c.l.b16 %v2851
        %v2980 = vunpack.c.l.b16 %v2852
        %v2981 = vunpack.c.l.b16 %v2853
        %v2982 = vunpack.c.l.b16 %v2854
        %v2983 = vunpack.c.l.b16 %v2855
        %v2984 = vunpack.c.l.b16 %v2856
        %v2985 = vunpack.c.l.b16 %v2857
        %v2986 = vunpack.c.l.b16 %v2858
        %v2987 = vunpack.c.l.b16 %v2859
        %v2988 = vunpack.c.l.b16 %v2860
        %v2989 = vunpack.c.l.b16 %v2861
        %v2990 = vunpack.c.l.b16 %v2862
        %v2991 = vunpack.c.l.b16 %v2863
        %v2992 = vunpack.c.l.b16 %v2864
        %v2993 = vunpack.c.l.b16 %v2865
        %v2994 = vunpack.c.l.b16 %v2866
        %v2995 = vunpack.c.l.b16 %v2867
        %v2996 = vunpack.c.l.b16 %v2868
        %v2997 = vunpack.c.l.b16 %v2869
        %v2998 = vunpack.c.l.b16 %v2870
        %v2999 = vunpack.c.l.b16 %v2871
        %v3000 = vunpack.c.l.b16 %v2872
        %v3001 = vunpack.c.l.b16 %v2873
        %v3002 = vunpack.c.l.b16 %v2874
        %v3003 = vunpack.c.l.b16 %v2875
        %v3004 = vunpack.c.l.b16 %v2876
        %v3005 = vunpack.c.l.b16 %v2877
        %v3006 = vunpack.c.l.b16 %v2878
        %v3007 = vunpack.c.l.b16 %v2879
        %v3008 = vunpack.c.l.b16 %v2880
        %v3009 = vunpack.c.l.b16 %v2881
        %v3010 = vunpack.c.l.b16 %v2882
        %v3011 = vunpack.c.l.b16 %v2883
        %v3012 = vunpack.c.l.b16 %v2884
        %v3013 = vunpack.c.l.b16 %v2885
        %v3014 = vunpack.c.l.b16 %v2886
        %v3015 = vunpack.c.l.b16 %v2887
        %v3016 = vunpack.c.l.b16 %v2888
        %v3017 = vunpack.c.l.b16 %v2889
        %v3018 = vunpack.c.l.b16 %v2890
        %v3019 = vunpack.c.l.b16 %v2891
        %v3020 = vunpack.c.l.b16 %v2892
        %v3021 = vunpack.c.l.b16 %v2893
        %v3022 = vunpack.c.l.b16 %v2894
        %v3023 = vpack.c.b16 %v2960, %v2959
        %v3024 = vpack.c.b16 %v2962, %v2961
        %v3025 = vpack.c.b16 %v2964, %v2963
        %v3026 = vpack.c.b16 %v2966, %v2965
        %v3027 = vpack.c.b16 %v2968, %v2967
        %v3028 = vpack.c.b16 %v2970, %v2969
        %v3029 = vpack.c.b16 %v2972, %v2971
        %v3030 = vpack.c.b16 %v2974, %v2973
        %v3031 = vpack.c.b16 %v2976, %v2975
        %v3032 = vpack.c.b16 %v2978, %v2977
        %v3033 = vpack.c.b16 %v2980, %v2979
        %v3034 = vpack.c.b16 %v2982, %v2981
        %v3035 = vpack.c.b16 %v2984, %v2983
        %v3036 = vpack.c.b16 %v2986, %v2985
        %v3037 = vpack.c.b16 %v2988, %v2987
        %v3038 = vpack.c.b16 %v2990, %v2989
        %v3039 = vpack.c.b16 %v2992, %v2991
        %v3040 = vpack.c.b16 %v2994, %v2993
        %v3041 = vpack.c.b16 %v2996, %v2995
        %v3042 = vpack.c.b16 %v2998, %v2997
        %v3043 = vpack.c.b16 %v3000, %v2999
        %v3044 = vpack.c.b16 %v3002, %v3001
        %v3045 = vpack.c.b16 %v3004, %v3003
        %v3046 = vpack.c.b16 %v3006, %v3005
        %v3047 = vpack.c.b16 %v3008, %v3007
        %v3048 = vpack.c.b16 %v3010, %v3009
        %v3049 = vpack.c.b16 %v3012, %v3011
        %v3050 = vpack.c.b16 %v3014, %v3013
        %v3051 = vpack.c.b16 %v3016, %v3015
        %v3052 = vpack.c.b16 %v3018, %v3017
        %v3053 = vpack.c.b16 %v3020, %v3019
        %v3054 = vpack.c.b16 %v3022, %v3021
        %3087 = vmatprep.subr.bf16.mxu0 0
        %3088 = vmatpush1.bf16.msra.mxu0 %v3030
        %3089 = vmatprep.subr.bf16.mxu0 0
        %3090 = vmatpush1.bf16.msra.mxu0 %v3029
        %3091 = vmatprep.subr.bf16.mxu0 0
        %3092 = vmatpush1.bf16.msra.mxu0 %v3028
        %3093 = vmatprep.subr.bf16.mxu0 0
        %3094 = vmatpush1.bf16.msra.mxu0 %v3027
        %3095 = vmatprep.subr.bf16.mxu0 0
        %3096 = vmatpush1.bf16.msra.mxu0 %v3026
        %3097 = vmatprep.subr.bf16.mxu0 0
        %3098 = vmatpush1.bf16.msra.mxu0 %v3025
        %3099 = vmatprep.subr.bf16.mxu0 0
        %3100 = vmatpush1.bf16.msra.mxu0 %v3024
        %3101 = vmatprep.subr.bf16.mxu0 0
        %3102 = vmatpush1.bf16.msra.mxu0 %v3023
        %3103 = vmatprep.subr.bf16.mxu0 0
        %3104 = vmatpush2.bf16.msra.mxu0 %v3038
        %3105 = vmatprep.subr.bf16.mxu0 0
        %3106 = vmatpush2.bf16.msra.mxu0 %v3037
        %3107 = vmatprep.subr.bf16.mxu0 0
        %3108 = vmatpush2.bf16.msra.mxu0 %v3036
        %3109 = vmatprep.subr.bf16.mxu0 0
        %3110 = vmatpush2.bf16.msra.mxu0 %v3035
        %3111 = vmatprep.subr.bf16.mxu0 0
        %3112 = vmatpush2.bf16.msra.mxu0 %v3034
        %3113 = vmatprep.subr.bf16.mxu0 0
        %3114 = vmatpush2.bf16.msra.mxu0 %v3033
        %3115 = vmatprep.subr.bf16.mxu0 0
        %3116 = vmatpush2.bf16.msra.mxu0 %v3032
        %3117 = vmatprep.subr.bf16.mxu0 0
        %3118 = vmatpush2.bf16.msra.mxu0 %v3031
        %3119 = vmatprep.mubr.bf16.mxu0 %v2828
        %3120 = vmatmul.mubr.bf16.gmra.mxu0 %v2827
        %v3121 = vpop.f32.mrf.mxu0
        %v3122 = vadd.f32 0.0, %v3121
        %v3123 = vpop.f32.mrf.mxu0
        %v3124 = vpop.f32.mrf.mxu0
        %v3125 = vadd.f32 0.0, %v3124
        %v3126 = vpop.f32.mrf.mxu0
        %3127 = vdwg.mxu0
        %3128 = vmatprep.subr.bf16.mxu0 0
        %3129 = vmatpush1.bf16.msra.mxu0 %v3046
        %3130 = vmatprep.subr.bf16.mxu0 0
        %3131 = vmatpush1.bf16.msra.mxu0 %v3045
        %3132 = vmatprep.subr.bf16.mxu0 0
        %3133 = vmatpush1.bf16.msra.mxu0 %v3044
        %3134 = vmatprep.subr.bf16.mxu0 0
        %3135 = vmatpush1.bf16.msra.mxu0 %v3043
        %3136 = vmatprep.subr.bf16.mxu0 0
        %3137 = vmatpush1.bf16.msra.mxu0 %v3042
        %3138 = vmatprep.subr.bf16.mxu0 0
        %3139 = vmatpush1.bf16.msra.mxu0 %v3041
        %3140 = vmatprep.subr.bf16.mxu0 0
        %3141 = vmatpush1.bf16.msra.mxu0 %v3040
        %3142 = vmatprep.subr.bf16.mxu0 0
        %3143 = vmatpush1.bf16.msra.mxu0 %v3039
        %3144 = vmatprep.subr.bf16.mxu0 0
        %3145 = vmatpush2.bf16.msra.mxu0 %v3054
        %3146 = vmatprep.subr.bf16.mxu0 0
        %3147 = vmatpush2.bf16.msra.mxu0 %v3053
        %3148 = vmatprep.subr.bf16.mxu0 0
        %3149 = vmatpush2.bf16.msra.mxu0 %v3052
        %3150 = vmatprep.subr.bf16.mxu0 0
        %3151 = vmatpush2.bf16.msra.mxu0 %v3051
        %3152 = vmatprep.subr.bf16.mxu0 0
        %3153 = vmatpush2.bf16.msra.mxu0 %v3050
        %3154 = vmatprep.subr.bf16.mxu0 0
        %3155 = vmatpush2.bf16.msra.mxu0 %v3049
        %3156 = vmatprep.subr.bf16.mxu0 0
        %3157 = vmatpush2.bf16.msra.mxu0 %v3048
        %3158 = vmatprep.subr.bf16.mxu0 0
        %3159 = vmatpush2.bf16.msra.mxu0 %v3047
        %3160 = vmatprep.mubr.bf16.mxu0 %v2830
        %3161 = vmatmul.mubr.bf16.gmra.mxu0 %v2829
        %v3162 = vpop.f32.mrf.mxu0
        %v3163 = vadd.f32 %v3122, %v3162
        %v3164 = vpop.f32.mrf.mxu0
        %v3165 = vpop.f32.mrf.mxu0
        %v3166 = vadd.f32 %v3125, %v3165
        %v3167 = vpop.f32.mrf.mxu0
        %3168 = vdwg.mxu0
        %v3233 = vunpack.c.l.b16 %v2599
        %v3234 = vunpack.c.l.b16 %v2600
        %v3235 = vunpack.c.l.b16 %v2601
        %v3236 = vunpack.c.l.b16 %v2602
        %v3237 = vunpack.c.l.b16 %v2603
        %v3238 = vunpack.c.l.b16 %v2604
        %v3239 = vunpack.c.l.b16 %v2605
        %v3240 = vunpack.c.l.b16 %v2606
        %v3241 = vunpack.c.l.b16 %v2607
        %v3242 = vunpack.c.l.b16 %v2608
        %v3243 = vunpack.c.l.b16 %v2609
        %v3244 = vunpack.c.l.b16 %v2610
        %v3245 = vunpack.c.l.b16 %v2611
        %v3246 = vunpack.c.l.b16 %v2612
        %v3247 = vunpack.c.l.b16 %v2613
        %v3248 = vunpack.c.l.b16 %v2614
        %v3249 = vunpack.c.l.b16 %v2615
        %v3250 = vunpack.c.l.b16 %v2616
        %v3251 = vunpack.c.l.b16 %v2617
        %v3252 = vunpack.c.l.b16 %v2618
        %v3253 = vunpack.c.l.b16 %v2619
        %v3254 = vunpack.c.l.b16 %v2620
        %v3255 = vunpack.c.l.b16 %v2621
        %v3256 = vunpack.c.l.b16 %v2622
        %v3257 = vunpack.c.l.b16 %v2623
        %v3258 = vunpack.c.l.b16 %v2624
        %v3259 = vunpack.c.l.b16 %v2625
        %v3260 = vunpack.c.l.b16 %v2626
        %v3261 = vunpack.c.l.b16 %v2627
        %v3262 = vunpack.c.l.b16 %v2628
        %v3263 = vunpack.c.l.b16 %v2629
        %v3264 = vunpack.c.l.b16 %v2630
        %v3265 = vunpack.c.l.b16 %v2631
        %v3266 = vunpack.c.l.b16 %v2632
        %v3267 = vunpack.c.l.b16 %v2633
        %v3268 = vunpack.c.l.b16 %v2634
        %v3269 = vunpack.c.l.b16 %v2635
        %v3270 = vunpack.c.l.b16 %v2636
        %v3271 = vunpack.c.l.b16 %v2637
        %v3272 = vunpack.c.l.b16 %v2638
        %v3273 = vunpack.c.l.b16 %v2639
        %v3274 = vunpack.c.l.b16 %v2640
        %v3275 = vunpack.c.l.b16 %v2641
        %v3276 = vunpack.c.l.b16 %v2642
        %v3277 = vunpack.c.l.b16 %v2643
        %v3278 = vunpack.c.l.b16 %v2644
        %v3279 = vunpack.c.l.b16 %v2645
        %v3280 = vunpack.c.l.b16 %v2646
        %v3281 = vunpack.c.l.b16 %v2647
        %v3282 = vunpack.c.l.b16 %v2648
        %v3283 = vunpack.c.l.b16 %v2649
        %v3284 = vunpack.c.l.b16 %v2650
        %v3285 = vunpack.c.l.b16 %v2651
        %v3286 = vunpack.c.l.b16 %v2652
        %v3287 = vunpack.c.l.b16 %v2653
        %v3288 = vunpack.c.l.b16 %v2654
        %v3289 = vunpack.c.l.b16 %v2655
        %v3290 = vunpack.c.l.b16 %v2656
        %v3291 = vunpack.c.l.b16 %v2657
        %v3292 = vunpack.c.l.b16 %v2658
        %v3293 = vunpack.c.l.b16 %v2659
        %v3294 = vunpack.c.l.b16 %v2660
        %v3295 = vunpack.c.l.b16 %v2661
        %v3296 = vunpack.c.l.b16 %v2662
        %v3297 = vpack.c.b16 %v3234, %v3233
        %v3298 = vpack.c.b16 %v3236, %v3235
        %v3299 = vpack.c.b16 %v3238, %v3237
        %v3300 = vpack.c.b16 %v3240, %v3239
        %v3301 = vpack.c.b16 %v3242, %v3241
        %v3302 = vpack.c.b16 %v3244, %v3243
        %v3303 = vpack.c.b16 %v3246, %v3245
        %v3304 = vpack.c.b16 %v3248, %v3247
        %v3305 = vpack.c.b16 %v3250, %v3249
        %v3306 = vpack.c.b16 %v3252, %v3251
        %v3307 = vpack.c.b16 %v3254, %v3253
        %v3308 = vpack.c.b16 %v3256, %v3255
        %v3309 = vpack.c.b16 %v3258, %v3257
        %v3310 = vpack.c.b16 %v3260, %v3259
        %v3311 = vpack.c.b16 %v3262, %v3261
        %v3312 = vpack.c.b16 %v3264, %v3263
        %v3313 = vpack.c.b16 %v3266, %v3265
        %v3314 = vpack.c.b16 %v3268, %v3267
        %v3315 = vpack.c.b16 %v3270, %v3269
        %v3316 = vpack.c.b16 %v3272, %v3271
        %v3317 = vpack.c.b16 %v3274, %v3273
        %v3318 = vpack.c.b16 %v3276, %v3275
        %v3319 = vpack.c.b16 %v3278, %v3277
        %v3320 = vpack.c.b16 %v3280, %v3279
        %v3321 = vpack.c.b16 %v3282, %v3281
        %v3322 = vpack.c.b16 %v3284, %v3283
        %v3323 = vpack.c.b16 %v3286, %v3285
        %v3324 = vpack.c.b16 %v3288, %v3287
        %v3325 = vpack.c.b16 %v3290, %v3289
        %v3326 = vpack.c.b16 %v3292, %v3291
        %v3327 = vpack.c.b16 %v3294, %v3293
        %v3328 = vpack.c.b16 %v3296, %v3295
        %3361 = vmatprep.subr.bf16.mxu0 0
        %3362 = vmatpush1.bf16.msra.mxu0 %v3304
        %3363 = vmatprep.subr.bf16.mxu0 0
        %3364 = vmatpush1.bf16.msra.mxu0 %v3303
        %3365 = vmatprep.subr.bf16.mxu0 0
        %3366 = vmatpush1.bf16.msra.mxu0 %v3302
        %3367 = vmatprep.subr.bf16.mxu0 0
        %3368 = vmatpush1.bf16.msra.mxu0 %v3301
        %3369 = vmatprep.subr.bf16.mxu0 0
        %3370 = vmatpush1.bf16.msra.mxu0 %v3300
        %3371 = vmatprep.subr.bf16.mxu0 0
        %3372 = vmatpush1.bf16.msra.mxu0 %v3299
        %3373 = vmatprep.subr.bf16.mxu0 0
        %3374 = vmatpush1.bf16.msra.mxu0 %v3298
        %3375 = vmatprep.subr.bf16.mxu0 0
        %3376 = vmatpush1.bf16.msra.mxu0 %v3297
        %3377 = vmatprep.subr.bf16.mxu0 0
        %3378 = vmatpush2.bf16.msra.mxu0 %v3312
        %3379 = vmatprep.subr.bf16.mxu0 0
        %3380 = vmatpush2.bf16.msra.mxu0 %v3311
        %3381 = vmatprep.subr.bf16.mxu0 0
        %3382 = vmatpush2.bf16.msra.mxu0 %v3310
        %3383 = vmatprep.subr.bf16.mxu0 0
        %3384 = vmatpush2.bf16.msra.mxu0 %v3309
        %3385 = vmatprep.subr.bf16.mxu0 0
        %3386 = vmatpush2.bf16.msra.mxu0 %v3308
        %3387 = vmatprep.subr.bf16.mxu0 0
        %3388 = vmatpush2.bf16.msra.mxu0 %v3307
        %3389 = vmatprep.subr.bf16.mxu0 0
        %3390 = vmatpush2.bf16.msra.mxu0 %v3306
        %3391 = vmatprep.subr.bf16.mxu0 0
        %3392 = vmatpush2.bf16.msra.mxu0 %v3305
        %3393 = vmatprep.mubr.bf16.mxu0 %v2596
        %3394 = vmatmul.mubr.bf16.gmra.mxu0 %v2595
        %v3395 = vpop.f32.mrf.mxu0
        %v3396 = vadd.f32 %v3163, %v3395
        %v3397 = vpop.f32.mrf.mxu0
        %v3398 = vpop.f32.mrf.mxu0
        %v3399 = vadd.f32 %v3166, %v3398
        %v3400 = vpop.f32.mrf.mxu0
        %3401 = vdwg.mxu0
        %3402 = vmatprep.subr.bf16.mxu0 0
        %3403 = vmatpush1.bf16.msra.mxu0 %v3320
        %3404 = vmatprep.subr.bf16.mxu0 0
        %3405 = vmatpush1.bf16.msra.mxu0 %v3319
        %3406 = vmatprep.subr.bf16.mxu0 0
        %3407 = vmatpush1.bf16.msra.mxu0 %v3318
        %3408 = vmatprep.subr.bf16.mxu0 0
        %3409 = vmatpush1.bf16.msra.mxu0 %v3317
        %3410 = vmatprep.subr.bf16.mxu0 0
        %3411 = vmatpush1.bf16.msra.mxu0 %v3316
        %3412 = vmatprep.subr.bf16.mxu0 0
        %3413 = vmatpush1.bf16.msra.mxu0 %v3315
        %3414 = vmatprep.subr.bf16.mxu0 0
        %3415 = vmatpush1.bf16.msra.mxu0 %v3314
        %3416 = vmatprep.subr.bf16.mxu0 0
        %3417 = vmatpush1.bf16.msra.mxu0 %v3313
        %3418 = vmatprep.subr.bf16.mxu0 0
        %3419 = vmatpush2.bf16.msra.mxu0 %v3328
        %3420 = vmatprep.subr.bf16.mxu0 0
        %3421 = vmatpush2.bf16.msra.mxu0 %v3327
        %3422 = vmatprep.subr.bf16.mxu0 0
        %3423 = vmatpush2.bf16.msra.mxu0 %v3326
        %3424 = vmatprep.subr.bf16.mxu0 0
        %3425 = vmatpush2.bf16.msra.mxu0 %v3325
        %3426 = vmatprep.subr.bf16.mxu0 0
        %3427 = vmatpush2.bf16.msra.mxu0 %v3324
        %3428 = vmatprep.subr.bf16.mxu0 0
        %3429 = vmatpush2.bf16.msra.mxu0 %v3323
        %3430 = vmatprep.subr.bf16.mxu0 0
        %3431 = vmatpush2.bf16.msra.mxu0 %v3322
        %3432 = vmatprep.subr.bf16.mxu0 0
        %3433 = vmatpush2.bf16.msra.mxu0 %v3321
        %3434 = vmatprep.mubr.bf16.mxu0 %v2598
        %3435 = vmatmul.mubr.bf16.gmra.mxu0 %v2597
        %v3436 = vpop.f32.mrf.mxu0
        %v3437 = vadd.f32 %v3396, %v3436
        %v3438 = vpop.f32.mrf.mxu0
        %v3439 = vpop.f32.mrf.mxu0
        %v3440 = vadd.f32 %v3399, %v3439
        %v3441 = vpop.f32.mrf.mxu0
        %3442 = vdwg.mxu0
        %v3443 = vld [vmem:[%s613 + $0x20] sm:$0xff]
        %v3444 = vld [vmem:[%s613 + $0x28] sm:$0xff]
        %v3445 = vld [vmem:[%s613 + $0x60] sm:$0xff]
        %v3446 = vld [vmem:[%s613 + $0x68] sm:$0xff]
        %v3447 = vld [vmem:[%s613 + $0xa0] sm:$0xff]
        %v3448 = vld [vmem:[%s613 + $0xa8] sm:$0xff]
        %v3449 = vld [vmem:[%s613 + $0xe0] sm:$0xff]
        %v3450 = vld [vmem:[%s613 + $0xe8] sm:$0xff]
        %v3451 = vld [vmem:[%s617 + $0x8] sm:$0xf]
        %v3453 = vlaneseq
        %v3454 = vshrl.u32 %v3453, 7
        %v3455 = vsub.s32 0, %v3454
        %v3456 = vrot.slane %v3451, %v3455
        %v3457 = vlaneseq
        %v3458 = vshrl.u32 %v3457, 7
        %v3459 = vsub.s32 1, %v3458
        %v3460 = vrot.slane %v3451, %v3459
        %v3461 = vlaneseq
        %v3462 = vshrl.u32 %v3461, 7
        %v3463 = vsub.s32 2, %v3462
        %v3464 = vrot.slane %v3451, %v3463
        %v3465 = vlaneseq
        %v3466 = vshrl.u32 %v3465, 7
        %v3467 = vsub.s32 3, %v3466
        %v3468 = vrot.slane %v3451, %v3467
        %v3481 = vunpack.c.l.b16 %v3443
        %v3482 = vunpack.c.h.b16 %v3443
        %v3483 = vunpack.c.l.b16 %v3444
        %v3484 = vunpack.c.h.b16 %v3444
        %v3485 = vunpack.c.l.b16 %v3445
        %v3486 = vunpack.c.h.b16 %v3445
        %v3487 = vunpack.c.l.b16 %v3446
        %v3488 = vunpack.c.h.b16 %v3446
        %v3489 = vunpack.c.l.b16 %v3447
        %v3490 = vunpack.c.h.b16 %v3447
        %v3491 = vunpack.c.l.b16 %v3448
        %v3492 = vunpack.c.h.b16 %v3448
        %v3493 = vunpack.c.l.b16 %v3449
        %v3494 = vunpack.c.h.b16 %v3449
        %v3495 = vunpack.c.l.b16 %v3450
        %v3496 = vunpack.c.h.b16 %v3450
        %v3497 = vpack.c.b16 %v3485, %v3481
        %v3498 = vpack.c.b16 %v3486, %v3482
        %v3499 = vpack.c.b16 %v3487, %v3483
        %v3500 = vpack.c.b16 %v3488, %v3484
        %v3501 = vpack.c.b16 %v3493, %v3489
        %v3502 = vpack.c.b16 %v3494, %v3490
        %v3503 = vpack.c.b16 %v3495, %v3491
        %v3504 = vpack.c.b16 %v3496, %v3492
        %3513 = vmatprep.subr.bf16.mxu0 0
        %3514 = vmatpush1.bf16.msra.mxu0 0
        %3515 = vmatprep.subr.bf16.mxu0 0
        %3516 = vmatpush1.bf16.msra.mxu0 0
        %3517 = vmatprep.subr.bf16.mxu0 0
        %3518 = vmatpush1.bf16.msra.mxu0 0
        %3519 = vmatprep.subr.bf16.mxu0 0
        %3520 = vmatpush1.bf16.msra.mxu0 0
        %3521 = vmatprep.subr.bf16.mxu0 0
        %3522 = vmatpush1.bf16.msra.mxu0 0
        %3523 = vmatprep.subr.bf16.mxu0 0
        %3524 = vmatpush1.bf16.msra.mxu0 0
        %3525 = vmatprep.subr.bf16.mxu0 %v3502
        %3526 = vmatpush1.bf16.msra.mxu0 %v3501
        %3527 = vmatprep.subr.bf16.mxu0 %v3498
        %3528 = vmatpush1.bf16.msra.mxu0 %v3497
        %3529 = vmatprep.subr.bf16.mxu0 0
        %3530 = vmatpush2.bf16.msra.mxu0 0
        %3531 = vmatprep.subr.bf16.mxu0 0
        %3532 = vmatpush2.bf16.msra.mxu0 0
        %3533 = vmatprep.subr.bf16.mxu0 0
        %3534 = vmatpush2.bf16.msra.mxu0 0
        %3535 = vmatprep.subr.bf16.mxu0 0
        %3536 = vmatpush2.bf16.msra.mxu0 0
        %3537 = vmatprep.subr.bf16.mxu0 0
        %3538 = vmatpush2.bf16.msra.mxu0 0
        %3539 = vmatprep.subr.bf16.mxu0 0
        %3540 = vmatpush2.bf16.msra.mxu0 0
        %3541 = vmatprep.subr.bf16.mxu0 0
        %3542 = vmatpush2.bf16.msra.mxu0 0
        %3543 = vmatprep.subr.bf16.mxu0 0
        %3544 = vmatpush2.bf16.msra.mxu0 0
        %3545 = vmatprep.mubr.bf16.mxu0 0
        %3546 = vmatmul.mubr.bf16.gmra.mxu0 %v2499
        %v3547 = vpop.f32.mrf.mxu0
        %v3548 = vadd.f32 %v3456, %v3547
        %v3549 = vpop.f32.mrf.mxu0
        %v3550 = vadd.f32 %v3460, %v3549
        %v3551 = vpop.f32.mrf.mxu0
        %v3552 = vadd.f32 %v3456, %v3551
        %v3553 = vpop.f32.mrf.mxu0
        %v3554 = vadd.f32 %v3460, %v3553
        %3555 = vdwg.mxu0
        %3556 = vmatprep.subr.bf16.mxu0 0
        %3557 = vmatpush1.bf16.msra.mxu0 0
        %3558 = vmatprep.subr.bf16.mxu0 0
        %3559 = vmatpush1.bf16.msra.mxu0 0
        %3560 = vmatprep.subr.bf16.mxu0 0
        %3561 = vmatpush1.bf16.msra.mxu0 0
        %3562 = vmatprep.subr.bf16.mxu0 0
        %3563 = vmatpush1.bf16.msra.mxu0 0
        %3564 = vmatprep.subr.bf16.mxu0 0
        %3565 = vmatpush1.bf16.msra.mxu0 0
        %3566 = vmatprep.subr.bf16.mxu0 0
        %3567 = vmatpush1.bf16.msra.mxu0 0
        %3568 = vmatprep.subr.bf16.mxu0 %v3504
        %3569 = vmatpush1.bf16.msra.mxu0 %v3503
        %3570 = vmatprep.subr.bf16.mxu0 %v3500
        %3571 = vmatpush1.bf16.msra.mxu0 %v3499
        %3572 = vmatprep.subr.bf16.mxu0 0
        %3573 = vmatpush2.bf16.msra.mxu0 0
        %3574 = vmatprep.subr.bf16.mxu0 0
        %3575 = vmatpush2.bf16.msra.mxu0 0
        %3576 = vmatprep.subr.bf16.mxu0 0
        %3577 = vmatpush2.bf16.msra.mxu0 0
        %3578 = vmatprep.subr.bf16.mxu0 0
        %3579 = vmatpush2.bf16.msra.mxu0 0
        %3580 = vmatprep.subr.bf16.mxu0 0
        %3581 = vmatpush2.bf16.msra.mxu0 0
        %3582 = vmatprep.subr.bf16.mxu0 0
        %3583 = vmatpush2.bf16.msra.mxu0 0
        %3584 = vmatprep.subr.bf16.mxu0 0
        %3585 = vmatpush2.bf16.msra.mxu0 0
        %3586 = vmatprep.subr.bf16.mxu0 0
        %3587 = vmatpush2.bf16.msra.mxu0 0
        %3588 = vmatprep.mubr.bf16.mxu0 0
        %3589 = vmatmul.mubr.bf16.gmra.mxu0 %v2499
        %v3590 = vpop.f32.mrf.mxu0
        %v3591 = vadd.f32 %v3464, %v3590
        %v3592 = vpop.f32.mrf.mxu0
        %v3593 = vadd.f32 %v3468, %v3592
        %v3594 = vpop.f32.mrf.mxu0
        %v3595 = vadd.f32 %v3464, %v3594
        %v3596 = vpop.f32.mrf.mxu0
        %v3597 = vadd.f32 %v3468, %v3596
        %3598 = vdwg.mxu0
        %v3599 = vmax.f32 %v3548, 0.0
        %v3600 = vmax.f32 %v3550, 0.0
        %v3601 = vmax.f32 %v3591, 0.0
        %v3602 = vmax.f32 %v3593, 0.0
        %v3603 = vmax.f32 %v3552, 0.0
        %v3604 = vmax.f32 %v3554, 0.0
        %v3605 = vmax.f32 %v3595, 0.0
        %v3606 = vmax.f32 %v3597, 0.0
        %v3607 = vpack.c.bf16 %v3603, %v3599
        %v3608 = vpack.c.bf16 %v3604, %v3600
        %v3609 = vpack.c.bf16 %v3605, %v3601
        %v3610 = vpack.c.bf16 %v3606, %v3602
        %v3611 = vld [vmem:[%s622 + $0x200] sm:$0xf]
        %v3612 = vld [vmem:[%s622 + $0x204] sm:$0xf]
        %v3613 = vld [vmem:[%s622 + $0x208] sm:$0xf]
        %v3614 = vld [vmem:[%s622 + $0x20c] sm:$0xf]
        %v3615 = vld [vmem:[%s622 + $0x210] sm:$0xf]
        %v3616 = vld [vmem:[%s622 + $0x214] sm:$0xf]
        %v3617 = vld [vmem:[%s622 + $0x218] sm:$0xf]
        %v3618 = vld [vmem:[%s622 + $0x21c] sm:$0xf]
        %v3619 = vld [vmem:[%s622 + $0x220] sm:$0xf]
        %v3620 = vld [vmem:[%s622 + $0x224] sm:$0xf]
        %v3621 = vld [vmem:[%s622 + $0x228] sm:$0xf]
        %v3622 = vld [vmem:[%s622 + $0x22c] sm:$0xf]
        %v3623 = vld [vmem:[%s622 + $0x230] sm:$0xf]
        %v3624 = vld [vmem:[%s622 + $0x234] sm:$0xf]
        %v3625 = vld [vmem:[%s622 + $0x238] sm:$0xf]
        %v3626 = vld [vmem:[%s622 + $0x23c] sm:$0xf]
        %v3627 = vld [vmem:[%s622 + $0x240] sm:$0xf]
        %v3628 = vld [vmem:[%s622 + $0x244] sm:$0xf]
        %v3629 = vld [vmem:[%s622 + $0x248] sm:$0xf]
        %v3630 = vld [vmem:[%s622 + $0x24c] sm:$0xf]
        %v3631 = vld [vmem:[%s622 + $0x250] sm:$0xf]
        %v3632 = vld [vmem:[%s622 + $0x254] sm:$0xf]
        %v3633 = vld [vmem:[%s622 + $0x258] sm:$0xf]
        %v3634 = vld [vmem:[%s622 + $0x25c] sm:$0xf]
        %v3635 = vld [vmem:[%s622 + $0x260] sm:$0xf]
        %v3636 = vld [vmem:[%s622 + $0x264] sm:$0xf]
        %v3637 = vld [vmem:[%s622 + $0x268] sm:$0xf]
        %v3638 = vld [vmem:[%s622 + $0x26c] sm:$0xf]
        %v3639 = vld [vmem:[%s622 + $0x270] sm:$0xf]
        %v3640 = vld [vmem:[%s622 + $0x274] sm:$0xf]
        %v3641 = vld [vmem:[%s622 + $0x278] sm:$0xf]
        %v3642 = vld [vmem:[%s622 + $0x27c] sm:$0xf]
        %v3643 = vld [vmem:[%s622 + $0x280] sm:$0xf]
        %v3644 = vld [vmem:[%s622 + $0x284] sm:$0xf]
        %v3645 = vld [vmem:[%s622 + $0x288] sm:$0xf]
        %v3646 = vld [vmem:[%s622 + $0x28c] sm:$0xf]
        %v3647 = vld [vmem:[%s622 + $0x290] sm:$0xf]
        %v3648 = vld [vmem:[%s622 + $0x294] sm:$0xf]
        %v3649 = vld [vmem:[%s622 + $0x298] sm:$0xf]
        %v3650 = vld [vmem:[%s622 + $0x29c] sm:$0xf]
        %v3651 = vld [vmem:[%s622 + $0x2a0] sm:$0xf]
        %v3652 = vld [vmem:[%s622 + $0x2a4] sm:$0xf]
        %v3653 = vld [vmem:[%s622 + $0x2a8] sm:$0xf]
        %v3654 = vld [vmem:[%s622 + $0x2ac] sm:$0xf]
        %v3655 = vld [vmem:[%s622 + $0x2b0] sm:$0xf]
        %v3656 = vld [vmem:[%s622 + $0x2b4] sm:$0xf]
        %v3657 = vld [vmem:[%s622 + $0x2b8] sm:$0xf]
        %v3658 = vld [vmem:[%s622 + $0x2bc] sm:$0xf]
        %v3659 = vld [vmem:[%s622 + $0x2c0] sm:$0xf]
        %v3660 = vld [vmem:[%s622 + $0x2c4] sm:$0xf]
        %v3661 = vld [vmem:[%s622 + $0x2c8] sm:$0xf]
        %v3662 = vld [vmem:[%s622 + $0x2cc] sm:$0xf]
        %v3663 = vld [vmem:[%s622 + $0x2d0] sm:$0xf]
        %v3664 = vld [vmem:[%s622 + $0x2d4] sm:$0xf]
        %v3665 = vld [vmem:[%s622 + $0x2d8] sm:$0xf]
        %v3666 = vld [vmem:[%s622 + $0x2dc] sm:$0xf]
        %v3667 = vld [vmem:[%s622 + $0x2e0] sm:$0xf]
        %v3668 = vld [vmem:[%s622 + $0x2e4] sm:$0xf]
        %v3669 = vld [vmem:[%s622 + $0x2e8] sm:$0xf]
        %v3670 = vld [vmem:[%s622 + $0x2ec] sm:$0xf]
        %v3671 = vld [vmem:[%s622 + $0x2f0] sm:$0xf]
        %v3672 = vld [vmem:[%s622 + $0x2f4] sm:$0xf]
        %v3673 = vld [vmem:[%s622 + $0x2f8] sm:$0xf]
        %v3674 = vld [vmem:[%s622 + $0x2fc] sm:$0xf]
        %v3739 = vunpack.c.l.b16 %v3611
        %v3740 = vunpack.c.l.b16 %v3612
        %v3741 = vunpack.c.l.b16 %v3613
        %v3742 = vunpack.c.l.b16 %v3614
        %v3743 = vunpack.c.l.b16 %v3615
        %v3744 = vunpack.c.l.b16 %v3616
        %v3745 = vunpack.c.l.b16 %v3617
        %v3746 = vunpack.c.l.b16 %v3618
        %v3747 = vunpack.c.l.b16 %v3619
        %v3748 = vunpack.c.l.b16 %v3620
        %v3749 = vunpack.c.l.b16 %v3621
        %v3750 = vunpack.c.l.b16 %v3622
        %v3751 = vunpack.c.l.b16 %v3623
        %v3752 = vunpack.c.l.b16 %v3624
        %v3753 = vunpack.c.l.b16 %v3625
        %v3754 = vunpack.c.l.b16 %v3626
        %v3755 = vunpack.c.l.b16 %v3627
        %v3756 = vunpack.c.l.b16 %v3628
        %v3757 = vunpack.c.l.b16 %v3629
        %v3758 = vunpack.c.l.b16 %v3630
        %v3759 = vunpack.c.l.b16 %v3631
        %v3760 = vunpack.c.l.b16 %v3632
        %v3761 = vunpack.c.l.b16 %v3633
        %v3762 = vunpack.c.l.b16 %v3634
        %v3763 = vunpack.c.l.b16 %v3635
        %v3764 = vunpack.c.l.b16 %v3636
        %v3765 = vunpack.c.l.b16 %v3637
        %v3766 = vunpack.c.l.b16 %v3638
        %v3767 = vunpack.c.l.b16 %v3639
        %v3768 = vunpack.c.l.b16 %v3640
        %v3769 = vunpack.c.l.b16 %v3641
        %v3770 = vunpack.c.l.b16 %v3642
        %v3771 = vunpack.c.l.b16 %v3643
        %v3772 = vunpack.c.l.b16 %v3644
        %v3773 = vunpack.c.l.b16 %v3645
        %v3774 = vunpack.c.l.b16 %v3646
        %v3775 = vunpack.c.l.b16 %v3647
        %v3776 = vunpack.c.l.b16 %v3648
        %v3777 = vunpack.c.l.b16 %v3649
        %v3778 = vunpack.c.l.b16 %v3650
        %v3779 = vunpack.c.l.b16 %v3651
        %v3780 = vunpack.c.l.b16 %v3652
        %v3781 = vunpack.c.l.b16 %v3653
        %v3782 = vunpack.c.l.b16 %v3654
        %v3783 = vunpack.c.l.b16 %v3655
        %v3784 = vunpack.c.l.b16 %v3656
        %v3785 = vunpack.c.l.b16 %v3657
        %v3786 = vunpack.c.l.b16 %v3658
        %v3787 = vunpack.c.l.b16 %v3659
        %v3788 = vunpack.c.l.b16 %v3660
        %v3789 = vunpack.c.l.b16 %v3661
        %v3790 = vunpack.c.l.b16 %v3662
        %v3791 = vunpack.c.l.b16 %v3663
        %v3792 = vunpack.c.l.b16 %v3664
        %v3793 = vunpack.c.l.b16 %v3665
        %v3794 = vunpack.c.l.b16 %v3666
        %v3795 = vunpack.c.l.b16 %v3667
        %v3796 = vunpack.c.l.b16 %v3668
        %v3797 = vunpack.c.l.b16 %v3669
        %v3798 = vunpack.c.l.b16 %v3670
        %v3799 = vunpack.c.l.b16 %v3671
        %v3800 = vunpack.c.l.b16 %v3672
        %v3801 = vunpack.c.l.b16 %v3673
        %v3802 = vunpack.c.l.b16 %v3674
        %v3803 = vpack.c.b16 %v3740, %v3739
        %v3804 = vpack.c.b16 %v3742, %v3741
        %v3805 = vpack.c.b16 %v3744, %v3743
        %v3806 = vpack.c.b16 %v3746, %v3745
        %v3807 = vpack.c.b16 %v3748, %v3747
        %v3808 = vpack.c.b16 %v3750, %v3749
        %v3809 = vpack.c.b16 %v3752, %v3751
        %v3810 = vpack.c.b16 %v3754, %v3753
        %v3811 = vpack.c.b16 %v3756, %v3755
        %v3812 = vpack.c.b16 %v3758, %v3757
        %v3813 = vpack.c.b16 %v3760, %v3759
        %v3814 = vpack.c.b16 %v3762, %v3761
        %v3815 = vpack.c.b16 %v3764, %v3763
        %v3816 = vpack.c.b16 %v3766, %v3765
        %v3817 = vpack.c.b16 %v3768, %v3767
        %v3818 = vpack.c.b16 %v3770, %v3769
        %v3819 = vpack.c.b16 %v3772, %v3771
        %v3820 = vpack.c.b16 %v3774, %v3773
        %v3821 = vpack.c.b16 %v3776, %v3775
        %v3822 = vpack.c.b16 %v3778, %v3777
        %v3823 = vpack.c.b16 %v3780, %v3779
        %v3824 = vpack.c.b16 %v3782, %v3781
        %v3825 = vpack.c.b16 %v3784, %v3783
        %v3826 = vpack.c.b16 %v3786, %v3785
        %v3827 = vpack.c.b16 %v3788, %v3787
        %v3828 = vpack.c.b16 %v3790, %v3789
        %v3829 = vpack.c.b16 %v3792, %v3791
        %v3830 = vpack.c.b16 %v3794, %v3793
        %v3831 = vpack.c.b16 %v3796, %v3795
        %v3832 = vpack.c.b16 %v3798, %v3797
        %v3833 = vpack.c.b16 %v3800, %v3799
        %v3834 = vpack.c.b16 %v3802, %v3801
        %3867 = vmatprep.subr.bf16.mxu0 0
        %3868 = vmatpush1.bf16.msra.mxu0 %v3810
        %3869 = vmatprep.subr.bf16.mxu0 0
        %3870 = vmatpush1.bf16.msra.mxu0 %v3809
        %3871 = vmatprep.subr.bf16.mxu0 0
        %3872 = vmatpush1.bf16.msra.mxu0 %v3808
        %3873 = vmatprep.subr.bf16.mxu0 0
        %3874 = vmatpush1.bf16.msra.mxu0 %v3807
        %3875 = vmatprep.subr.bf16.mxu0 0
        %3876 = vmatpush1.bf16.msra.mxu0 %v3806
        %3877 = vmatprep.subr.bf16.mxu0 0
        %3878 = vmatpush1.bf16.msra.mxu0 %v3805
        %3879 = vmatprep.subr.bf16.mxu0 0
        %3880 = vmatpush1.bf16.msra.mxu0 %v3804
        %3881 = vmatprep.subr.bf16.mxu0 0
        %3882 = vmatpush1.bf16.msra.mxu0 %v3803
        %3883 = vmatprep.subr.bf16.mxu0 0
        %3884 = vmatpush2.bf16.msra.mxu0 %v3818
        %3885 = vmatprep.subr.bf16.mxu0 0
        %3886 = vmatpush2.bf16.msra.mxu0 %v3817
        %3887 = vmatprep.subr.bf16.mxu0 0
        %3888 = vmatpush2.bf16.msra.mxu0 %v3816
        %3889 = vmatprep.subr.bf16.mxu0 0
        %3890 = vmatpush2.bf16.msra.mxu0 %v3815
        %3891 = vmatprep.subr.bf16.mxu0 0
        %3892 = vmatpush2.bf16.msra.mxu0 %v3814
        %3893 = vmatprep.subr.bf16.mxu0 0
        %3894 = vmatpush2.bf16.msra.mxu0 %v3813
        %3895 = vmatprep.subr.bf16.mxu0 0
        %3896 = vmatpush2.bf16.msra.mxu0 %v3812
        %3897 = vmatprep.subr.bf16.mxu0 0
        %3898 = vmatpush2.bf16.msra.mxu0 %v3811
        %3899 = vmatprep.mubr.bf16.mxu0 %v3608
        %3900 = vmatmul.mubr.bf16.gmra.mxu0 %v3607
        %v3901 = vpop.f32.mrf.mxu0
        %v3902 = vadd.f32 0.0, %v3901
        %v3903 = vpop.f32.mrf.mxu0
        %v3904 = vpop.f32.mrf.mxu0
        %v3905 = vadd.f32 0.0, %v3904
        %v3906 = vpop.f32.mrf.mxu0
        %3907 = vdwg.mxu0
        %3908 = vmatprep.subr.bf16.mxu0 0
        %3909 = vmatpush1.bf16.msra.mxu0 %v3826
        %3910 = vmatprep.subr.bf16.mxu0 0
        %3911 = vmatpush1.bf16.msra.mxu0 %v3825
        %3912 = vmatprep.subr.bf16.mxu0 0
        %3913 = vmatpush1.bf16.msra.mxu0 %v3824
        %3914 = vmatprep.subr.bf16.mxu0 0
        %3915 = vmatpush1.bf16.msra.mxu0 %v3823
        %3916 = vmatprep.subr.bf16.mxu0 0
        %3917 = vmatpush1.bf16.msra.mxu0 %v3822
        %3918 = vmatprep.subr.bf16.mxu0 0
        %3919 = vmatpush1.bf16.msra.mxu0 %v3821
        %3920 = vmatprep.subr.bf16.mxu0 0
        %3921 = vmatpush1.bf16.msra.mxu0 %v3820
        %3922 = vmatprep.subr.bf16.mxu0 0
        %3923 = vmatpush1.bf16.msra.mxu0 %v3819
        %3924 = vmatprep.subr.bf16.mxu0 0
        %3925 = vmatpush2.bf16.msra.mxu0 %v3834
        %3926 = vmatprep.subr.bf16.mxu0 0
        %3927 = vmatpush2.bf16.msra.mxu0 %v3833
        %3928 = vmatprep.subr.bf16.mxu0 0
        %3929 = vmatpush2.bf16.msra.mxu0 %v3832
        %3930 = vmatprep.subr.bf16.mxu0 0
        %3931 = vmatpush2.bf16.msra.mxu0 %v3831
        %3932 = vmatprep.subr.bf16.mxu0 0
        %3933 = vmatpush2.bf16.msra.mxu0 %v3830
        %3934 = vmatprep.subr.bf16.mxu0 0
        %3935 = vmatpush2.bf16.msra.mxu0 %v3829
        %3936 = vmatprep.subr.bf16.mxu0 0
        %3937 = vmatpush2.bf16.msra.mxu0 %v3828
        %3938 = vmatprep.subr.bf16.mxu0 0
        %3939 = vmatpush2.bf16.msra.mxu0 %v3827
        %3940 = vmatprep.mubr.bf16.mxu0 %v3610
        %3941 = vmatmul.mubr.bf16.gmra.mxu0 %v3609
        %v3942 = vpop.f32.mrf.mxu0
        %v3943 = vadd.f32 %v3902, %v3942
        %v3944 = vpop.f32.mrf.mxu0
        %v3945 = vpop.f32.mrf.mxu0
        %v3946 = vadd.f32 %v3905, %v3945
        %v3947 = vpop.f32.mrf.mxu0
        %3948 = vdwg.mxu0
        %v3949 = vadd.f32 %v3437, %v3943
        %v3950 = vadd.f32 %v3440, %v3946
        %v3951 = vld [vmem:[%s613 + $0x30] sm:$0xff]
        %v3952 = vld [vmem:[%s613 + $0x38] sm:$0xff]
        %v3953 = vld [vmem:[%s613 + $0x70] sm:$0xff]
        %v3954 = vld [vmem:[%s613 + $0x78] sm:$0xff]
        %v3955 = vld [vmem:[%s613 + $0xb0] sm:$0xff]
        %v3956 = vld [vmem:[%s613 + $0xb8] sm:$0xff]
        %v3957 = vld [vmem:[%s613 + $0xf0] sm:$0xff]
        %v3958 = vld [vmem:[%s613 + $0xf8] sm:$0xff]
        %v3959 = vld [vmem:[%s617 + $0xc] sm:$0xf]
        %v3961 = vlaneseq
        %v3962 = vshrl.u32 %v3961, 7
        %v3963 = vsub.s32 0, %v3962
        %v3964 = vrot.slane %v3959, %v3963
        %v3965 = vlaneseq
        %v3966 = vshrl.u32 %v3965, 7
        %v3967 = vsub.s32 1, %v3966
        %v3968 = vrot.slane %v3959, %v3967
        %v3969 = vlaneseq
        %v3970 = vshrl.u32 %v3969, 7
        %v3971 = vsub.s32 2, %v3970
        %v3972 = vrot.slane %v3959, %v3971
        %v3973 = vlaneseq
        %v3974 = vshrl.u32 %v3973, 7
        %v3975 = vsub.s32 3, %v3974
        %v3976 = vrot.slane %v3959, %v3975
        %v3989 = vunpack.c.l.b16 %v3951
        %v3990 = vunpack.c.h.b16 %v3951
        %v3991 = vunpack.c.l.b16 %v3952
        %v3992 = vunpack.c.h.b16 %v3952
        %v3993 = vunpack.c.l.b16 %v3953
        %v3994 = vunpack.c.h.b16 %v3953
        %v3995 = vunpack.c.l.b16 %v3954
        %v3996 = vunpack.c.h.b16 %v3954
        %v3997 = vunpack.c.l.b16 %v3955
        %v3998 = vunpack.c.h.b16 %v3955
        %v3999 = vunpack.c.l.b16 %v3956
        %v4000 = vunpack.c.h.b16 %v3956
        %v4001 = vunpack.c.l.b16 %v3957
        %v4002 = vunpack.c.h.b16 %v3957
        %v4003 = vunpack.c.l.b16 %v3958
        %v4004 = vunpack.c.h.b16 %v3958
        %v4005 = vpack.c.b16 %v3993, %v3989
        %v4006 = vpack.c.b16 %v3994, %v3990
        %v4007 = vpack.c.b16 %v3995, %v3991
        %v4008 = vpack.c.b16 %v3996, %v3992
        %v4009 = vpack.c.b16 %v4001, %v3997
        %v4010 = vpack.c.b16 %v4002, %v3998
        %v4011 = vpack.c.b16 %v4003, %v3999
        %v4012 = vpack.c.b16 %v4004, %v4000
        %4021 = vmatprep.subr.bf16.mxu0 0
        %4022 = vmatpush1.bf16.msra.mxu0 0
        %4023 = vmatprep.subr.bf16.mxu0 0
        %4024 = vmatpush1.bf16.msra.mxu0 0
        %4025 = vmatprep.subr.bf16.mxu0 0
        %4026 = vmatpush1.bf16.msra.mxu0 0
        %4027 = vmatprep.subr.bf16.mxu0 0
        %4028 = vmatpush1.bf16.msra.mxu0 0
        %4029 = vmatprep.subr.bf16.mxu0 0
        %4030 = vmatpush1.bf16.msra.mxu0 0
        %4031 = vmatprep.subr.bf16.mxu0 0
        %4032 = vmatpush1.bf16.msra.mxu0 0
        %4033 = vmatprep.subr.bf16.mxu0 %v4010
        %4034 = vmatpush1.bf16.msra.mxu0 %v4009
        %4035 = vmatprep.subr.bf16.mxu0 %v4006
        %4036 = vmatpush1.bf16.msra.mxu0 %v4005
        %4037 = vmatprep.subr.bf16.mxu0 0
        %4038 = vmatpush2.bf16.msra.mxu0 0
        %4039 = vmatprep.subr.bf16.mxu0 0
        %4040 = vmatpush2.bf16.msra.mxu0 0
        %4041 = vmatprep.subr.bf16.mxu0 0
        %4042 = vmatpush2.bf16.msra.mxu0 0
        %4043 = vmatprep.subr.bf16.mxu0 0
        %4044 = vmatpush2.bf16.msra.mxu0 0
        %4045 = vmatprep.subr.bf16.mxu0 0
        %4046 = vmatpush2.bf16.msra.mxu0 0
        %4047 = vmatprep.subr.bf16.mxu0 0
        %4048 = vmatpush2.bf16.msra.mxu0 0
        %4049 = vmatprep.subr.bf16.mxu0 0
        %4050 = vmatpush2.bf16.msra.mxu0 0
        %4051 = vmatprep.subr.bf16.mxu0 0
        %4052 = vmatpush2.bf16.msra.mxu0 0
        %4053 = vmatprep.mubr.bf16.mxu0 0
        %4054 = vmatmul.mubr.bf16.gmra.mxu0 %v2499
        %v4055 = vpop.f32.mrf.mxu0
        %v4056 = vadd.f32 %v3964, %v4055
        %v4057 = vpop.f32.mrf.mxu0
        %v4058 = vadd.f32 %v3968, %v4057
        %v4059 = vpop.f32.mrf.mxu0
        %v4060 = vadd.f32 %v3964, %v4059
        %v4061 = vpop.f32.mrf.mxu0
        %v4062 = vadd.f32 %v3968, %v4061
        %4063 = vdwg.mxu0
        %4064 = vmatprep.subr.bf16.mxu0 0
        %4065 = vmatpush1.bf16.msra.mxu0 0
        %4066 = vmatprep.subr.bf16.mxu0 0
        %4067 = vmatpush1.bf16.msra.mxu0 0
        %4068 = vmatprep.subr.bf16.mxu0 0
        %4069 = vmatpush1.bf16.msra.mxu0 0
        %4070 = vmatprep.subr.bf16.mxu0 0
        %4071 = vmatpush1.bf16.msra.mxu0 0
        %4072 = vmatprep.subr.bf16.mxu0 0
        %4073 = vmatpush1.bf16.msra.mxu0 0
        %4074 = vmatprep.subr.bf16.mxu0 0
        %4075 = vmatpush1.bf16.msra.mxu0 0
        %4076 = vmatprep.subr.bf16.mxu0 %v4012
        %4077 = vmatpush1.bf16.msra.mxu0 %v4011
        %4078 = vmatprep.subr.bf16.mxu0 %v4008
        %4079 = vmatpush1.bf16.msra.mxu0 %v4007
        %4080 = vmatprep.subr.bf16.mxu0 0
        %4081 = vmatpush2.bf16.msra.mxu0 0
        %4082 = vmatprep.subr.bf16.mxu0 0
        %4083 = vmatpush2.bf16.msra.mxu0 0
        %4084 = vmatprep.subr.bf16.mxu0 0
        %4085 = vmatpush2.bf16.msra.mxu0 0
        %4086 = vmatprep.subr.bf16.mxu0 0
        %4087 = vmatpush2.bf16.msra.mxu0 0
        %4088 = vmatprep.subr.bf16.mxu0 0
        %4089 = vmatpush2.bf16.msra.mxu0 0
        %4090 = vmatprep.subr.bf16.mxu0 0
        %4091 = vmatpush2.bf16.msra.mxu0 0
        %4092 = vmatprep.subr.bf16.mxu0 0
        %4093 = vmatpush2.bf16.msra.mxu0 0
        %4094 = vmatprep.subr.bf16.mxu0 0
        %4095 = vmatpush2.bf16.msra.mxu0 0
        %4096 = vmatprep.mubr.bf16.mxu0 0
        %4097 = vmatmul.mubr.bf16.gmra.mxu0 %v2499
        %v4098 = vpop.f32.mrf.mxu0
        %v4099 = vadd.f32 %v3972, %v4098
        %v4100 = vpop.f32.mrf.mxu0
        %v4101 = vadd.f32 %v3976, %v4100
        %v4102 = vpop.f32.mrf.mxu0
        %v4103 = vadd.f32 %v3972, %v4102
        %v4104 = vpop.f32.mrf.mxu0
        %v4105 = vadd.f32 %v3976, %v4104
        %4106 = vdwg.mxu0
        %v4107 = vmax.f32 %v4056, 0.0
        %v4108 = vmax.f32 %v4058, 0.0
        %v4109 = vmax.f32 %v4099, 0.0
        %v4110 = vmax.f32 %v4101, 0.0
        %v4111 = vmax.f32 %v4060, 0.0
        %v4112 = vmax.f32 %v4062, 0.0
        %v4113 = vmax.f32 %v4103, 0.0
        %v4114 = vmax.f32 %v4105, 0.0
        %v4115 = vpack.c.bf16 %v4111, %v4107
        %v4116 = vpack.c.bf16 %v4112, %v4108
        %v4117 = vpack.c.bf16 %v4113, %v4109
        %v4118 = vpack.c.bf16 %v4114, %v4110
        %v4119 = vld [vmem:[%s622 + $0x300] sm:$0xf]
        %v4120 = vld [vmem:[%s622 + $0x304] sm:$0xf]
        %v4121 = vld [vmem:[%s622 + $0x308] sm:$0xf]
        %v4122 = vld [vmem:[%s622 + $0x30c] sm:$0xf]
        %v4123 = vld [vmem:[%s622 + $0x310] sm:$0xf]
        %v4124 = vld [vmem:[%s622 + $0x314] sm:$0xf]
        %v4125 = vld [vmem:[%s622 + $0x318] sm:$0xf]
        %v4126 = vld [vmem:[%s622 + $0x31c] sm:$0xf]
        %v4127 = vld [vmem:[%s622 + $0x320] sm:$0xf]
        %v4128 = vld [vmem:[%s622 + $0x324] sm:$0xf]
        %v4129 = vld [vmem:[%s622 + $0x328] sm:$0xf]
        %v4130 = vld [vmem:[%s622 + $0x32c] sm:$0xf]
        %v4131 = vld [vmem:[%s622 + $0x330] sm:$0xf]
        %v4132 = vld [vmem:[%s622 + $0x334] sm:$0xf]
        %v4133 = vld [vmem:[%s622 + $0x338] sm:$0xf]
        %v4134 = vld [vmem:[%s622 + $0x33c] sm:$0xf]
        %v4135 = vld [vmem:[%s622 + $0x340] sm:$0xf]
        %v4136 = vld [vmem:[%s622 + $0x344] sm:$0xf]
        %v4137 = vld [vmem:[%s622 + $0x348] sm:$0xf]
        %v4138 = vld [vmem:[%s622 + $0x34c] sm:$0xf]
        %v4139 = vld [vmem:[%s622 + $0x350] sm:$0xf]
        %v4140 = vld [vmem:[%s622 + $0x354] sm:$0xf]
        %v4141 = vld [vmem:[%s622 + $0x358] sm:$0xf]
        %v4142 = vld [vmem:[%s622 + $0x35c] sm:$0xf]
        %v4143 = vld [vmem:[%s622 + $0x360] sm:$0xf]
        %v4144 = vld [vmem:[%s622 + $0x364] sm:$0xf]
        %v4145 = vld [vmem:[%s622 + $0x368] sm:$0xf]
        %v4146 = vld [vmem:[%s622 + $0x36c] sm:$0xf]
        %v4147 = vld [vmem:[%s622 + $0x370] sm:$0xf]
        %v4148 = vld [vmem:[%s622 + $0x374] sm:$0xf]
        %v4149 = vld [vmem:[%s622 + $0x378] sm:$0xf]
        %v4150 = vld [vmem:[%s622 + $0x37c] sm:$0xf]
        %v4151 = vld [vmem:[%s622 + $0x380] sm:$0xf]
        %v4152 = vld [vmem:[%s622 + $0x384] sm:$0xf]
        %v4153 = vld [vmem:[%s622 + $0x388] sm:$0xf]
        %v4154 = vld [vmem:[%s622 + $0x38c] sm:$0xf]
        %v4155 = vld [vmem:[%s622 + $0x390] sm:$0xf]
        %v4156 = vld [vmem:[%s622 + $0x394] sm:$0xf]
        %v4157 = vld [vmem:[%s622 + $0x398] sm:$0xf]
        %v4158 = vld [vmem:[%s622 + $0x39c] sm:$0xf]
        %v4159 = vld [vmem:[%s622 + $0x3a0] sm:$0xf]
        %v4160 = vld [vmem:[%s622 + $0x3a4] sm:$0xf]
        %v4161 = vld [vmem:[%s622 + $0x3a8] sm:$0xf]
        %v4162 = vld [vmem:[%s622 + $0x3ac] sm:$0xf]
        %v4163 = vld [vmem:[%s622 + $0x3b0] sm:$0xf]
        %v4164 = vld [vmem:[%s622 + $0x3b4] sm:$0xf]
        %v4165 = vld [vmem:[%s622 + $0x3b8] sm:$0xf]
        %v4166 = vld [vmem:[%s622 + $0x3bc] sm:$0xf]
        %v4167 = vld [vmem:[%s622 + $0x3c0] sm:$0xf]
        %v4168 = vld [vmem:[%s622 + $0x3c4] sm:$0xf]
        %v4169 = vld [vmem:[%s622 + $0x3c8] sm:$0xf]
        %v4170 = vld [vmem:[%s622 + $0x3cc] sm:$0xf]
        %v4171 = vld [vmem:[%s622 + $0x3d0] sm:$0xf]
        %v4172 = vld [vmem:[%s622 + $0x3d4] sm:$0xf]
        %v4173 = vld [vmem:[%s622 + $0x3d8] sm:$0xf]
        %v4174 = vld [vmem:[%s622 + $0x3dc] sm:$0xf]
        %v4175 = vld [vmem:[%s622 + $0x3e0] sm:$0xf]
        %v4176 = vld [vmem:[%s622 + $0x3e4] sm:$0xf]
        %v4177 = vld [vmem:[%s622 + $0x3e8] sm:$0xf]
        %v4178 = vld [vmem:[%s622 + $0x3ec] sm:$0xf]
        %v4179 = vld [vmem:[%s622 + $0x3f0] sm:$0xf]
        %v4180 = vld [vmem:[%s622 + $0x3f4] sm:$0xf]
        %v4181 = vld [vmem:[%s622 + $0x3f8] sm:$0xf]
        %v4182 = vld [vmem:[%s622 + $0x3fc] sm:$0xf]
        %v4247 = vunpack.c.l.b16 %v4119
        %v4248 = vunpack.c.l.b16 %v4120
        %v4249 = vunpack.c.l.b16 %v4121
        %v4250 = vunpack.c.l.b16 %v4122
        %v4251 = vunpack.c.l.b16 %v4123
        %v4252 = vunpack.c.l.b16 %v4124
        %v4253 = vunpack.c.l.b16 %v4125
        %v4254 = vunpack.c.l.b16 %v4126
        %v4255 = vunpack.c.l.b16 %v4127
        %v4256 = vunpack.c.l.b16 %v4128
        %v4257 = vunpack.c.l.b16 %v4129
        %v4258 = vunpack.c.l.b16 %v4130
        %v4259 = vunpack.c.l.b16 %v4131
        %v4260 = vunpack.c.l.b16 %v4132
        %v4261 = vunpack.c.l.b16 %v4133
        %v4262 = vunpack.c.l.b16 %v4134
        %v4263 = vunpack.c.l.b16 %v4135
        %v4264 = vunpack.c.l.b16 %v4136
        %v4265 = vunpack.c.l.b16 %v4137
        %v4266 = vunpack.c.l.b16 %v4138
        %v4267 = vunpack.c.l.b16 %v4139
        %v4268 = vunpack.c.l.b16 %v4140
        %v4269 = vunpack.c.l.b16 %v4141
        %v4270 = vunpack.c.l.b16 %v4142
        %v4271 = vunpack.c.l.b16 %v4143
        %v4272 = vunpack.c.l.b16 %v4144
        %v4273 = vunpack.c.l.b16 %v4145
        %v4274 = vunpack.c.l.b16 %v4146
        %v4275 = vunpack.c.l.b16 %v4147
        %v4276 = vunpack.c.l.b16 %v4148
        %v4277 = vunpack.c.l.b16 %v4149
        %v4278 = vunpack.c.l.b16 %v4150
        %v4279 = vunpack.c.l.b16 %v4151
        %v4280 = vunpack.c.l.b16 %v4152
        %v4281 = vunpack.c.l.b16 %v4153
        %v4282 = vunpack.c.l.b16 %v4154
        %v4283 = vunpack.c.l.b16 %v4155
        %v4284 = vunpack.c.l.b16 %v4156
        %v4285 = vunpack.c.l.b16 %v4157
        %v4286 = vunpack.c.l.b16 %v4158
        %v4287 = vunpack.c.l.b16 %v4159
        %v4288 = vunpack.c.l.b16 %v4160
        %v4289 = vunpack.c.l.b16 %v4161
        %v4290 = vunpack.c.l.b16 %v4162
        %v4291 = vunpack.c.l.b16 %v4163
        %v4292 = vunpack.c.l.b16 %v4164
        %v4293 = vunpack.c.l.b16 %v4165
        %v4294 = vunpack.c.l.b16 %v4166
        %v4295 = vunpack.c.l.b16 %v4167
        %v4296 = vunpack.c.l.b16 %v4168
        %v4297 = vunpack.c.l.b16 %v4169
        %v4298 = vunpack.c.l.b16 %v4170
        %v4299 = vunpack.c.l.b16 %v4171
        %v4300 = vunpack.c.l.b16 %v4172
        %v4301 = vunpack.c.l.b16 %v4173
        %v4302 = vunpack.c.l.b16 %v4174
        %v4303 = vunpack.c.l.b16 %v4175
        %v4304 = vunpack.c.l.b16 %v4176
        %v4305 = vunpack.c.l.b16 %v4177
        %v4306 = vunpack.c.l.b16 %v4178
        %v4307 = vunpack.c.l.b16 %v4179
        %v4308 = vunpack.c.l.b16 %v4180
        %v4309 = vunpack.c.l.b16 %v4181
        %v4310 = vunpack.c.l.b16 %v4182
        %v4311 = vpack.c.b16 %v4248, %v4247
        %v4312 = vpack.c.b16 %v4250, %v4249
        %v4313 = vpack.c.b16 %v4252, %v4251
        %v4314 = vpack.c.b16 %v4254, %v4253
        %v4315 = vpack.c.b16 %v4256, %v4255
        %v4316 = vpack.c.b16 %v4258, %v4257
        %v4317 = vpack.c.b16 %v4260, %v4259
        %v4318 = vpack.c.b16 %v4262, %v4261
        %v4319 = vpack.c.b16 %v4264, %v4263
        %v4320 = vpack.c.b16 %v4266, %v4265
        %v4321 = vpack.c.b16 %v4268, %v4267
        %v4322 = vpack.c.b16 %v4270, %v4269
        %v4323 = vpack.c.b16 %v4272, %v4271
        %v4324 = vpack.c.b16 %v4274, %v4273
        %v4325 = vpack.c.b16 %v4276, %v4275
        %v4326 = vpack.c.b16 %v4278, %v4277
        %v4327 = vpack.c.b16 %v4280, %v4279
        %v4328 = vpack.c.b16 %v4282, %v4281
        %v4329 = vpack.c.b16 %v4284, %v4283
        %v4330 = vpack.c.b16 %v4286, %v4285
        %v4331 = vpack.c.b16 %v4288, %v4287
        %v4332 = vpack.c.b16 %v4290, %v4289
        %v4333 = vpack.c.b16 %v4292, %v4291
        %v4334 = vpack.c.b16 %v4294, %v4293
        %v4335 = vpack.c.b16 %v4296, %v4295
        %v4336 = vpack.c.b16 %v4298, %v4297
        %v4337 = vpack.c.b16 %v4300, %v4299
        %v4338 = vpack.c.b16 %v4302, %v4301
        %v4339 = vpack.c.b16 %v4304, %v4303
        %v4340 = vpack.c.b16 %v4306, %v4305
        %v4341 = vpack.c.b16 %v4308, %v4307
        %v4342 = vpack.c.b16 %v4310, %v4309
        %4375 = vmatprep.subr.bf16.mxu0 0
        %4376 = vmatpush1.bf16.msra.mxu0 %v4318
        %4377 = vmatprep.subr.bf16.mxu0 0
        %4378 = vmatpush1.bf16.msra.mxu0 %v4317
        %4379 = vmatprep.subr.bf16.mxu0 0
        %4380 = vmatpush1.bf16.msra.mxu0 %v4316
        %4381 = vmatprep.subr.bf16.mxu0 0
        %4382 = vmatpush1.bf16.msra.mxu0 %v4315
        %4383 = vmatprep.subr.bf16.mxu0 0
        %4384 = vmatpush1.bf16.msra.mxu0 %v4314
        %4385 = vmatprep.subr.bf16.mxu0 0
        %4386 = vmatpush1.bf16.msra.mxu0 %v4313
        %4387 = vmatprep.subr.bf16.mxu0 0
        %4388 = vmatpush1.bf16.msra.mxu0 %v4312
        %4389 = vmatprep.subr.bf16.mxu0 0
        %4390 = vmatpush1.bf16.msra.mxu0 %v4311
        %4391 = vmatprep.subr.bf16.mxu0 0
        %4392 = vmatpush2.bf16.msra.mxu0 %v4326
        %4393 = vmatprep.subr.bf16.mxu0 0
        %4394 = vmatpush2.bf16.msra.mxu0 %v4325
        %4395 = vmatprep.subr.bf16.mxu0 0
        %4396 = vmatpush2.bf16.msra.mxu0 %v4324
        %4397 = vmatprep.subr.bf16.mxu0 0
        %4398 = vmatpush2.bf16.msra.mxu0 %v4323
        %4399 = vmatprep.subr.bf16.mxu0 0
        %4400 = vmatpush2.bf16.msra.mxu0 %v4322
        %4401 = vmatprep.subr.bf16.mxu0 0
        %4402 = vmatpush2.bf16.msra.mxu0 %v4321
        %4403 = vmatprep.subr.bf16.mxu0 0
        %4404 = vmatpush2.bf16.msra.mxu0 %v4320
        %4405 = vmatprep.subr.bf16.mxu0 0
        %4406 = vmatpush2.bf16.msra.mxu0 %v4319
        %4407 = vmatprep.mubr.bf16.mxu0 %v4116
        %4408 = vmatmul.mubr.bf16.gmra.mxu0 %v4115
        %v4409 = vpop.f32.mrf.mxu0
        %v4410 = vadd.f32 0.0, %v4409
        %v4411 = vpop.f32.mrf.mxu0
        %v4412 = vpop.f32.mrf.mxu0
        %v4413 = vadd.f32 0.0, %v4412
        %v4414 = vpop.f32.mrf.mxu0
        %4415 = vdwg.mxu0
        %4416 = vmatprep.subr.bf16.mxu0 0
        %4417 = vmatpush1.bf16.msra.mxu0 %v4334
        %4418 = vmatprep.subr.bf16.mxu0 0
        %4419 = vmatpush1.bf16.msra.mxu0 %v4333
        %4420 = vmatprep.subr.bf16.mxu0 0
        %4421 = vmatpush1.bf16.msra.mxu0 %v4332
        %4422 = vmatprep.subr.bf16.mxu0 0
        %4423 = vmatpush1.bf16.msra.mxu0 %v4331
        %4424 = vmatprep.subr.bf16.mxu0 0
        %4425 = vmatpush1.bf16.msra.mxu0 %v4330
        %4426 = vmatprep.subr.bf16.mxu0 0
        %4427 = vmatpush1.bf16.msra.mxu0 %v4329
        %4428 = vmatprep.subr.bf16.mxu0 0
        %4429 = vmatpush1.bf16.msra.mxu0 %v4328
        %4430 = vmatprep.subr.bf16.mxu0 0
        %4431 = vmatpush1.bf16.msra.mxu0 %v4327
        %4432 = vmatprep.subr.bf16.mxu0 0
        %4433 = vmatpush2.bf16.msra.mxu0 %v4342
        %4434 = vmatprep.subr.bf16.mxu0 0
        %4435 = vmatpush2.bf16.msra.mxu0 %v4341
        %4436 = vmatprep.subr.bf16.mxu0 0
        %4437 = vmatpush2.bf16.msra.mxu0 %v4340
        %4438 = vmatprep.subr.bf16.mxu0 0
        %4439 = vmatpush2.bf16.msra.mxu0 %v4339
        %4440 = vmatprep.subr.bf16.mxu0 0
        %4441 = vmatpush2.bf16.msra.mxu0 %v4338
        %4442 = vmatprep.subr.bf16.mxu0 0
        %4443 = vmatpush2.bf16.msra.mxu0 %v4337
        %4444 = vmatprep.subr.bf16.mxu0 0
        %4445 = vmatpush2.bf16.msra.mxu0 %v4336
        %4446 = vmatprep.subr.bf16.mxu0 0
        %4447 = vmatpush2.bf16.msra.mxu0 %v4335
        %4448 = vmatprep.mubr.bf16.mxu0 %v4118
        %4449 = vmatmul.mubr.bf16.gmra.mxu0 %v4117
        %v4450 = vpop.f32.mrf.mxu0
        %v4451 = vadd.f32 %v4410, %v4450
        %v4452 = vpop.f32.mrf.mxu0
        %v4453 = vpop.f32.mrf.mxu0
        %v4454 = vadd.f32 %v4413, %v4453
        %v4455 = vpop.f32.mrf.mxu0
        %4456 = vdwg.mxu0
        %v4457 = vadd.f32 %v3949, %v4451
        %v4458 = vadd.f32 %v3950, %v4454
        %v4459 = vld [vmem:[%s625] sm:$0x1]
        %v4461 = vlaneseq
        %v4462 = vshrl.u32 %v4461, 7
        %v4463 = vsub.s32 0, %v4462
        %v4464 = vrot.slane %v4459, %v4463
        %v4466 = vadd.f32 %v4457, %v4464
        %v4467 = vadd.f32 %v4458, %v4464
        %v4468 = vadd.f32 %v2425, %v4466
        %v4469 = vadd.f32 %v2426, %v4467
        %v4470 = vsel %vm702, %v4468, 0.0
        %4471 = vadd.xlane.f32.xlu0 %v4470
        %v4472 = vpop.xlane.xlu0 %4471
        %v4473 = vsel %vm702, %v4469, 0.0
        %4474 = vadd.xlane.f32.xlu0 %v4473
        %v4475 = vpop.xlane.xlu0 %4474
        %v4476 = vmul.f32 %v4472, %v2388
        %v4477 = vmul.f32 %v4475, %v2388
        %v4478 = vsub.f32 %v4468, %v4476
        %v4479 = vsub.f32 %v4469, %v4477
        %v4480 = vmul.f32 %v4478, %v4478
        %v4481 = vmul.f32 %v4479, %v4479
        %v4482 = vsel %vm702, %v4480, 0.0
        %4483 = vadd.xlane.f32.xlu0 %v4482
        %v4484 = vpop.xlane.xlu0 %4483
        %v4485 = vsel %vm702, %v4481, 0.0
        %4486 = vadd.xlane.f32.xlu0 %v4485
        %v4487 = vpop.xlane.xlu0 %4486
        %v4488 = vmul.f32 %v4484, %v2388
        %v4489 = vmul.f32 %v4487, %v2388
        %v4490 = vadd.f32 %v4488, 1e-05
        %v4491 = vadd.f32 %v4489, 1e-05
        %v4492 = vrsqrt.pop %v4490
        %v4493 = vrsqrt.pop %v4491
        %v4494 = vmul.f32 %v4478, %v4492
        %v4495 = vmul.f32 %v4479, %v4493
        %v4496 = vld [vmem:[%s628] sm:$0x1]
        %v4498 = vlaneseq
        %v4499 = vshrl.u32 %v4498, 7
        %v4500 = vsub.s32 0, %v4499
        %v4501 = vrot.slane %v4496, %v4500
        %v4503 = vmul.f32 %v4494, %v4501
        %v4504 = vmul.f32 %v4495, %v4501
        %v4505 = vld [vmem:[%s631] sm:$0x1]
        %v4507 = vlaneseq
        %v4508 = vshrl.u32 %v4507, 7
        %v4509 = vsub.s32 0, %v4508
        %v4510 = vrot.slane %v4505, %v4509
        %v4512 = vadd.f32 %v4503, %v4510
        %v4513 = vadd.f32 %v4504, %v4510
        %4514 = vst.msk [vmem:[#allocation2] sm:$0xff] %vm702, %v4512
        %4515 = vst.msk [vmem:[#allocation2 + $0x8] sm:$0xff] %vm702, %v4513
        %p4516 = scmp.eq.s32.totalorder %s26, 1
        // Predicated region
        $region81: #{tpu_custom_call.1} parent=75 // pred_check
          %p4517 = pneg %p4516
        $region82: #{tpu_custom_call.1} parent=75 // pred_check_branch
          %4519 = sbr.rel (%p4517) target = $region84
        $region83: #{tpu_custom_call.1} parent=75 // pred_region
          %v4520 = vsel %vm702, %v4512, 0.0
          %v4521 = vrot.slane %v4520, 4
          %v4522 = vadd.f32 %v4520, %v4521
          %v4523 = vrot.slane %v4522, 2
          %v4524 = vadd.f32 %v4522, %v4523
          %v4525 = vrot.slane %v4524, 1
          %v4526 = vadd.f32 %v4524, %v4525
          %v4527 = vsel %vm702, %v4513, 0.0
          %v4528 = vrot.slane %v4527, 4
          %v4529 = vadd.f32 %v4527, %v4528
          %v4530 = vrot.slane %v4529, 2
          %v4531 = vadd.f32 %v4529, %v4530
          %v4532 = vrot.slane %v4531, 1
          %v4533 = vadd.f32 %v4531, %v4532
          %v4534 = vrcp.pop 8.0
          %v4535 = vmul.f32 %v4526, %v4534
          %v4536 = vmul.f32 %v4533, %v4534
          %vm4539 = vcmask 1041409
          %v4540 = vsel %vm4539, %v4536, %v4535
          %vm4542 = vcmask 254976
          %4543 = vst.msk [vmem:[#allocation3] sm:$0x3] %vm4542, %v4540
        $region84: #{tpu_custom_call.1} parent=75 // pred_fallthru
          _
        // Predicated region
        $region85: #{tpu_custom_call.1} parent=75 // pred_check
          %p4544 = pneg %p393
        $region86: #{tpu_custom_call.1} parent=75 // pred_check_branch
          %4546 = sbr.rel (%p4544) target = $region88
        $region87: #{tpu_custom_call.1} parent=75 // pred_region
          %s4548 = ssub.s32 32, 32
          %4549 = vsyncadd [#allocation4], %s4548
          %s4551 = sshll.u32 [#allocation3], 4
          %s4552 = int_to_ptr.vmem [resolvable:$true] %s4551
          %4554 = dma.vmem_to_hbm [thread:$0]  %s4552, 32, %s14, [#allocation4]
        $region88: #{tpu_custom_call.1} parent=75 // pred_fallthru
          _
        // Predicated region
        $region89: #{tpu_custom_call.1} parent=75 // pred_check
          %p4555 = pneg %p393
        $region90: #{tpu_custom_call.1} parent=75 // pred_check_branch
          %4557 = sbr.rel (%p4555) target = $region92
        $region91: #{tpu_custom_call.1} parent=75 // pred_region
          %4558 = dma.done [#allocation4], 32
        $region92: #{tpu_custom_call.1} parent=75 // pred_fallthru
          _
      $region76: #{tpu_custom_call.1} parent=5 // pred_fallthru
        _
      %p4559 = scmp.le.s32.totalorder 2, %s21
      // Predicated region
      $region93: #{tpu_custom_call.1} parent=5 // pred_check
        %p4560 = pneg %p4559
      $region94: #{tpu_custom_call.1} parent=5 // pred_check_branch
        %4562 = sbr.rel (%p4560) target = $region96
      $region95: #{tpu_custom_call.1} parent=5 // pred_region
        %s4563 = ssub.s32 %s21, 2
      $region96: #{tpu_custom_call.1} parent=5 // pred_fallthru
        _
    $region6: #{tpu_custom_call.1} parent=1 // loop_footer
      %s25 = sadd.s32 1, %s21
    $region7: #{tpu_custom_call.1} parent=1 // loop_footer_branch
      %20 = sbr.rel target = $region3
    $region8: #{tpu_custom_call.1} parent=1 // loop_exit
      _
    %4564 = vsyncpa [#allocation4], 1
    %s4565 = scalar_lea.sflag [#allocation4], 1
    %4566 = vsyncpa %s4565, 1

</llo_original>
